<compile_context>
chip_gen: v5e
topology: v5e:2x2
jax: 0.10.0
libtpu: 0.0.40
codegen_flags: <defaults>
</compile_context>

<pallas_src>
import functools
import math

import jax
import jax.numpy as jnp
import numpy as np
from jax.experimental import pallas as pl
from jax.experimental.pallas import tpu as pltpu


# ----------------------------------------------------------------------------
# Pallas kernels
# ----------------------------------------------------------------------------

def _conv3x3_stats_kernel(xb_ref, w_ref, y_ref, ssum_ref, ssq_ref, *, th, W):
    """3x3/s1/p1 conv on one halo row-block + per-channel BN stat partials.

    xb_ref : (1, th+2, W+2, Cin) bf16  halo block of the zero-padded input
    w_ref  : (3, 3, Cin, tn)     bf16  weights
    y_ref  : (1, th*W, tn)       bf16  conv output (pre-BN)
    ssum_ref, ssq_ref : (1, 1, tn) f32 per-block per-channel sum / sum of squares
    """
    cin = xb_ref.shape[-1]
    tn = w_ref.shape[-1]
    x = xb_ref[0]                                     # (th+2, W+2, Cin) bf16
    acc = jnp.zeros((th * W, tn), jnp.float32)
    for kh in range(3):                               # statically unrolled 3x3 taps
        for kw in range(3):
            patch = x[kh:kh + th, kw:kw + W, :].reshape(th * W, cin)
            acc = acc + jnp.dot(patch, w_ref[kh, kw],
                                preferred_element_type=jnp.float32)
    y_ref[0] = acc.astype(y_ref.dtype)
    ssum_ref[0] = jnp.sum(acc, axis=0, keepdims=True)
    ssq_ref[0] = jnp.sum(acc * acc, axis=0, keepdims=True)


def _scale_shift_relu_kernel(y_ref, s_ref, t_ref, o_ref):
    """Fused BatchNorm affine apply + ReLU on one (tm, C) tile."""
    y = y_ref[...].astype(jnp.float32)
    o_ref[...] = jnp.maximum(y * s_ref[...] + t_ref[...], 0.0).astype(o_ref.dtype)


# ----------------------------------------------------------------------------
# Tiling helpers
# ----------------------------------------------------------------------------

def _pick_row_tile(N, H, W, cin, vmem_budget=2 * 1024 * 1024):
    """Largest th dividing H whose bf16 halo block fits the budget; prefer >=2 grid steps."""
    fallback = 1
    for th in range(min(H, 64), 0, -1):
        if H % th == 0 and (th + 2) * (W + 2) * cin * 2 <= vmem_budget:
            if N * (H // th) >= 2:
                return th
            if fallback == 1:
                fallback = th
    return fallback


def _pick_m_tile(M, cap=512):
    """Largest multiple-of-8 divisor of M <= cap, preferring >=2 grid steps."""
    cap = min(cap, M)
    if M >= 16:
        cap = min(cap, M // 2)
    for tm in range(cap, 0, -1):
        if M % tm == 0 and tm % 8 == 0:
            return tm
    return M


# ----------------------------------------------------------------------------
# Layer wrappers
# ----------------------------------------------------------------------------

def conv3x3_with_stats(x_nhwc, w_oihw):
    """3x3 conv (stride 1, pad 1, bias dropped: cancelled by training-mode BN).

    Returns (y_flat (N*H*W, Cout) bf16, channel_sum (Cout,), channel_sumsq (Cout,)).
    """
    N, H, W, Cin = x_nhwc.shape
    Cout = w_oihw.shape[0]
    th = _pick_row_tile(N, H, W, Cin)
    nhb = H // th
    NB = N * nhb

    # Overlapping halo row-blocks of the zero-padded input, bf16 MXU feeds.
    xp = jnp.pad(x_nhwc.astype(jnp.bfloat16), ((0, 0), (1, 1), (1, 1), (0, 0)))
    rows = jnp.arange(nhb)[:, None] * th + jnp.arange(th + 2)[None, :]
    xb = xp[:, rows].reshape(NB, th + 2, W + 2, Cin)

    # Weights (Cout, Cin, 3, 3) -> (3, 3, Cin, Cout), bf16.
    w = jnp.transpose(w_oihw, (2, 3, 1, 0)).astype(jnp.bfloat16)

    tn = 128 if Cout % 128 == 0 else Cout
    nct = Cout // tn

    y, ssum, ssq = pl.pallas_call(
        functools.partial(_conv3x3_stats_kernel, th=th, W=W),
        grid=(NB, nct),
        in_specs=[
            pl.BlockSpec((1, th + 2, W + 2, Cin), lambda i, j: (i, 0, 0, 0)),
            pl.BlockSpec((3, 3, Cin, tn), lambda i, j: (0, 0, 0, j)),
        ],
        out_specs=(
            pl.BlockSpec((1, th * W, tn), lambda i, j: (i, 0, j)),
            pl.BlockSpec((1, 1, tn), lambda i, j: (i, 0, j)),
            pl.BlockSpec((1, 1, tn), lambda i, j: (i, 0, j)),
        ),
        out_shape=(
            jax.ShapeDtypeStruct((NB, th * W, Cout), jnp.bfloat16),
            jax.ShapeDtypeStruct((NB, 1, Cout), jnp.float32),
            jax.ShapeDtypeStruct((NB, 1, Cout), jnp.float32),
        ),
        compiler_params=pltpu.CompilerParams(
            dimension_semantics=("parallel", "parallel")),
    )(xb, w)

    return (y.reshape(N * H * W, Cout),
            jnp.sum(ssum[:, 0, :], axis=0),
            jnp.sum(ssq[:, 0, :], axis=0))


def bn_relu_apply(y_flat, ssum, ssq, gamma, beta, count, out_dtype):
    """Training-mode BatchNorm (batch stats, biased variance, eps=1e-5) + ReLU, tiled."""
    M, C = y_flat.shape
    # Tiny (C,)-sized math: mean/var -> fused scale/shift.
    mean = ssum / count
    var = jnp.maximum(ssq / count - mean * mean, 0.0)           # biased variance
    scale = gamma.astype(jnp.float32) * jax.lax.rsqrt(var + 1e-5)
    shift = beta.astype(jnp.float32) - mean * scale

    tm = _pick_m_tile(M)
    return pl.pallas_call(
        _scale_shift_relu_kernel,
        grid=(M // tm,),
        in_specs=[
            pl.BlockSpec((tm, C), lambda i: (i, 0)),
            pl.BlockSpec((1, C), lambda i: (0, 0)),
            pl.BlockSpec((1, C), lambda i: (0, 0)),
        ],
        out_specs=pl.BlockSpec((tm, C), lambda i: (i, 0)),
        out_shape=jax.ShapeDtypeStruct((M, C), out_dtype),
        compiler_params=pltpu.CompilerParams(dimension_semantics=("parallel",)),
    )(y_flat, scale.reshape(1, C), shift.reshape(1, C))


def conv_bn_relu(x_nhwc, w, gamma, beta, out_dtype):
    N, H, W, _ = x_nhwc.shape
    Cout = w.shape[0]
    y, ssum, ssq = conv3x3_with_stats(x_nhwc, w)
    a = bn_relu_apply(y, ssum, ssq, gamma, beta, float(N * H * W), out_dtype)
    return a.reshape(N, H, W, Cout)


def conv_block_apply(params, x_nchw):
    """Forward of conv_block: (Conv3x3 -> BN(train) -> ReLU) x 2.  NCHW in / NCHW out."""
    x = jnp.transpose(x_nchw, (0, 2, 3, 1))                     # NCHW -> NHWC
    h = conv_bn_relu(x, params["w1"], params["g1"], params["beta1"], jnp.bfloat16)
    h = conv_bn_relu(h, params["w2"], params["g2"], params["beta2"], jnp.float32)
    return jnp.transpose(h, (0, 3, 1, 2))                       # NHWC -> NCHW


# ----------------------------------------------------------------------------
# Parameters (PyTorch-like uniform(-1/sqrt(fan_in), +) init; BN gamma=1, beta=0)
# ----------------------------------------------------------------------------

def init_params(key, ch_in, ch_out):
    k1, k2, k3, k4 = jax.random.split(key, 4)

    def conv_init(kw_, kb_, cout, cin):
        bound = 1.0 / math.sqrt(cin * 9)
        w = jax.random.uniform(kw_, (cout, cin, 3, 3), jnp.float32, -bound, bound)
        b = jax.random.uniform(kb_, (cout,), jnp.float32, -bound, bound)
        return w, b

    w1, b1 = conv_init(k1, k2, ch_out, ch_in)
    w2, b2 = conv_init(k3, k4, ch_out, ch_out)
    # b1/b2 are kept for parity with nn.Conv2d(bias=True) but are NOT applied in the
    # kernels: training-mode BatchNorm cancels a constant per-channel bias exactly.
    return dict(w1=w1, b1=b1, g1=jnp.ones(ch_out, jnp.float32), beta1=jnp.zeros(ch_out, jnp.float32),
                w2=w2, b2=b2, g2=jnp.ones(ch_out, jnp.float32), beta2=jnp.zeros(ch_out, jnp.float32))


# ----------------------------------------------------------------------------
# Pure-JAX f32 reference (includes the conv bias, proving the cancellation is exact)
# ----------------------------------------------------------------------------

def conv_block_reference(params, x_nchw):
    def conv(x, w, b):
        y = jax.lax.conv_general_dilated(
            x, w, window_strides=(1, 1), padding="SAME",
            dimension_numbers=("NCHW", "OIHW", "NCHW"))
        return y + b[None, :, None, None]

    def bn_relu(x, g, be):
        mean = jnp.mean(x, axis=(0, 2, 3), keepdims=True)
        var = jnp.mean(jnp.square(x - mean), axis=(0, 2, 3), keepdims=True)
        y = (x - mean) * jax.lax.rsqrt(var + 1e-5) * g[None, :, None, None] \
            + be[None, :, None, None]
        return jnp.maximum(y, 0.0)

    h = bn_relu(conv(x_nchw, params["w1"], params["b1"]), params["g1"], params["beta1"])
    h = bn_relu(conv(h, params["w2"], params["b2"]), params["g2"], params["beta2"])
    return h


if __name__ == "__main__":
    key = jax.random.PRNGKey(0)
    kp, kx = jax.random.split(key)
    ch_in, ch_out = 4, 32
    params = init_params(kp, ch_in, ch_out)
    x = jax.random.normal(kx, (2, ch_in, 16, 16), jnp.float32)   # small NCHW input

    fwd = jax.jit(conv_block_apply)
    out = fwd(params, x)
    jax.block_until_ready(out)

    assert out.shape == (2, ch_out, 16, 16)
    assert bool(jnp.all(out >= 0.0))

    # Loose tolerance: bf16 MXU feeds / bf16 intermediate activations.
    ref = conv_block_reference(params, x)
    np.testing.assert_allclose(np.asarray(out), np.asarray(ref), rtol=0.1, atol=0.15)

    print("KERNEL_OK")
</pallas_src>

<mosaic_0001>
module attributes {stable_mosaic.version = 11 : i64} {
  func.func @_conv3x3_stats_kernel(%arg0: i32, %arg1: i32, %arg2: memref<1x18x18x4xbf16, #tpu.memory_space<vmem>>, %arg3: memref<3x3x4x32xbf16, #tpu.memory_space<vmem>>, %arg4: memref<1x256x32xbf16, #tpu.memory_space<vmem>>, %arg5: memref<1x1x32xf32, #tpu.memory_space<vmem>>, %arg6: memref<1x1x32xf32, #tpu.memory_space<vmem>>) attributes {dimension_semantics = [#tpu.dimension_semantics<parallel>, #tpu.dimension_semantics<parallel>], iteration_bounds = array<i64: 2, 1>, scalar_prefetch = 0 : i64, scratch_operands = 0 : i64, tpu.core_type = #tpu.core_type<tc>, window_params = [{transform_indices = @transform_0, window_bounds = array<i64: 1, 18, 18, 4>}, {transform_indices = @transform_1, window_bounds = array<i64: 3, 3, 4, 32>}, {transform_indices = @transform_2, window_bounds = array<i64: 1, 256, 32>}, {transform_indices = @transform_3, window_bounds = array<i64: 1, 1, 32>}, {transform_indices = @transform_4, window_bounds = array<i64: 1, 1, 32>}]} {
    %c0 = arith.constant 0 : index
    %c0_0 = arith.constant 0 : index
    %c0_1 = arith.constant 0 : index
    %c0_2 = arith.constant 0 : index
    %0 = vector.load %arg2[%c0, %c0_0, %c0_1, %c0_2] : memref<1x18x18x4xbf16, #tpu.memory_space<vmem>>, vector<1x18x18x4xbf16>
    %1 = vector.shape_cast %0 : vector<1x18x18x4xbf16> to vector<18x18x4xbf16>
    %cst = arith.constant 0.000000e+00 : f32
    %2 = vector.broadcast %cst : f32 to vector<256x32xf32>
    %3 = vector.extract_strided_slice %1 {offsets = [0, 0, 0], sizes = [16, 16, 4], strides = [1, 1, 1]} : vector<18x18x4xbf16> to vector<16x16x4xbf16>
    %4 = vector.shape_cast %3 : vector<16x16x4xbf16> to vector<256x4xbf16>
    %c0_3 = arith.constant 0 : index
    %c0_4 = arith.constant 0 : index
    %c0_5 = arith.constant 0 : index
    %c0_6 = arith.constant 0 : index
    %5 = vector.load %arg3[%c0_3, %c0_4, %c0_5, %c0_6] : memref<3x3x4x32xbf16, #tpu.memory_space<vmem>>, vector<1x1x4x32xbf16>
    %6 = vector.shape_cast %5 : vector<1x1x4x32xbf16> to vector<4x32xbf16>
    %cst_7 = arith.constant dense<0.000000e+00> : vector<256x32xf32>
    %7 = tpu.matmul %4, %6, %cst_7 {dimension_numbers = #tpu.dot_dimension_numbers<[1], [0], [0], [1], [0, 0, 1, 1], [], []>} : vector<256x4xbf16>, vector<4x32xbf16>, vector<256x32xf32> -> vector<256x32xf32>
    %8 = arith.addf %2, %7 : vector<256x32xf32>
    %9 = vector.extract_strided_slice %1 {offsets = [0, 1, 0], sizes = [16, 16, 4], strides = [1, 1, 1]} : vector<18x18x4xbf16> to vector<16x16x4xbf16>
    %10 = vector.shape_cast %9 : vector<16x16x4xbf16> to vector<256x4xbf16>
    %c0_8 = arith.constant 0 : index
    %c1 = arith.constant 1 : index
    %c0_9 = arith.constant 0 : index
    %c0_10 = arith.constant 0 : index
    %11 = vector.load %arg3[%c0_8, %c1, %c0_9, %c0_10] : memref<3x3x4x32xbf16, #tpu.memory_space<vmem>>, vector<1x1x4x32xbf16>
    %12 = vector.shape_cast %11 : vector<1x1x4x32xbf16> to vector<4x32xbf16>
    %cst_11 = arith.constant dense<0.000000e+00> : vector<256x32xf32>
    %13 = tpu.matmul %10, %12, %cst_11 {dimension_numbers = #tpu.dot_dimension_numbers<[1], [0], [0], [1], [0, 0, 1, 1], [], []>} : vector<256x4xbf16>, vector<4x32xbf16>, vector<256x32xf32> -> vector<256x32xf32>
    %14 = arith.addf %8, %13 : vector<256x32xf32>
    %15 = vector.extract_strided_slice %1 {offsets = [0, 2, 0], sizes = [16, 16, 4], strides = [1, 1, 1]} : vector<18x18x4xbf16> to vector<16x16x4xbf16>
    %16 = vector.shape_cast %15 : vector<16x16x4xbf16> to vector<256x4xbf16>
    %c0_12 = arith.constant 0 : index
    %c2 = arith.constant 2 : index
    %c0_13 = arith.constant 0 : index
    %c0_14 = arith.constant 0 : index
    %17 = vector.load %arg3[%c0_12, %c2, %c0_13, %c0_14] : memref<3x3x4x32xbf16, #tpu.memory_space<vmem>>, vector<1x1x4x32xbf16>
    %18 = vector.shape_cast %17 : vector<1x1x4x32xbf16> to vector<4x32xbf16>
    %cst_15 = arith.constant dense<0.000000e+00> : vector<256x32xf32>
    %19 = tpu.matmul %16, %18, %cst_15 {dimension_numbers = #tpu.dot_dimension_numbers<[1], [0], [0], [1], [0, 0, 1, 1], [], []>} : vector<256x4xbf16>, vector<4x32xbf16>, vector<256x32xf32> -> vector<256x32xf32>
    %20 = arith.addf %14, %19 : vector<256x32xf32>
    %21 = vector.extract_strided_slice %1 {offsets = [1, 0, 0], sizes = [16, 16, 4], strides = [1, 1, 1]} : vector<18x18x4xbf16> to vector<16x16x4xbf16>
    %22 = vector.shape_cast %21 : vector<16x16x4xbf16> to vector<256x4xbf16>
    %c1_16 = arith.constant 1 : index
    %c0_17 = arith.constant 0 : index
    %c0_18 = arith.constant 0 : index
    %c0_19 = arith.constant 0 : index
    %23 = vector.load %arg3[%c1_16, %c0_17, %c0_18, %c0_19] : memref<3x3x4x32xbf16, #tpu.memory_space<vmem>>, vector<1x1x4x32xbf16>
    %24 = vector.shape_cast %23 : vector<1x1x4x32xbf16> to vector<4x32xbf16>
    %cst_20 = arith.constant dense<0.000000e+00> : vector<256x32xf32>
    %25 = tpu.matmul %22, %24, %cst_20 {dimension_numbers = #tpu.dot_dimension_numbers<[1], [0], [0], [1], [0, 0, 1, 1], [], []>} : vector<256x4xbf16>, vector<4x32xbf16>, vector<256x32xf32> -> vector<256x32xf32>
    %26 = arith.addf %20, %25 : vector<256x32xf32>
    %27 = vector.extract_strided_slice %1 {offsets = [1, 1, 0], sizes = [16, 16, 4], strides = [1, 1, 1]} : vector<18x18x4xbf16> to vector<16x16x4xbf16>
    %28 = vector.shape_cast %27 : vector<16x16x4xbf16> to vector<256x4xbf16>
    %c1_21 = arith.constant 1 : index
    %c1_22 = arith.constant 1 : index
    %c0_23 = arith.constant 0 : index
    %c0_24 = arith.constant 0 : index
    %29 = vector.load %arg3[%c1_21, %c1_22, %c0_23, %c0_24] : memref<3x3x4x32xbf16, #tpu.memory_space<vmem>>, vector<1x1x4x32xbf16>
    %30 = vector.shape_cast %29 : vector<1x1x4x32xbf16> to vector<4x32xbf16>
    %cst_25 = arith.constant dense<0.000000e+00> : vector<256x32xf32>
    %31 = tpu.matmul %28, %30, %cst_25 {dimension_numbers = #tpu.dot_dimension_numbers<[1], [0], [0], [1], [0, 0, 1, 1], [], []>} : vector<256x4xbf16>, vector<4x32xbf16>, vector<256x32xf32> -> vector<256x32xf32>
    %32 = arith.addf %26, %31 : vector<256x32xf32>
    %33 = vector.extract_strided_slice %1 {offsets = [1, 2, 0], sizes = [16, 16, 4], strides = [1, 1, 1]} : vector<18x18x4xbf16> to vector<16x16x4xbf16>
    %34 = vector.shape_cast %33 : vector<16x16x4xbf16> to vector<256x4xbf16>
    %c1_26 = arith.constant 1 : index
    %c2_27 = arith.constant 2 : index
    %c0_28 = arith.constant 0 : index
    %c0_29 = arith.constant 0 : index
    %35 = vector.load %arg3[%c1_26, %c2_27, %c0_28, %c0_29] : memref<3x3x4x32xbf16, #tpu.memory_space<vmem>>, vector<1x1x4x32xbf16>
    %36 = vector.shape_cast %35 : vector<1x1x4x32xbf16> to vector<4x32xbf16>
    %cst_30 = arith.constant dense<0.000000e+00> : vector<256x32xf32>
    %37 = tpu.matmul %34, %36, %cst_30 {dimension_numbers = #tpu.dot_dimension_numbers<[1], [0], [0], [1], [0, 0, 1, 1], [], []>} : vector<256x4xbf16>, vector<4x32xbf16>, vector<256x32xf32> -> vector<256x32xf32>
    %38 = arith.addf %32, %37 : vector<256x32xf32>
    %39 = vector.extract_strided_slice %1 {offsets = [2, 0, 0], sizes = [16, 16, 4], strides = [1, 1, 1]} : vector<18x18x4xbf16> to vector<16x16x4xbf16>
    %40 = vector.shape_cast %39 : vector<16x16x4xbf16> to vector<256x4xbf16>
    %c2_31 = arith.constant 2 : index
    %c0_32 = arith.constant 0 : index
    %c0_33 = arith.constant 0 : index
    %c0_34 = arith.constant 0 : index
    %41 = vector.load %arg3[%c2_31, %c0_32, %c0_33, %c0_34] : memref<3x3x4x32xbf16, #tpu.memory_space<vmem>>, vector<1x1x4x32xbf16>
    %42 = vector.shape_cast %41 : vector<1x1x4x32xbf16> to vector<4x32xbf16>
    %cst_35 = arith.constant dense<0.000000e+00> : vector<256x32xf32>
    %43 = tpu.matmul %40, %42, %cst_35 {dimension_numbers = #tpu.dot_dimension_numbers<[1], [0], [0], [1], [0, 0, 1, 1], [], []>} : vector<256x4xbf16>, vector<4x32xbf16>, vector<256x32xf32> -> vector<256x32xf32>
    %44 = arith.addf %38, %43 : vector<256x32xf32>
    %45 = vector.extract_strided_slice %1 {offsets = [2, 1, 0], sizes = [16, 16, 4], strides = [1, 1, 1]} : vector<18x18x4xbf16> to vector<16x16x4xbf16>
    %46 = vector.shape_cast %45 : vector<16x16x4xbf16> to vector<256x4xbf16>
    %c2_36 = arith.constant 2 : index
    %c1_37 = arith.constant 1 : index
    %c0_38 = arith.constant 0 : index
    %c0_39 = arith.constant 0 : index
    %47 = vector.load %arg3[%c2_36, %c1_37, %c0_38, %c0_39] : memref<3x3x4x32xbf16, #tpu.memory_space<vmem>>, vector<1x1x4x32xbf16>
    %48 = vector.shape_cast %47 : vector<1x1x4x32xbf16> to vector<4x32xbf16>
    %cst_40 = arith.constant dense<0.000000e+00> : vector<256x32xf32>
    %49 = tpu.matmul %46, %48, %cst_40 {dimension_numbers = #tpu.dot_dimension_numbers<[1], [0], [0], [1], [0, 0, 1, 1], [], []>} : vector<256x4xbf16>, vector<4x32xbf16>, vector<256x32xf32> -> vector<256x32xf32>
    %50 = arith.addf %44, %49 : vector<256x32xf32>
    %51 = vector.extract_strided_slice %1 {offsets = [2, 2, 0], sizes = [16, 16, 4], strides = [1, 1, 1]} : vector<18x18x4xbf16> to vector<16x16x4xbf16>
    %52 = vector.shape_cast %51 : vector<16x16x4xbf16> to vector<256x4xbf16>
    %c2_41 = arith.constant 2 : index
    %c2_42 = arith.constant 2 : index
    %c0_43 = arith.constant 0 : index
    %c0_44 = arith.constant 0 : index
    %53 = vector.load %arg3[%c2_41, %c2_42, %c0_43, %c0_44] : memref<3x3x4x32xbf16, #tpu.memory_space<vmem>>, vector<1x1x4x32xbf16>
    %54 = vector.shape_cast %53 : vector<1x1x4x32xbf16> to vector<4x32xbf16>
    %cst_45 = arith.constant dense<0.000000e+00> : vector<256x32xf32>
    %55 = tpu.matmul %52, %54, %cst_45 {dimension_numbers = #tpu.dot_dimension_numbers<[1], [0], [0], [1], [0, 0, 1, 1], [], []>} : vector<256x4xbf16>, vector<4x32xbf16>, vector<256x32xf32> -> vector<256x32xf32>
    %56 = arith.addf %50, %55 : vector<256x32xf32>
    %57 = arith.truncf %56 : vector<256x32xf32> to vector<256x32xbf16>
    %c0_46 = arith.constant 0 : index
    %c0_47 = arith.constant 0 : index
    %c0_48 = arith.constant 0 : index
    %58 = vector.load %arg4[%c0_46, %c0_47, %c0_48] : memref<1x256x32xbf16, #tpu.memory_space<vmem>>, vector<1x256x32xbf16>
    %59 = vector.shape_cast %58 : vector<1x256x32xbf16> to vector<256x32xbf16>
    %60 = vector.shape_cast %57 : vector<256x32xbf16> to vector<1x256x32xbf16>
    tpu.vector_store %arg4[%c0_46, %c0_47, %c0_48], %60 {strides = array<i32>} : memref<1x256x32xbf16, #tpu.memory_space<vmem>>, vector<1x256x32xbf16>,
    %cst_49 = arith.constant dense<0.000000e+00> : vector<32xf32>
    %61 = vector.multi_reduction <add>, %56, %cst_49 [0] : vector<256x32xf32> to vector<32xf32>
    %62 = vector.shape_cast %61 : vector<32xf32> to vector<1x32xf32>
    %c0_50 = arith.constant 0 : index
    %c0_51 = arith.constant 0 : index
    %c0_52 = arith.constant 0 : index
    %63 = vector.load %arg5[%c0_50, %c0_51, %c0_52] : memref<1x1x32xf32, #tpu.memory_space<vmem>>, vector<1x1x32xf32>
    %64 = vector.shape_cast %63 : vector<1x1x32xf32> to vector<1x32xf32>
    %65 = vector.shape_cast %62 : vector<1x32xf32> to vector<1x1x32xf32>
    tpu.vector_store %arg5[%c0_50, %c0_51, %c0_52], %65 {strides = array<i32>} : memref<1x1x32xf32, #tpu.memory_space<vmem>>, vector<1x1x32xf32>,
    %66 = arith.mulf %56, %56 : vector<256x32xf32>
    %cst_53 = arith.constant dense<0.000000e+00> : vector<32xf32>
    %67 = vector.multi_reduction <add>, %66, %cst_53 [0] : vector<256x32xf32> to vector<32xf32>
    %68 = vector.shape_cast %67 : vector<32xf32> to vector<1x32xf32>
    %c0_54 = arith.constant 0 : index
    %c0_55 = arith.constant 0 : index
    %c0_56 = arith.constant 0 : index
    %69 = vector.load %arg6[%c0_54, %c0_55, %c0_56] : memref<1x1x32xf32, #tpu.memory_space<vmem>>, vector<1x1x32xf32>
    %70 = vector.shape_cast %69 : vector<1x1x32xf32> to vector<1x32xf32>
    %71 = vector.shape_cast %68 : vector<1x32xf32> to vector<1x1x32xf32>
    tpu.vector_store %arg6[%c0_54, %c0_55, %c0_56], %71 {strides = array<i32>} : memref<1x1x32xf32, #tpu.memory_space<vmem>>, vector<1x1x32xf32>,
    return
  }
  func.func @transform_0(%arg0: i32, %arg1: i32) -> (i32, i32, i32, i32) {
    %c0_i32 = arith.constant 0 : i32
    %c0_i32_0 = arith.constant 0 : i32
    %c0_i32_1 = arith.constant 0 : i32
    %c0_i32_2 = arith.constant 0 : i32
    return %arg0, %c0_i32, %c0_i32_0, %c0_i32_1 : i32, i32, i32, i32
  }
  func.func @transform_1(%arg0: i32, %arg1: i32) -> (i32, i32, i32, i32) {
    %c0_i32 = arith.constant 0 : i32
    %c0_i32_0 = arith.constant 0 : i32
    %c0_i32_1 = arith.constant 0 : i32
    %c0_i32_2 = arith.constant 0 : i32
    return %c0_i32, %c0_i32_0, %c0_i32_1, %arg1 : i32, i32, i32, i32
  }
  func.func @transform_2(%arg0: i32, %arg1: i32) -> (i32, i32, i32) {
    %c0_i32 = arith.constant 0 : i32
    %c0_i32_0 = arith.constant 0 : i32
    return %arg0, %c0_i32, %arg1 : i32, i32, i32
  }
  func.func @transform_3(%arg0: i32, %arg1: i32) -> (i32, i32, i32) {
    %c0_i32 = arith.constant 0 : i32
    %c0_i32_0 = arith.constant 0 : i32
    return %arg0, %c0_i32, %arg1 : i32, i32, i32
  }
  func.func @transform_4(%arg0: i32, %arg1: i32) -> (i32, i32, i32) {
    %c0_i32 = arith.constant 0 : i32
    %c0_i32_0 = arith.constant 0 : i32
    return %arg0, %c0_i32, %arg1 : i32, i32, i32
  }
}

module attributes {stable_mosaic.version = 11 : i64} {
  func.func @_scale_shift_relu_kernel(%arg0: i32, %arg1: memref<256x32xbf16, #tpu.memory_space<vmem>>, %arg2: memref<1x32xf32, #tpu.memory_space<vmem>>, %arg3: memref<1x32xf32, #tpu.memory_space<vmem>>, %arg4: memref<256x32xbf16, #tpu.memory_space<vmem>>) attributes {dimension_semantics = [#tpu.dimension_semantics<parallel>], iteration_bounds = array<i64: 2>, scalar_prefetch = 0 : i64, scratch_operands = 0 : i64, tpu.core_type = #tpu.core_type<tc>, window_params = [{transform_indices = @transform_0, window_bounds = array<i64: 256, 32>}, {pipeline_mode = #tpu.pipeline_mode<synchronous>, transform_indices = @transform_1, window_bounds = array<i64: 1, 32>}, {pipeline_mode = #tpu.pipeline_mode<synchronous>, transform_indices = @transform_2, window_bounds = array<i64: 1, 32>}, {transform_indices = @transform_3, window_bounds = array<i64: 256, 32>}]} {
    %c0 = arith.constant 0 : index
    %c0_0 = arith.constant 0 : index
    %0 = vector.load %arg1[%c0, %c0_0] : memref<256x32xbf16, #tpu.memory_space<vmem>>, vector<256x32xbf16>
    %1 = arith.extf %0 : vector<256x32xbf16> to vector<256x32xf32>
    %c0_1 = arith.constant 0 : index
    %c0_2 = arith.constant 0 : index
    %2 = vector.load %arg2[%c0_1, %c0_2] : memref<1x32xf32, #tpu.memory_space<vmem>>, vector<1x32xf32>
    %3 = vector.broadcast %2 : vector<1x32xf32> to vector<256x32xf32>
    %4 = arith.mulf %1, %3 : vector<256x32xf32>
    %c0_3 = arith.constant 0 : index
    %c0_4 = arith.constant 0 : index
    %5 = vector.load %arg3[%c0_3, %c0_4] : memref<1x32xf32, #tpu.memory_space<vmem>>, vector<1x32xf32>
    %6 = vector.broadcast %5 : vector<1x32xf32> to vector<256x32xf32>
    %7 = arith.addf %4, %6 : vector<256x32xf32>
    %cst = arith.constant 0.000000e+00 : f32
    %8 = vector.broadcast %cst : f32 to vector<256x32xf32>
    %9 = arith.maximumf %7, %8 : vector<256x32xf32>
    %10 = arith.truncf %9 : vector<256x32xf32> to vector<256x32xbf16>
    %c0_5 = arith.constant 0 : index
    %c0_6 = arith.constant 0 : index
    %11 = vector.load %arg4[%c0_5, %c0_6] : memref<256x32xbf16, #tpu.memory_space<vmem>>, vector<256x32xbf16>
    tpu.vector_store %arg4[%c0_5, %c0_6], %10 {strides = array<i32>} : memref<256x32xbf16, #tpu.memory_space<vmem>>, vector<256x32xbf16>,
    return
  }
  func.func @transform_0(%arg0: i32) -> (i32, i32) {
    %c0_i32 = arith.constant 0 : i32
    %c0_i32_0 = arith.constant 0 : i32
    return %arg0, %c0_i32 : i32, i32
  }
  func.func @transform_1(%arg0: i32) -> (i32, i32) {
    %c0_i32 = arith.constant 0 : i32
    %c0_i32_0 = arith.constant 0 : i32
    %c0_i32_1 = arith.constant 0 : i32
    return %c0_i32, %c0_i32_0 : i32, i32
  }
  func.func @transform_2(%arg0: i32) -> (i32, i32) {
    %c0_i32 = arith.constant 0 : i32
    %c0_i32_0 = arith.constant 0 : i32
    %c0_i32_1 = arith.constant 0 : i32
    return %c0_i32, %c0_i32_0 : i32, i32
  }
  func.func @transform_3(%arg0: i32) -> (i32, i32) {
    %c0_i32 = arith.constant 0 : i32
    %c0_i32_0 = arith.constant 0 : i32
    return %arg0, %c0_i32 : i32, i32
  }
}

module attributes {stable_mosaic.version = 11 : i64} {
  func.func @_conv3x3_stats_kernel(%arg0: i32, %arg1: i32, %arg2: memref<1x18x18x32xbf16, #tpu.memory_space<vmem>>, %arg3: memref<3x3x32x32xbf16, #tpu.memory_space<vmem>>, %arg4: memref<1x256x32xbf16, #tpu.memory_space<vmem>>, %arg5: memref<1x1x32xf32, #tpu.memory_space<vmem>>, %arg6: memref<1x1x32xf32, #tpu.memory_space<vmem>>) attributes {dimension_semantics = [#tpu.dimension_semantics<parallel>, #tpu.dimension_semantics<parallel>], iteration_bounds = array<i64: 2, 1>, scalar_prefetch = 0 : i64, scratch_operands = 0 : i64, tpu.core_type = #tpu.core_type<tc>, window_params = [{transform_indices = @transform_0, window_bounds = array<i64: 1, 18, 18, 32>}, {transform_indices = @transform_1, window_bounds = array<i64: 3, 3, 32, 32>}, {transform_indices = @transform_2, window_bounds = array<i64: 1, 256, 32>}, {transform_indices = @transform_3, window_bounds = array<i64: 1, 1, 32>}, {transform_indices = @transform_4, window_bounds = array<i64: 1, 1, 32>}]} {
    %c0 = arith.constant 0 : index
    %c0_0 = arith.constant 0 : index
    %c0_1 = arith.constant 0 : index
    %c0_2 = arith.constant 0 : index
    %0 = vector.load %arg2[%c0, %c0_0, %c0_1, %c0_2] : memref<1x18x18x32xbf16, #tpu.memory_space<vmem>>, vector<1x18x18x32xbf16>
    %1 = vector.shape_cast %0 : vector<1x18x18x32xbf16> to vector<18x18x32xbf16>
    %cst = arith.constant 0.000000e+00 : f32
    %2 = vector.broadcast %cst : f32 to vector<256x32xf32>
    %3 = vector.extract_strided_slice %1 {offsets = [0, 0, 0], sizes = [16, 16, 32], strides = [1, 1, 1]} : vector<18x18x32xbf16> to vector<16x16x32xbf16>
    %4 = vector.shape_cast %3 : vector<16x16x32xbf16> to vector<256x32xbf16>
    %c0_3 = arith.constant 0 : index
    %c0_4 = arith.constant 0 : index
    %c0_5 = arith.constant 0 : index
    %c0_6 = arith.constant 0 : index
    %5 = vector.load %arg3[%c0_3, %c0_4, %c0_5, %c0_6] : memref<3x3x32x32xbf16, #tpu.memory_space<vmem>>, vector<1x1x32x32xbf16>
    %6 = vector.shape_cast %5 : vector<1x1x32x32xbf16> to vector<32x32xbf16>
    %cst_7 = arith.constant dense<0.000000e+00> : vector<256x32xf32>
    %7 = tpu.matmul %4, %6, %cst_7 {dimension_numbers = #tpu.dot_dimension_numbers<[1], [0], [0], [1], [0, 0, 1, 1], [], []>} : vector<256x32xbf16>, vector<32x32xbf16>, vector<256x32xf32> -> vector<256x32xf32>
    %8 = arith.addf %2, %7 : vector<256x32xf32>
    %9 = vector.extract_strided_slice %1 {offsets = [0, 1, 0], sizes = [16, 16, 32], strides = [1, 1, 1]} : vector<18x18x32xbf16> to vector<16x16x32xbf16>
    %10 = vector.shape_cast %9 : vector<16x16x32xbf16> to vector<256x32xbf16>
    %c0_8 = arith.constant 0 : index
    %c1 = arith.constant 1 : index
    %c0_9 = arith.constant 0 : index
    %c0_10 = arith.constant 0 : index
    %11 = vector.load %arg3[%c0_8, %c1, %c0_9, %c0_10] : memref<3x3x32x32xbf16, #tpu.memory_space<vmem>>, vector<1x1x32x32xbf16>
    %12 = vector.shape_cast %11 : vector<1x1x32x32xbf16> to vector<32x32xbf16>
    %cst_11 = arith.constant dense<0.000000e+00> : vector<256x32xf32>
    %13 = tpu.matmul %10, %12, %cst_11 {dimension_numbers = #tpu.dot_dimension_numbers<[1], [0], [0], [1], [0, 0, 1, 1], [], []>} : vector<256x32xbf16>, vector<32x32xbf16>, vector<256x32xf32> -> vector<256x32xf32>
    %14 = arith.addf %8, %13 : vector<256x32xf32>
    %15 = vector.extract_strided_slice %1 {offsets = [0, 2, 0], sizes = [16, 16, 32], strides = [1, 1, 1]} : vector<18x18x32xbf16> to vector<16x16x32xbf16>
    %16 = vector.shape_cast %15 : vector<16x16x32xbf16> to vector<256x32xbf16>
    %c0_12 = arith.constant 0 : index
    %c2 = arith.constant 2 : index
    %c0_13 = arith.constant 0 : index
    %c0_14 = arith.constant 0 : index
    %17 = vector.load %arg3[%c0_12, %c2, %c0_13, %c0_14] : memref<3x3x32x32xbf16, #tpu.memory_space<vmem>>, vector<1x1x32x32xbf16>
    %18 = vector.shape_cast %17 : vector<1x1x32x32xbf16> to vector<32x32xbf16>
    %cst_15 = arith.constant dense<0.000000e+00> : vector<256x32xf32>
    %19 = tpu.matmul %16, %18, %cst_15 {dimension_numbers = #tpu.dot_dimension_numbers<[1], [0], [0], [1], [0, 0, 1, 1], [], []>} : vector<256x32xbf16>, vector<32x32xbf16>, vector<256x32xf32> -> vector<256x32xf32>
    %20 = arith.addf %14, %19 : vector<256x32xf32>
    %21 = vector.extract_strided_slice %1 {offsets = [1, 0, 0], sizes = [16, 16, 32], strides = [1, 1, 1]} : vector<18x18x32xbf16> to vector<16x16x32xbf16>
    %22 = vector.shape_cast %21 : vector<16x16x32xbf16> to vector<256x32xbf16>
    %c1_16 = arith.constant 1 : index
    %c0_17 = arith.constant 0 : index
    %c0_18 = arith.constant 0 : index
    %c0_19 = arith.constant 0 : index
    %23 = vector.load %arg3[%c1_16, %c0_17, %c0_18, %c0_19] : memref<3x3x32x32xbf16, #tpu.memory_space<vmem>>, vector<1x1x32x32xbf16>
    %24 = vector.shape_cast %23 : vector<1x1x32x32xbf16> to vector<32x32xbf16>
    %cst_20 = arith.constant dense<0.000000e+00> : vector<256x32xf32>
    %25 = tpu.matmul %22, %24, %cst_20 {dimension_numbers = #tpu.dot_dimension_numbers<[1], [0], [0], [1], [0, 0, 1, 1], [], []>} : vector<256x32xbf16>, vector<32x32xbf16>, vector<256x32xf32> -> vector<256x32xf32>
    %26 = arith.addf %20, %25 : vector<256x32xf32>
    %27 = vector.extract_strided_slice %1 {offsets = [1, 1, 0], sizes = [16, 16, 32], strides = [1, 1, 1]} : vector<18x18x32xbf16> to vector<16x16x32xbf16>
    %28 = vector.shape_cast %27 : vector<16x16x32xbf16> to vector<256x32xbf16>
    %c1_21 = arith.constant 1 : index
    %c1_22 = arith.constant 1 : index
    %c0_23 = arith.constant 0 : index
    %c0_24 = arith.constant 0 : index
    %29 = vector.load %arg3[%c1_21, %c1_22, %c0_23, %c0_24] : memref<3x3x32x32xbf16, #tpu.memory_space<vmem>>, vector<1x1x32x32xbf16>
    %30 = vector.shape_cast %29 : vector<1x1x32x32xbf16> to vector<32x32xbf16>
    %cst_25 = arith.constant dense<0.000000e+00> : vector<256x32xf32>
    %31 = tpu.matmul %28, %30, %cst_25 {dimension_numbers = #tpu.dot_dimension_numbers<[1], [0], [0], [1], [0, 0, 1, 1], [], []>} : vector<256x32xbf16>, vector<32x32xbf16>, vector<256x32xf32> -> vector<256x32xf32>
    %32 = arith.addf %26, %31 : vector<256x32xf32>
    %33 = vector.extract_strided_slice %1 {offsets = [1, 2, 0], sizes = [16, 16, 32], strides = [1, 1, 1]} : vector<18x18x32xbf16> to vector<16x16x32xbf16>
    %34 = vector.shape_cast %33 : vector<16x16x32xbf16> to vector<256x32xbf16>
    %c1_26 = arith.constant 1 : index
    %c2_27 = arith.constant 2 : index
    %c0_28 = arith.constant 0 : index
    %c0_29 = arith.constant 0 : index
    %35 = vector.load %arg3[%c1_26, %c2_27, %c0_28, %c0_29] : memref<3x3x32x32xbf16, #tpu.memory_space<vmem>>, vector<1x1x32x32xbf16>
    %36 = vector.shape_cast %35 : vector<1x1x32x32xbf16> to vector<32x32xbf16>
    %cst_30 = arith.constant dense<0.000000e+00> : vector<256x32xf32>
    %37 = tpu.matmul %34, %36, %cst_30 {dimension_numbers = #tpu.dot_dimension_numbers<[1], [0], [0], [1], [0, 0, 1, 1], [], []>} : vector<256x32xbf16>, vector<32x32xbf16>, vector<256x32xf32> -> vector<256x32xf32>
    %38 = arith.addf %32, %37 : vector<256x32xf32>
    %39 = vector.extract_strided_slice %1 {offsets = [2, 0, 0], sizes = [16, 16, 32], strides = [1, 1, 1]} : vector<18x18x32xbf16> to vector<16x16x32xbf16>
    %40 = vector.shape_cast %39 : vector<16x16x32xbf16> to vector<256x32xbf16>
    %c2_31 = arith.constant 2 : index
    %c0_32 = arith.constant 0 : index
    %c0_33 = arith.constant 0 : index
    %c0_34 = arith.constant 0 : index
    %41 = vector.load %arg3[%c2_31, %c0_32, %c0_33, %c0_34] : memref<3x3x32x32xbf16, #tpu.memory_space<vmem>>, vector<1x1x32x32xbf16>
    %42 = vector.shape_cast %41 : vector<1x1x32x32xbf16> to vector<32x32xbf16>
    %cst_35 = arith.constant dense<0.000000e+00> : vector<256x32xf32>
    %43 = tpu.matmul %40, %42, %cst_35 {dimension_numbers = #tpu.dot_dimension_numbers<[1], [0], [0], [1], [0, 0, 1, 1], [], []>} : vector<256x32xbf16>, vector<32x32xbf16>, vector<256x32xf32> -> vector<256x32xf32>
    %44 = arith.addf %38, %43 : vector<256x32xf32>
    %45 = vector.extract_strided_slice %1 {offsets = [2, 1, 0], sizes = [16, 16, 32], strides = [1, 1, 1]} : vector<18x18x32xbf16> to vector<16x16x32xbf16>
    %46 = vector.shape_cast %45 : vector<16x16x32xbf16> to vector<256x32xbf16>
    %c2_36 = arith.constant 2 : index
    %c1_37 = arith.constant 1 : index
    %c0_38 = arith.constant 0 : index
    %c0_39 = arith.constant 0 : index
    %47 = vector.load %arg3[%c2_36, %c1_37, %c0_38, %c0_39] : memref<3x3x32x32xbf16, #tpu.memory_space<vmem>>, vector<1x1x32x32xbf16>
    %48 = vector.shape_cast %47 : vector<1x1x32x32xbf16> to vector<32x32xbf16>
    %cst_40 = arith.constant dense<0.000000e+00> : vector<256x32xf32>
    %49 = tpu.matmul %46, %48, %cst_40 {dimension_numbers = #tpu.dot_dimension_numbers<[1], [0], [0], [1], [0, 0, 1, 1], [], []>} : vector<256x32xbf16>, vector<32x32xbf16>, vector<256x32xf32> -> vector<256x32xf32>
    %50 = arith.addf %44, %49 : vector<256x32xf32>
    %51 = vector.extract_strided_slice %1 {offsets = [2, 2, 0], sizes = [16, 16, 32], strides = [1, 1, 1]} : vector<18x18x32xbf16> to vector<16x16x32xbf16>
    %52 = vector.shape_cast %51 : vector<16x16x32xbf16> to vector<256x32xbf16>
    %c2_41 = arith.constant 2 : index
    %c2_42 = arith.constant 2 : index
    %c0_43 = arith.constant 0 : index
    %c0_44 = arith.constant 0 : index
    %53 = vector.load %arg3[%c2_41, %c2_42, %c0_43, %c0_44] : memref<3x3x32x32xbf16, #tpu.memory_space<vmem>>, vector<1x1x32x32xbf16>
    %54 = vector.shape_cast %53 : vector<1x1x32x32xbf16> to vector<32x32xbf16>
    %cst_45 = arith.constant dense<0.000000e+00> : vector<256x32xf32>
    %55 = tpu.matmul %52, %54, %cst_45 {dimension_numbers = #tpu.dot_dimension_numbers<[1], [0], [0], [1], [0, 0, 1, 1], [], []>} : vector<256x32xbf16>, vector<32x32xbf16>, vector<256x32xf32> -> vector<256x32xf32>
    %56 = arith.addf %50, %55 : vector<256x32xf32>
    %57 = arith.truncf %56 : vector<256x32xf32> to vector<256x32xbf16>
    %c0_46 = arith.constant 0 : index
    %c0_47 = arith.constant 0 : index
    %c0_48 = arith.constant 0 : index
    %58 = vector.load %arg4[%c0_46, %c0_47, %c0_48] : memref<1x256x32xbf16, #tpu.memory_space<vmem>>, vector<1x256x32xbf16>
    %59 = vector.shape_cast %58 : vector<1x256x32xbf16> to vector<256x32xbf16>
    %60 = vector.shape_cast %57 : vector<256x32xbf16> to vector<1x256x32xbf16>
    tpu.vector_store %arg4[%c0_46, %c0_47, %c0_48], %60 {strides = array<i32>} : memref<1x256x32xbf16, #tpu.memory_space<vmem>>, vector<1x256x32xbf16>,
    %cst_49 = arith.constant dense<0.000000e+00> : vector<32xf32>
    %61 = vector.multi_reduction <add>, %56, %cst_49 [0] : vector<256x32xf32> to vector<32xf32>
    %62 = vector.shape_cast %61 : vector<32xf32> to vector<1x32xf32>
    %c0_50 = arith.constant 0 : index
    %c0_51 = arith.constant 0 : index
    %c0_52 = arith.constant 0 : index
    %63 = vector.load %arg5[%c0_50, %c0_51, %c0_52] : memref<1x1x32xf32, #tpu.memory_space<vmem>>, vector<1x1x32xf32>
    %64 = vector.shape_cast %63 : vector<1x1x32xf32> to vector<1x32xf32>
    %65 = vector.shape_cast %62 : vector<1x32xf32> to vector<1x1x32xf32>
    tpu.vector_store %arg5[%c0_50, %c0_51, %c0_52], %65 {strides = array<i32>} : memref<1x1x32xf32, #tpu.memory_space<vmem>>, vector<1x1x32xf32>,
    %66 = arith.mulf %56, %56 : vector<256x32xf32>
    %cst_53 = arith.constant dense<0.000000e+00> : vector<32xf32>
    %67 = vector.multi_reduction <add>, %66, %cst_53 [0] : vector<256x32xf32> to vector<32xf32>
    %68 = vector.shape_cast %67 : vector<32xf32> to vector<1x32xf32>
    %c0_54 = arith.constant 0 : index
    %c0_55 = arith.constant 0 : index
    %c0_56 = arith.constant 0 : index
    %69 = vector.load %arg6[%c0_54, %c0_55, %c0_56] : memref<1x1x32xf32, #tpu.memory_space<vmem>>, vector<1x1x32xf32>
    %70 = vector.shape_cast %69 : vector<1x1x32xf32> to vector<1x32xf32>
    %71 = vector.shape_cast %68 : vector<1x32xf32> to vector<1x1x32xf32>
    tpu.vector_store %arg6[%c0_54, %c0_55, %c0_56], %71 {strides = array<i32>} : memref<1x1x32xf32, #tpu.memory_space<vmem>>, vector<1x1x32xf32>,
    return
  }
  func.func @transform_0(%arg0: i32, %arg1: i32) -> (i32, i32, i32, i32) {
    %c0_i32 = arith.constant 0 : i32
    %c0_i32_0 = arith.constant 0 : i32
    %c0_i32_1 = arith.constant 0 : i32
    %c0_i32_2 = arith.constant 0 : i32
    return %arg0, %c0_i32, %c0_i32_0, %c0_i32_1 : i32, i32, i32, i32
  }
  func.func @transform_1(%arg0: i32, %arg1: i32) -> (i32, i32, i32, i32) {
    %c0_i32 = arith.constant 0 : i32
    %c0_i32_0 = arith.constant 0 : i32
    %c0_i32_1 = arith.constant 0 : i32
    %c0_i32_2 = arith.constant 0 : i32
    return %c0_i32, %c0_i32_0, %c0_i32_1, %arg1 : i32, i32, i32, i32
  }
  func.func @transform_2(%arg0: i32, %arg1: i32) -> (i32, i32, i32) {
    %c0_i32 = arith.constant 0 : i32
    %c0_i32_0 = arith.constant 0 : i32
    return %arg0, %c0_i32, %arg1 : i32, i32, i32
  }
  func.func @transform_3(%arg0: i32, %arg1: i32) -> (i32, i32, i32) {
    %c0_i32 = arith.constant 0 : i32
    %c0_i32_0 = arith.constant 0 : i32
    return %arg0, %c0_i32, %arg1 : i32, i32, i32
  }
  func.func @transform_4(%arg0: i32, %arg1: i32) -> (i32, i32, i32) {
    %c0_i32 = arith.constant 0 : i32
    %c0_i32_0 = arith.constant 0 : i32
    return %arg0, %c0_i32, %arg1 : i32, i32, i32
  }
}

module attributes {stable_mosaic.version = 11 : i64} {
  func.func @_scale_shift_relu_kernel(%arg0: i32, %arg1: memref<256x32xbf16, #tpu.memory_space<vmem>>, %arg2: memref<1x32xf32, #tpu.memory_space<vmem>>, %arg3: memref<1x32xf32, #tpu.memory_space<vmem>>, %arg4: memref<256x32xf32, #tpu.memory_space<vmem>>) attributes {dimension_semantics = [#tpu.dimension_semantics<parallel>], iteration_bounds = array<i64: 2>, scalar_prefetch = 0 : i64, scratch_operands = 0 : i64, tpu.core_type = #tpu.core_type<tc>, window_params = [{transform_indices = @transform_0, window_bounds = array<i64: 256, 32>}, {pipeline_mode = #tpu.pipeline_mode<synchronous>, transform_indices = @transform_1, window_bounds = array<i64: 1, 32>}, {pipeline_mode = #tpu.pipeline_mode<synchronous>, transform_indices = @transform_2, window_bounds = array<i64: 1, 32>}, {transform_indices = @transform_3, window_bounds = array<i64: 256, 32>}]} {
    %c0 = arith.constant 0 : index
    %c0_0 = arith.constant 0 : index
    %0 = vector.load %arg1[%c0, %c0_0] : memref<256x32xbf16, #tpu.memory_space<vmem>>, vector<256x32xbf16>
    %1 = arith.extf %0 : vector<256x32xbf16> to vector<256x32xf32>
    %c0_1 = arith.constant 0 : index
    %c0_2 = arith.constant 0 : index
    %2 = vector.load %arg2[%c0_1, %c0_2] : memref<1x32xf32, #tpu.memory_space<vmem>>, vector<1x32xf32>
    %3 = vector.broadcast %2 : vector<1x32xf32> to vector<256x32xf32>
    %4 = arith.mulf %1, %3 : vector<256x32xf32>
    %c0_3 = arith.constant 0 : index
    %c0_4 = arith.constant 0 : index
    %5 = vector.load %arg3[%c0_3, %c0_4] : memref<1x32xf32, #tpu.memory_space<vmem>>, vector<1x32xf32>
    %6 = vector.broadcast %5 : vector<1x32xf32> to vector<256x32xf32>
    %7 = arith.addf %4, %6 : vector<256x32xf32>
    %cst = arith.constant 0.000000e+00 : f32
    %8 = vector.broadcast %cst : f32 to vector<256x32xf32>
    %9 = arith.maximumf %7, %8 : vector<256x32xf32>
    %c0_5 = arith.constant 0 : index
    %c0_6 = arith.constant 0 : index
    %10 = vector.load %arg4[%c0_5, %c0_6] : memref<256x32xf32, #tpu.memory_space<vmem>>, vector<256x32xf32>
    tpu.vector_store %arg4[%c0_5, %c0_6], %9 {strides = array<i32>} : memref<256x32xf32, #tpu.memory_space<vmem>>, vector<256x32xf32>,
    return
  }
  func.func @transform_0(%arg0: i32) -> (i32, i32) {
    %c0_i32 = arith.constant 0 : i32
    %c0_i32_0 = arith.constant 0 : i32
    return %arg0, %c0_i32 : i32, i32
  }
  func.func @transform_1(%arg0: i32) -> (i32, i32) {
    %c0_i32 = arith.constant 0 : i32
    %c0_i32_0 = arith.constant 0 : i32
    %c0_i32_1 = arith.constant 0 : i32
    return %c0_i32, %c0_i32_0 : i32, i32
  }
  func.func @transform_2(%arg0: i32) -> (i32, i32) {
    %c0_i32 = arith.constant 0 : i32
    %c0_i32_0 = arith.constant 0 : i32
    %c0_i32_1 = arith.constant 0 : i32
    return %c0_i32, %c0_i32_0 : i32, i32
  }
  func.func @transform_3(%arg0: i32) -> (i32, i32) {
    %c0_i32 = arith.constant 0 : i32
    %c0_i32_0 = arith.constant 0 : i32
    return %arg0, %c0_i32 : i32, i32
  }
}

</mosaic_0001>

<llo_original>
// kernel: conv_block_apply.5
$region0: #{conv_block_apply.5}
  #allocation0 [shape = 'u32[]', space=smem, size = 0x4, offset = 0x4, fixed_abs, tag = 'smem constant byte address 0x4 - core index']
  #allocation1 [shape = 'u32[72,128]{1,0:T(1,128)}', space=vmem, size = 0x9000, scoped, tag = 'internal scratch']
  %s0 = inlined_call_operand.vmem [shape: bf16[512,32], index: 0, kind: input, shape index: {}]
  %s1 = inlined_call_operand.vmem [shape: f32[1,32], index: 1, kind: input, shape index: {}]
  %s2 = inlined_call_operand.vmem [shape: f32[1,32], index: 2, kind: input, shape index: {}]
  %s3 = inlined_call_operand.vmem [shape: bf16[512,32], index: 3, kind: output, shape index: {}]
  %s4 = sld [smem:[#allocation0]]
  $region45: #{conv_block_apply.5} parent=0
    _
  %s6 = ssub.s32 1, %s4
  %s7 = scalar_select 0, %s6, %s4
  loop: start=0, step=1, limit=4
  $region2: #{conv_block_apply.5} parent=0 // loop_pre_header
    _
  $region3: #{conv_block_apply.5} parent=0 // loop_header
    %s9 = sphi 0, %s13
    %p10 = scmp.ge.s32.totalorder %s9, 4
    %s19 = sphi 0, %s21
    %s22 = sphi 0, %s19
    %s23 = sphi 0, %s22
    %s39 = sphi 0, %s23
    %s43 = sphi 0, %s43
    %s45 = sphi 0, %s43
    %s46 = sphi 0, %s45
    %s60 = sphi 0, %s46
    %s64 = sphi 0, %s64
    %s66 = sphi 0, %s64
    %s67 = sphi 0, %s66
    %s81 = sphi 0, %s67
    %s87 = sphi 0, %s89
    %s90 = sphi 0, %s87
    %s91 = sphi 0, %s90
    %s107 = sphi 0, %s91
  $region4: #{conv_block_apply.5} parent=0 // loop_header_branch
    %12 = sbr.rel (%p10) target = $region8
  $region5: #{conv_block_apply.5} parent=0 // loop_body
    %s14 = ssub.s32 %s9, 1
    %s15 = ssub.s32 %s9, 2
    %s16 = sadd.s32 %s9, 1
    %s17 = ssub.s32 %s9, %s16
    %p18 = scmp.eq.s32.totalorder %s17, 0
    %s20 = sadd.s32 %s19, 1
    %s21 = scalar_select %p18, %s19, %s20
    %p24 = pneg %p18
    %p25 = scmp.eq.s32.totalorder %s9, 1
    %p26 = por %p24, %p25
    %p27 = scmp.ne.s32.totalorder %s19, %s22
    %p28 = scmp.eq.s32.totalorder %s9, 0
    %p29 = por %p27, %p28
    %p30 = scmp.ne.s32.totalorder %s19, %s22
    %p31 = scmp.eq.s32.totalorder %s14, 1
    %p32 = por %p30, %p31
    %p33 = scmp.ne.s32.totalorder %s22, %s23
    %p34 = scmp.eq.s32.totalorder %s14, 0
    %p35 = por %p33, %p34
    %p36 = scmp.ne.s32.totalorder %s22, %s23
    %p37 = scmp.eq.s32.totalorder %s15, 1
    %p38 = por %p36, %p37
    %p40 = scmp.ne.s32.totalorder %s23, %s39
    %p41 = scmp.eq.s32.totalorder %s15, 0
    %p42 = por %p40, %p41
    %s44 = sadd.s32 %s43, 1
    %p47 = scmp.eq.s32.totalorder %s9, 1
    %p48 = scmp.ne.s32.totalorder %s43, %s45
    %p49 = scmp.eq.s32.totalorder %s9, 0
    %p50 = por %p48, %p49
    %p51 = scmp.ne.s32.totalorder %s43, %s45
    %p52 = scmp.eq.s32.totalorder %s14, 1
    %p53 = por %p51, %p52
    %p54 = scmp.ne.s32.totalorder %s45, %s46
    %p55 = scmp.eq.s32.totalorder %s14, 0
    %p56 = por %p54, %p55
    %p57 = scmp.ne.s32.totalorder %s45, %s46
    %p58 = scmp.eq.s32.totalorder %s15, 1
    %p59 = por %p57, %p58
    %p61 = scmp.ne.s32.totalorder %s46, %s60
    %p62 = scmp.eq.s32.totalorder %s15, 0
    %p63 = por %p61, %p62
    %s65 = sadd.s32 %s64, 1
    %p68 = scmp.eq.s32.totalorder %s9, 1
    %p69 = scmp.ne.s32.totalorder %s64, %s66
    %p70 = scmp.eq.s32.totalorder %s9, 0
    %p71 = por %p69, %p70
    %p72 = scmp.ne.s32.totalorder %s64, %s66
    %p73 = scmp.eq.s32.totalorder %s14, 1
    %p74 = por %p72, %p73
    %p75 = scmp.ne.s32.totalorder %s66, %s67
    %p76 = scmp.eq.s32.totalorder %s14, 0
    %p77 = por %p75, %p76
    %p78 = scmp.ne.s32.totalorder %s66, %s67
    %p79 = scmp.eq.s32.totalorder %s15, 1
    %p80 = por %p78, %p79
    %p82 = scmp.ne.s32.totalorder %s67, %s81
    %p83 = scmp.eq.s32.totalorder %s15, 0
    %p84 = por %p82, %p83
    %s85 = ssub.s32 %s9, %s16
    %p86 = scmp.eq.s32.totalorder %s85, 0
    %s88 = sadd.s32 %s87, 1
    %s89 = scalar_select %p86, %s87, %s88
    %p92 = pneg %p86
    %p93 = scmp.eq.s32.totalorder %s9, 1
    %p94 = por %p92, %p93
    %p95 = scmp.ne.s32.totalorder %s87, %s90
    %p96 = scmp.eq.s32.totalorder %s9, 0
    %p97 = por %p95, %p96
    %p98 = scmp.ne.s32.totalorder %s87, %s90
    %p99 = scmp.eq.s32.totalorder %s14, 1
    %p100 = por %p98, %p99
    %p101 = scmp.ne.s32.totalorder %s90, %s91
    %p102 = scmp.eq.s32.totalorder %s14, 0
    %p103 = por %p101, %p102
    %p104 = scmp.ne.s32.totalorder %s90, %s91
    %p105 = scmp.eq.s32.totalorder %s15, 1
    %p106 = por %p104, %p105
    %p108 = scmp.ne.s32.totalorder %s91, %s107
    %p109 = scmp.eq.s32.totalorder %s15, 0
    %p110 = por %p108, %p109
    %p111 = scmp.le.s32.totalorder 1, %s9
    %p112 = scmp.lt.s32.totalorder %s9, 3
    %p113 = pnand %p111, %p112
    %p114 = pneg %p113
    // Predicated region
    $region9: #{conv_block_apply.5} parent=5 // pred_check
      _
    $region10: #{conv_block_apply.5} parent=5 // pred_check_branch
      %116 = sbr.rel (%p113) target = $region12
    $region11: #{conv_block_apply.5} parent=5 // pred_region
      %s117 = ssub.s32 %s9, 1
      // Predicated region
      $region13: #{conv_block_apply.5} parent=11 // pred_check
        %p118 = pneg %p56
      $region14: #{conv_block_apply.5} parent=11 // pred_check_branch
        %120 = sbr.rel (%p118) target = $region16
      $region15: #{conv_block_apply.5} parent=11 // pred_region
        _
      $region16: #{conv_block_apply.5} parent=11 // pred_fallthru
        _
      // Predicated region
      $region17: #{conv_block_apply.5} parent=11 // pred_check
        %p121 = pneg %p77
      $region18: #{conv_block_apply.5} parent=11 // pred_check_branch
        %123 = sbr.rel (%p121) target = $region20
      $region19: #{conv_block_apply.5} parent=11 // pred_region
        _
      $region20: #{conv_block_apply.5} parent=11 // pred_fallthru
        _
    $region12: #{conv_block_apply.5} parent=5 // pred_fallthru
      _
    %p124 = scmp.lt.s32.totalorder %s9, 2
    // Predicated region
    $region21: #{conv_block_apply.5} parent=5 // pred_check
      %p125 = pneg %p124
    $region22: #{conv_block_apply.5} parent=5 // pred_check_branch
      %127 = sbr.rel (%p125) target = $region24
    $region23: #{conv_block_apply.5} parent=5 // pred_region
      // Predicated region
      $region25: #{conv_block_apply.5} parent=23 // pred_check
        %p128 = pneg %p29
      $region26: #{conv_block_apply.5} parent=23 // pred_check_branch
        %130 = sbr.rel (%p128) target = $region28
      $region27: #{conv_block_apply.5} parent=23 // pred_region
        %s131 = smul.u32 32, %s9
        %p132 = scmp.lt.s32.totalorder %s131, 63
        %s133 = scalar_select %p132, %s131, 63
        %s134 = smul.addr %s133, 4
        %s135 = scalar_lea.vmem %s0, %s134
        %s136 = smul.u32 32, %s9
      $region28: #{conv_block_apply.5} parent=23 // pred_fallthru
        _
    $region24: #{conv_block_apply.5} parent=5 // pred_fallthru
      _
    %p137 = scmp.le.s32.totalorder 1, %s9
    %p138 = scmp.lt.s32.totalorder %s9, 3
    %p139 = pnand %p137, %p138
    %p140 = pneg %p139
    // Predicated region
    $region29: #{conv_block_apply.5} parent=5 // pred_check
      _
    $region30: #{conv_block_apply.5} parent=5 // pred_check_branch
      %142 = sbr.rel (%p139) target = $region32
    $region31: #{conv_block_apply.5} parent=5 // pred_region
      %s143 = ssub.s32 %s9, 1
      %s144 = smul.u32 32, %s14
      %p145 = scmp.lt.s32.totalorder %s144, 63
      %s146 = scalar_select %p145, %s144, 63
      %s147 = smul.addr %s146, 4
      %s148 = scalar_lea.vmem %s0, %s147
      %p149 = pneg %p35
      %p150 = pneg %p32
      %p151 = pneg %p56
      %p152 = pneg %p53
      %p153 = pneg %p77
      %p154 = pneg %p74
      %p155 = pneg %p103
      %p156 = pneg %p100
      %s157 = smul.u32 32, %s14
      %p158 = scmp.lt.s32.totalorder %s157, 63
      %s159 = scalar_select %p158, %s157, 63
      %s160 = smul.addr %s159, 4
      %s161 = scalar_lea.vmem %s3, %s160
      %s162 = smul.u32 32, %s14
      %p163 = scmp.lt.s32.totalorder %s162, 63
      %s164 = scalar_select %p163, %s162, 63
      %s165 = smul.addr %s164, 4
      %s166 = scalar_lea.vmem %s0, %s165
      %s167 = smul.u32 32, %s14
      %s168 = smul.u32 32, %s14
      %p169 = scmp.lt.s32.totalorder %s168, 63
      %s170 = scalar_select %p169, %s168, 63
      %s171 = smul.addr %s170, 4
      %s172 = scalar_lea.vmem %s3, %s171
      %s173 = smul.u32 32, %s14
      %v174 = vld [vmem:[%s166] sm:$0xf]
      %v175 = vld [vmem:[%s166 + $0x4] sm:$0xf]
      %v176 = vld [vmem:[%s166 + $0x8] sm:$0xf]
      %v177 = vld [vmem:[%s166 + $0xc] sm:$0xf]
      %v178 = vld [vmem:[%s166 + $0x10] sm:$0xf]
      %v179 = vld [vmem:[%s166 + $0x14] sm:$0xf]
      %v180 = vld [vmem:[%s166 + $0x18] sm:$0xf]
      %v181 = vld [vmem:[%s166 + $0x1c] sm:$0xf]
      %v182 = vld [vmem:[%s166 + $0x20] sm:$0xf]
      %v183 = vld [vmem:[%s166 + $0x24] sm:$0xf]
      %v184 = vld [vmem:[%s166 + $0x28] sm:$0xf]
      %v185 = vld [vmem:[%s166 + $0x2c] sm:$0xf]
      %v186 = vld [vmem:[%s166 + $0x30] sm:$0xf]
      %v187 = vld [vmem:[%s166 + $0x34] sm:$0xf]
      %v188 = vld [vmem:[%s166 + $0x38] sm:$0xf]
      %v189 = vld [vmem:[%s166 + $0x3c] sm:$0xf]
      %v190 = vld [vmem:[%s166 + $0x40] sm:$0xf]
      %v191 = vld [vmem:[%s166 + $0x44] sm:$0xf]
      %v192 = vld [vmem:[%s166 + $0x48] sm:$0xf]
      %v193 = vld [vmem:[%s166 + $0x4c] sm:$0xf]
      %v194 = vld [vmem:[%s166 + $0x50] sm:$0xf]
      %v195 = vld [vmem:[%s166 + $0x54] sm:$0xf]
      %v196 = vld [vmem:[%s166 + $0x58] sm:$0xf]
      %v197 = vld [vmem:[%s166 + $0x5c] sm:$0xf]
      %v198 = vld [vmem:[%s166 + $0x60] sm:$0xf]
      %v199 = vld [vmem:[%s166 + $0x64] sm:$0xf]
      %v200 = vld [vmem:[%s166 + $0x68] sm:$0xf]
      %v201 = vld [vmem:[%s166 + $0x6c] sm:$0xf]
      %v202 = vld [vmem:[%s166 + $0x70] sm:$0xf]
      %v203 = vld [vmem:[%s166 + $0x74] sm:$0xf]
      %v204 = vld [vmem:[%s166 + $0x78] sm:$0xf]
      %v205 = vld [vmem:[%s166 + $0x7c] sm:$0xf]
      %v206 = vunpack.c.l.bf16 %v174
      %v207 = vunpack.c.l.bf16 %v175
      %v208 = vunpack.c.l.bf16 %v176
      %v209 = vunpack.c.l.bf16 %v177
      %v210 = vunpack.c.l.bf16 %v178
      %v211 = vunpack.c.l.bf16 %v179
      %v212 = vunpack.c.l.bf16 %v180
      %v213 = vunpack.c.l.bf16 %v181
      %v214 = vunpack.c.l.bf16 %v182
      %v215 = vunpack.c.l.bf16 %v183
      %v216 = vunpack.c.l.bf16 %v184
      %v217 = vunpack.c.l.bf16 %v185
      %v218 = vunpack.c.l.bf16 %v186
      %v219 = vunpack.c.l.bf16 %v187
      %v220 = vunpack.c.l.bf16 %v188
      %v221 = vunpack.c.l.bf16 %v189
      %v222 = vunpack.c.l.bf16 %v190
      %v223 = vunpack.c.l.bf16 %v191
      %v224 = vunpack.c.l.bf16 %v192
      %v225 = vunpack.c.l.bf16 %v193
      %v226 = vunpack.c.l.bf16 %v194
      %v227 = vunpack.c.l.bf16 %v195
      %v228 = vunpack.c.l.bf16 %v196
      %v229 = vunpack.c.l.bf16 %v197
      %v230 = vunpack.c.l.bf16 %v198
      %v231 = vunpack.c.l.bf16 %v199
      %v232 = vunpack.c.l.bf16 %v200
      %v233 = vunpack.c.l.bf16 %v201
      %v234 = vunpack.c.l.bf16 %v202
      %v235 = vunpack.c.l.bf16 %v203
      %v236 = vunpack.c.l.bf16 %v204
      %v237 = vunpack.c.l.bf16 %v205
      %v238 = vld [vmem:[%s1] sm:$0x1]
      %v240 = vperm.slane %v238, 0
      %v242 = vmul.f32 %v206, %v240
      %v243 = vmul.f32 %v207, %v240
      %v244 = vmul.f32 %v208, %v240
      %v245 = vmul.f32 %v209, %v240
      %v246 = vmul.f32 %v210, %v240
      %v247 = vmul.f32 %v211, %v240
      %v248 = vmul.f32 %v212, %v240
      %v249 = vmul.f32 %v213, %v240
      %v250 = vmul.f32 %v214, %v240
      %v251 = vmul.f32 %v215, %v240
      %v252 = vmul.f32 %v216, %v240
      %v253 = vmul.f32 %v217, %v240
      %v254 = vmul.f32 %v218, %v240
      %v255 = vmul.f32 %v219, %v240
      %v256 = vmul.f32 %v220, %v240
      %v257 = vmul.f32 %v221, %v240
      %v258 = vmul.f32 %v222, %v240
      %v259 = vmul.f32 %v223, %v240
      %v260 = vmul.f32 %v224, %v240
      %v261 = vmul.f32 %v225, %v240
      %v262 = vmul.f32 %v226, %v240
      %v263 = vmul.f32 %v227, %v240
      %v264 = vmul.f32 %v228, %v240
      %v265 = vmul.f32 %v229, %v240
      %v266 = vmul.f32 %v230, %v240
      %v267 = vmul.f32 %v231, %v240
      %v268 = vmul.f32 %v232, %v240
      %v269 = vmul.f32 %v233, %v240
      %v270 = vmul.f32 %v234, %v240
      %v271 = vmul.f32 %v235, %v240
      %v272 = vmul.f32 %v236, %v240
      %v273 = vmul.f32 %v237, %v240
      %v274 = vld [vmem:[%s2] sm:$0x1]
      %v276 = vperm.slane %v274, 0
      %v278 = vadd.f32 %v242, %v276
      %v279 = vadd.f32 %v243, %v276
      %v280 = vadd.f32 %v244, %v276
      %v281 = vadd.f32 %v245, %v276
      %v282 = vadd.f32 %v246, %v276
      %v283 = vadd.f32 %v247, %v276
      %v284 = vadd.f32 %v248, %v276
      %v285 = vadd.f32 %v249, %v276
      %v286 = vadd.f32 %v250, %v276
      %v287 = vadd.f32 %v251, %v276
      %v288 = vadd.f32 %v252, %v276
      %v289 = vadd.f32 %v253, %v276
      %v290 = vadd.f32 %v254, %v276
      %v291 = vadd.f32 %v255, %v276
      %v292 = vadd.f32 %v256, %v276
      %v293 = vadd.f32 %v257, %v276
      %v294 = vadd.f32 %v258, %v276
      %v295 = vadd.f32 %v259, %v276
      %v296 = vadd.f32 %v260, %v276
      %v297 = vadd.f32 %v261, %v276
      %v298 = vadd.f32 %v262, %v276
      %v299 = vadd.f32 %v263, %v276
      %v300 = vadd.f32 %v264, %v276
      %v301 = vadd.f32 %v265, %v276
      %v302 = vadd.f32 %v266, %v276
      %v303 = vadd.f32 %v267, %v276
      %v304 = vadd.f32 %v268, %v276
      %v305 = vadd.f32 %v269, %v276
      %v306 = vadd.f32 %v270, %v276
      %v307 = vadd.f32 %v271, %v276
      %v308 = vadd.f32 %v272, %v276
      %v309 = vadd.f32 %v273, %v276
      %v310 = vmax.f32 %v278, 0.0
      %v311 = vmax.f32 %v279, 0.0
      %v312 = vmax.f32 %v280, 0.0
      %v313 = vmax.f32 %v281, 0.0
      %v314 = vmax.f32 %v282, 0.0
      %v315 = vmax.f32 %v283, 0.0
      %v316 = vmax.f32 %v284, 0.0
      %v317 = vmax.f32 %v285, 0.0
      %v318 = vmax.f32 %v286, 0.0
      %v319 = vmax.f32 %v287, 0.0
      %v320 = vmax.f32 %v288, 0.0
      %v321 = vmax.f32 %v289, 0.0
      %v322 = vmax.f32 %v290, 0.0
      %v323 = vmax.f32 %v291, 0.0
      %v324 = vmax.f32 %v292, 0.0
      %v325 = vmax.f32 %v293, 0.0
      %v326 = vmax.f32 %v294, 0.0
      %v327 = vmax.f32 %v295, 0.0
      %v328 = vmax.f32 %v296, 0.0
      %v329 = vmax.f32 %v297, 0.0
      %v330 = vmax.f32 %v298, 0.0
      %v331 = vmax.f32 %v299, 0.0
      %v332 = vmax.f32 %v300, 0.0
      %v333 = vmax.f32 %v301, 0.0
      %v334 = vmax.f32 %v302, 0.0
      %v335 = vmax.f32 %v303, 0.0
      %v336 = vmax.f32 %v304, 0.0
      %v337 = vmax.f32 %v305, 0.0
      %v338 = vmax.f32 %v306, 0.0
      %v339 = vmax.f32 %v307, 0.0
      %v340 = vmax.f32 %v308, 0.0
      %v341 = vmax.f32 %v309, 0.0
      %v342 = vpack.c.bf16 %v310, %v310
      %v343 = vpack.c.bf16 %v311, %v311
      %v344 = vpack.c.bf16 %v312, %v312
      %v345 = vpack.c.bf16 %v313, %v313
      %v346 = vpack.c.bf16 %v314, %v314
      %v347 = vpack.c.bf16 %v315, %v315
      %v348 = vpack.c.bf16 %v316, %v316
      %v349 = vpack.c.bf16 %v317, %v317
      %v350 = vpack.c.bf16 %v318, %v318
      %v351 = vpack.c.bf16 %v319, %v319
      %v352 = vpack.c.bf16 %v320, %v320
      %v353 = vpack.c.bf16 %v321, %v321
      %v354 = vpack.c.bf16 %v322, %v322
      %v355 = vpack.c.bf16 %v323, %v323
      %v356 = vpack.c.bf16 %v324, %v324
      %v357 = vpack.c.bf16 %v325, %v325
      %v358 = vpack.c.bf16 %v326, %v326
      %v359 = vpack.c.bf16 %v327, %v327
      %v360 = vpack.c.bf16 %v328, %v328
      %v361 = vpack.c.bf16 %v329, %v329
      %v362 = vpack.c.bf16 %v330, %v330
      %v363 = vpack.c.bf16 %v331, %v331
      %v364 = vpack.c.bf16 %v332, %v332
      %v365 = vpack.c.bf16 %v333, %v333
      %v366 = vpack.c.bf16 %v334, %v334
      %v367 = vpack.c.bf16 %v335, %v335
      %v368 = vpack.c.bf16 %v336, %v336
      %v369 = vpack.c.bf16 %v337, %v337
      %v370 = vpack.c.bf16 %v338, %v338
      %v371 = vpack.c.bf16 %v339, %v339
      %v372 = vpack.c.bf16 %v340, %v340
      %v373 = vpack.c.bf16 %v341, %v341
      %vm374 = vcmask 257024
      %375 = vst.msk [vmem:[%s172] sm:$0xf] %vm374, %v342
      %376 = vst.msk [vmem:[%s172 + $0x4] sm:$0xf] %vm374, %v343
      %377 = vst.msk [vmem:[%s172 + $0x8] sm:$0xf] %vm374, %v344
      %378 = vst.msk [vmem:[%s172 + $0xc] sm:$0xf] %vm374, %v345
      %379 = vst.msk [vmem:[%s172 + $0x10] sm:$0xf] %vm374, %v346
      %380 = vst.msk [vmem:[%s172 + $0x14] sm:$0xf] %vm374, %v347
      %381 = vst.msk [vmem:[%s172 + $0x18] sm:$0xf] %vm374, %v348
      %382 = vst.msk [vmem:[%s172 + $0x1c] sm:$0xf] %vm374, %v349
      %383 = vst.msk [vmem:[%s172 + $0x20] sm:$0xf] %vm374, %v350
      %384 = vst.msk [vmem:[%s172 + $0x24] sm:$0xf] %vm374, %v351
      %385 = vst.msk [vmem:[%s172 + $0x28] sm:$0xf] %vm374, %v352
      %386 = vst.msk [vmem:[%s172 + $0x2c] sm:$0xf] %vm374, %v353
      %387 = vst.msk [vmem:[%s172 + $0x30] sm:$0xf] %vm374, %v354
      %388 = vst.msk [vmem:[%s172 + $0x34] sm:$0xf] %vm374, %v355
      %389 = vst.msk [vmem:[%s172 + $0x38] sm:$0xf] %vm374, %v356
      %390 = vst.msk [vmem:[%s172 + $0x3c] sm:$0xf] %vm374, %v357
      %391 = vst.msk [vmem:[%s172 + $0x40] sm:$0xf] %vm374, %v358
      %392 = vst.msk [vmem:[%s172 + $0x44] sm:$0xf] %vm374, %v359
      %393 = vst.msk [vmem:[%s172 + $0x48] sm:$0xf] %vm374, %v360
      %394 = vst.msk [vmem:[%s172 + $0x4c] sm:$0xf] %vm374, %v361
      %395 = vst.msk [vmem:[%s172 + $0x50] sm:$0xf] %vm374, %v362
      %396 = vst.msk [vmem:[%s172 + $0x54] sm:$0xf] %vm374, %v363
      %397 = vst.msk [vmem:[%s172 + $0x58] sm:$0xf] %vm374, %v364
      %398 = vst.msk [vmem:[%s172 + $0x5c] sm:$0xf] %vm374, %v365
      %399 = vst.msk [vmem:[%s172 + $0x60] sm:$0xf] %vm374, %v366
      %400 = vst.msk [vmem:[%s172 + $0x64] sm:$0xf] %vm374, %v367
      %401 = vst.msk [vmem:[%s172 + $0x68] sm:$0xf] %vm374, %v368
      %402 = vst.msk [vmem:[%s172 + $0x6c] sm:$0xf] %vm374, %v369
      %403 = vst.msk [vmem:[%s172 + $0x70] sm:$0xf] %vm374, %v370
      %404 = vst.msk [vmem:[%s172 + $0x74] sm:$0xf] %vm374, %v371
      %405 = vst.msk [vmem:[%s172 + $0x78] sm:$0xf] %vm374, %v372
      %406 = vst.msk [vmem:[%s172 + $0x7c] sm:$0xf] %vm374, %v373
      %s407 = smul.u32 32, %s14
      %p408 = scmp.lt.s32.totalorder %s407, 63
      %s409 = scalar_select %p408, %s407, 63
      %s410 = smul.addr %s409, 4
      %s411 = scalar_lea.vmem %s3, %s410
      // Predicated region
      $region33: #{conv_block_apply.5} parent=31 // pred_check
        %p412 = pneg %p100
      $region34: #{conv_block_apply.5} parent=31 // pred_check_branch
        %414 = sbr.rel (%p412) target = $region36
      $region35: #{conv_block_apply.5} parent=31 // pred_region
        %s415 = smul.u32 32, %s14
      $region36: #{conv_block_apply.5} parent=31 // pred_fallthru
        _
    $region32: #{conv_block_apply.5} parent=5 // pred_fallthru
      _
    %p416 = scmp.le.s32.totalorder 2, %s9
    // Predicated region
    $region37: #{conv_block_apply.5} parent=5 // pred_check
      %p417 = pneg %p416
    $region38: #{conv_block_apply.5} parent=5 // pred_check_branch
      %419 = sbr.rel (%p417) target = $region40
    $region39: #{conv_block_apply.5} parent=5 // pred_region
      %s420 = ssub.s32 %s9, 2
      // Predicated region
      $region41: #{conv_block_apply.5} parent=39 // pred_check
        %p421 = pneg %p106
      $region42: #{conv_block_apply.5} parent=39 // pred_check_branch
        %423 = sbr.rel (%p421) target = $region44
      $region43: #{conv_block_apply.5} parent=39 // pred_region
        %s424 = smul.u32 32, %s15
        %p425 = scmp.lt.s32.totalorder %s424, 63
        %s426 = scalar_select %p425, %s424, 63
        %s427 = smul.addr %s426, 4
        %s428 = scalar_lea.vmem %s3, %s427
      $region44: #{conv_block_apply.5} parent=39 // pred_fallthru
        _
    $region40: #{conv_block_apply.5} parent=5 // pred_fallthru
      _
  $region6: #{conv_block_apply.5} parent=0 // loop_footer
    %s13 = sadd.s32 1, %s9
  $region7: #{conv_block_apply.5} parent=0 // loop_footer_branch
    %8 = sbr.rel target = $region3
  $region8: #{conv_block_apply.5} parent=0 // loop_exit
    _

// kernel: conv_block_apply.4
$region0: #{conv_block_apply.4}
  #allocation0 [shape = 'u32[]', space=smem, size = 0x4, offset = 0x4, fixed_abs, tag = 'smem constant byte address 0x4 - core index']
  #allocation1 [shape = 'u32[72,128]{1,0:T(1,128)}', space=vmem, size = 0x9000, scoped, tag = 'internal scratch']
  %s0 = inlined_call_operand.vmem [shape: bf16[2,18,18,4], index: 0, kind: input, shape index: {}]
  %s1 = inlined_call_operand.vmem [shape: bf16[3,3,4,32], index: 1, kind: input, shape index: {}]
  %s2 = inlined_call_operand.vmem [shape: bf16[2,256,32], index: 2, kind: output, shape index: {0}]
  %s3 = inlined_call_operand.vmem [shape: f32[2,1,32], index: 3, kind: output, shape index: {1}]
  %s4 = inlined_call_operand.vmem [shape: f32[2,1,32], index: 4, kind: output, shape index: {2}]
  %5 = xla_tuple %s2, %s3, %s4
  %s6 = sld [smem:[#allocation0]]
  $region57: #{conv_block_apply.4} parent=0
    _
  %s8 = ssub.s32 1, %s6
  %s9 = scalar_select 0, %s8, %s6
  loop: start=0, step=1, limit=4
  $region2: #{conv_block_apply.4} parent=0 // loop_pre_header
    _
  $region3: #{conv_block_apply.4} parent=0 // loop_header
    %s11 = sphi 0, %s15
    %p12 = scmp.ge.s32.totalorder %s11, 4
    %s18 = sphi 0, %s30
    %s19 = sphi 0, %s26
    %s20 = sphi 0, %s18
    %s21 = sphi 0, %s19
    %s22 = sphi 0, %s20
    %s23 = sphi 0, %s21
    %s33 = sphi 0, %s35
    %s36 = sphi 0, %s33
    %s37 = sphi 0, %s36
    %s53 = sphi 0, %s37
    %s59 = sphi 0, %s61
    %s62 = sphi 0, %s59
    %s63 = sphi 0, %s62
    %s79 = sphi 0, %s63
    %s87 = sphi 0, %s89
    %s90 = sphi 0, %s87
    %s91 = sphi 0, %s90
    %s107 = sphi 0, %s91
    %s115 = sphi 0, %s117
    %s118 = sphi 0, %s115
    %s119 = sphi 0, %s118
    %s135 = sphi 0, %s119
    %s143 = sphi 0, %s145
    %s146 = sphi 0, %s143
    %s147 = sphi 0, %s146
    %s163 = sphi 0, %s147
  $region4: #{conv_block_apply.4} parent=0 // loop_header_branch
    %14 = sbr.rel (%p12) target = $region8
  $region5: #{conv_block_apply.4} parent=0 // loop_body
    %s16 = ssub.s32 %s11, 1
    %s17 = ssub.s32 %s11, 2
    %s24 = sadd.s32 1, %s19
    %p25 = scmp.ge.s32.totalorder %s24, 1
    %s26 = scalar_select %p25, 0, %s24
    %s27 = sadd.s32 1, %s18
    %s28 = scalar_select %p25, %s27, %s18
    %p29 = scmp.ge.s32.totalorder %s28, 2
    %s30 = scalar_select %p29, 0, %s28
    %s31 = ssub.s32 %s18, %s30
    %p32 = scmp.eq.s32.totalorder %s31, 0
    %s34 = sadd.s32 %s33, 1
    %s35 = scalar_select %p32, %s33, %s34
    %p38 = pneg %p32
    %p39 = scmp.eq.s32.totalorder %s11, 1
    %p40 = por %p38, %p39
    %p41 = scmp.ne.s32.totalorder %s33, %s36
    %p42 = scmp.eq.s32.totalorder %s11, 0
    %p43 = por %p41, %p42
    %p44 = scmp.ne.s32.totalorder %s33, %s36
    %p45 = scmp.eq.s32.totalorder %s16, 1
    %p46 = por %p44, %p45
    %p47 = scmp.ne.s32.totalorder %s36, %s37
    %p48 = scmp.eq.s32.totalorder %s16, 0
    %p49 = por %p47, %p48
    %p50 = scmp.ne.s32.totalorder %s36, %s37
    %p51 = scmp.eq.s32.totalorder %s17, 1
    %p52 = por %p50, %p51
    %p54 = scmp.ne.s32.totalorder %s37, %s53
    %p55 = scmp.eq.s32.totalorder %s17, 0
    %p56 = por %p54, %p55
    %s57 = ssub.s32 %s19, %s26
    %p58 = scmp.eq.s32.totalorder %s57, 0
    %s60 = sadd.s32 %s59, 1
    %s61 = scalar_select %p58, %s59, %s60
    %p64 = pneg %p58
    %p65 = scmp.eq.s32.totalorder %s11, 1
    %p66 = por %p64, %p65
    %p67 = scmp.ne.s32.totalorder %s59, %s62
    %p68 = scmp.eq.s32.totalorder %s11, 0
    %p69 = por %p67, %p68
    %p70 = scmp.ne.s32.totalorder %s59, %s62
    %p71 = scmp.eq.s32.totalorder %s16, 1
    %p72 = por %p70, %p71
    %p73 = scmp.ne.s32.totalorder %s62, %s63
    %p74 = scmp.eq.s32.totalorder %s16, 0
    %p75 = por %p73, %p74
    %p76 = scmp.ne.s32.totalorder %s62, %s63
    %p77 = scmp.eq.s32.totalorder %s17, 1
    %p78 = por %p76, %p77
    %p80 = scmp.ne.s32.totalorder %s63, %s79
    %p81 = scmp.eq.s32.totalorder %s17, 0
    %p82 = por %p80, %p81
    %s83 = ssub.s32 %s18, %s30
    %s84 = ssub.s32 %s19, %s26
    %s85 = sor.u32 %s83, %s84
    %p86 = scmp.eq.s32.totalorder %s85, 0
    %s88 = sadd.s32 %s87, 1
    %s89 = scalar_select %p86, %s87, %s88
    %p92 = pneg %p86
    %p93 = scmp.eq.s32.totalorder %s11, 1
    %p94 = por %p92, %p93
    %p95 = scmp.ne.s32.totalorder %s87, %s90
    %p96 = scmp.eq.s32.totalorder %s11, 0
    %p97 = por %p95, %p96
    %p98 = scmp.ne.s32.totalorder %s87, %s90
    %p99 = scmp.eq.s32.totalorder %s16, 1
    %p100 = por %p98, %p99
    %p101 = scmp.ne.s32.totalorder %s90, %s91
    %p102 = scmp.eq.s32.totalorder %s16, 0
    %p103 = por %p101, %p102
    %p104 = scmp.ne.s32.totalorder %s90, %s91
    %p105 = scmp.eq.s32.totalorder %s17, 1
    %p106 = por %p104, %p105
    %p108 = scmp.ne.s32.totalorder %s91, %s107
    %p109 = scmp.eq.s32.totalorder %s17, 0
    %p110 = por %p108, %p109
    %s111 = ssub.s32 %s18, %s30
    %s112 = ssub.s32 %s19, %s26
    %s113 = sor.u32 %s111, %s112
    %p114 = scmp.eq.s32.totalorder %s113, 0
    %s116 = sadd.s32 %s115, 1
    %s117 = scalar_select %p114, %s115, %s116
    %p120 = pneg %p114
    %p121 = scmp.eq.s32.totalorder %s11, 1
    %p122 = por %p120, %p121
    %p123 = scmp.ne.s32.totalorder %s115, %s118
    %p124 = scmp.eq.s32.totalorder %s11, 0
    %p125 = por %p123, %p124
    %p126 = scmp.ne.s32.totalorder %s115, %s118
    %p127 = scmp.eq.s32.totalorder %s16, 1
    %p128 = por %p126, %p127
    %p129 = scmp.ne.s32.totalorder %s118, %s119
    %p130 = scmp.eq.s32.totalorder %s16, 0
    %p131 = por %p129, %p130
    %p132 = scmp.ne.s32.totalorder %s118, %s119
    %p133 = scmp.eq.s32.totalorder %s17, 1
    %p134 = por %p132, %p133
    %p136 = scmp.ne.s32.totalorder %s119, %s135
    %p137 = scmp.eq.s32.totalorder %s17, 0
    %p138 = por %p136, %p137
    %s139 = ssub.s32 %s18, %s30
    %s140 = ssub.s32 %s19, %s26
    %s141 = sor.u32 %s139, %s140
    %p142 = scmp.eq.s32.totalorder %s141, 0
    %s144 = sadd.s32 %s143, 1
    %s145 = scalar_select %p142, %s143, %s144
    %p148 = pneg %p142
    %p149 = scmp.eq.s32.totalorder %s11, 1
    %p150 = por %p148, %p149
    %p151 = scmp.ne.s32.totalorder %s143, %s146
    %p152 = scmp.eq.s32.totalorder %s11, 0
    %p153 = por %p151, %p152
    %p154 = scmp.ne.s32.totalorder %s143, %s146
    %p155 = scmp.eq.s32.totalorder %s16, 1
    %p156 = por %p154, %p155
    %p157 = scmp.ne.s32.totalorder %s146, %s147
    %p158 = scmp.eq.s32.totalorder %s16, 0
    %p159 = por %p157, %p158
    %p160 = scmp.ne.s32.totalorder %s146, %s147
    %p161 = scmp.eq.s32.totalorder %s17, 1
    %p162 = por %p160, %p161
    %p164 = scmp.ne.s32.totalorder %s147, %s163
    %p165 = scmp.eq.s32.totalorder %s17, 0
    %p166 = por %p164, %p165
    %p167 = scmp.le.s32.totalorder 1, %s11
    %p168 = scmp.lt.s32.totalorder %s11, 3
    %p169 = pnand %p167, %p168
    %p170 = pneg %p169
    // Predicated region
    $region9: #{conv_block_apply.4} parent=5 // pred_check
      _
    $region10: #{conv_block_apply.4} parent=5 // pred_check_branch
      %172 = sbr.rel (%p169) target = $region12
    $region11: #{conv_block_apply.4} parent=5 // pred_region
      %s173 = ssub.s32 %s11, 1
      // Predicated region
      $region13: #{conv_block_apply.4} parent=11 // pred_check
        %p174 = pneg %p75
      $region14: #{conv_block_apply.4} parent=11 // pred_check_branch
        %176 = sbr.rel (%p174) target = $region16
      $region15: #{conv_block_apply.4} parent=11 // pred_region
        %p177 = scmp.lt.s32.totalorder %s21, 0
        %s178 = scalar_select %p177, %s21, 0
        %s179 = smul.addr %s178, 2
        %s180 = scalar_lea.vmem %s1, %s179
      $region16: #{conv_block_apply.4} parent=11 // pred_fallthru
        _
    $region12: #{conv_block_apply.4} parent=5 // pred_fallthru
      _
    %p181 = scmp.lt.s32.totalorder %s11, 2
    // Predicated region
    $region17: #{conv_block_apply.4} parent=5 // pred_check
      %p182 = pneg %p181
    $region18: #{conv_block_apply.4} parent=5 // pred_check_branch
      %184 = sbr.rel (%p182) target = $region20
    $region19: #{conv_block_apply.4} parent=5 // pred_region
      // Predicated region
      $region21: #{conv_block_apply.4} parent=19 // pred_check
        %p185 = pneg %p43
      $region22: #{conv_block_apply.4} parent=19 // pred_check_branch
        %187 = sbr.rel (%p185) target = $region24
      $region23: #{conv_block_apply.4} parent=19 // pred_region
        %p188 = scmp.lt.s32.totalorder %s18, 1
        %s189 = scalar_select %p188, %s18, 1
        %s190 = smul.addr %s189, 54
        %s191 = smul.addr %s190, 4
        %s192 = scalar_lea.vmem %s0, %s191
      $region24: #{conv_block_apply.4} parent=19 // pred_fallthru
        _
    $region20: #{conv_block_apply.4} parent=5 // pred_fallthru
      _
    %p193 = scmp.le.s32.totalorder 1, %s11
    %p194 = scmp.lt.s32.totalorder %s11, 3
    %p195 = pnand %p193, %p194
    %p196 = pneg %p195
    // Predicated region
    $region25: #{conv_block_apply.4} parent=5 // pred_check
      _
    $region26: #{conv_block_apply.4} parent=5 // pred_check_branch
      %198 = sbr.rel (%p195) target = $region28
    $region27: #{conv_block_apply.4} parent=5 // pred_region
      %s199 = ssub.s32 %s11, 1
      %p200 = scmp.lt.s32.totalorder %s20, 1
      %s201 = scalar_select %p200, %s20, 1
      %s202 = smul.addr %s201, 54
      %s203 = smul.addr %s202, 4
      %s204 = scalar_lea.vmem %s0, %s203
      %p205 = pneg %p49
      %p206 = pneg %p46
      %p207 = scmp.lt.s32.totalorder %s21, 0
      %s208 = scalar_select %p207, %s21, 0
      %s209 = smul.addr %s208, 2
      %s210 = scalar_lea.vmem %s1, %s209
      %p211 = pneg %p75
      %p212 = pneg %p72
      %p213 = pneg %p103
      %p214 = pneg %p100
      %p215 = scmp.lt.s32.totalorder %s20, 1
      %s216 = scalar_select %p215, %s20, 1
      %p217 = scmp.lt.s32.totalorder %s21, 0
      %s218 = scalar_select %p217, %s21, 0
      %s219 = smul.addr %s216, 32
      %s220 = sadd.s32 %s218, %s219
      %s221 = smul.addr %s220, 4
      %s222 = scalar_lea.vmem %s2, %s221
      %p223 = pneg %p131
      %p224 = pneg %p128
      %p225 = scmp.lt.s32.totalorder %s20, 1
      %s226 = scalar_select %p225, %s20, 1
      %p227 = scmp.lt.s32.totalorder %s21, 0
      %s228 = scalar_select %p227, %s21, 0
      %s229 = sadd.s32 %s228, %s226
      %s230 = scalar_lea.vmem %s3, %s229
      %p231 = pneg %p159
      %p232 = pneg %p156
      %p233 = scmp.lt.s32.totalorder %s20, 1
      %s234 = scalar_select %p233, %s20, 1
      %p235 = scmp.lt.s32.totalorder %s21, 0
      %s236 = scalar_select %p235, %s21, 0
      %s237 = sadd.s32 %s236, %s234
      %s238 = scalar_lea.vmem %s4, %s237
      %p239 = scmp.lt.s32.totalorder %s20, 1
      %s240 = scalar_select %p239, %s20, 1
      %s241 = smul.addr %s240, 54
      %s242 = smul.addr %s241, 4
      %s243 = scalar_lea.vmem %s0, %s242
      %p244 = scmp.lt.s32.totalorder %s21, 0
      %s245 = scalar_select %p244, %s21, 0
      %s246 = smul.addr %s245, 2
      %s247 = scalar_lea.vmem %s1, %s246
      %p248 = scmp.lt.s32.totalorder %s20, 1
      %s249 = scalar_select %p248, %s20, 1
      %p250 = scmp.lt.s32.totalorder %s21, 0
      %s251 = scalar_select %p250, %s21, 0
      %s252 = smul.addr %s249, 32
      %s253 = sadd.s32 %s251, %s252
      %s254 = smul.addr %s253, 4
      %s255 = scalar_lea.vmem %s2, %s254
      %p256 = scmp.lt.s32.totalorder %s20, 1
      %s257 = scalar_select %p256, %s20, 1
      %p258 = scmp.lt.s32.totalorder %s21, 0
      %s259 = scalar_select %p258, %s21, 0
      %s260 = sadd.s32 %s259, %s257
      %s261 = scalar_lea.vmem %s3, %s260
      %p262 = scmp.lt.s32.totalorder %s20, 1
      %s263 = scalar_select %p262, %s20, 1
      %p264 = scmp.lt.s32.totalorder %s21, 0
      %s265 = scalar_select %p264, %s21, 0
      %s266 = sadd.s32 %s265, %s263
      %s267 = scalar_lea.vmem %s4, %s266
      %v269 = vld [vmem:[%s243] sm:$0xf]
      %v270 = vld [vmem:[%s243 + $0x4] sm:$0xf]
      %v271 = vld [vmem:[%s243 + $0x8] sm:$0x1]
      %v272 = vld [vmem:[%s243 + $0xc] sm:$0xf]
      %v273 = vld [vmem:[%s243 + $0x10] sm:$0xf]
      %v274 = vld [vmem:[%s243 + $0x14] sm:$0x1]
      %v275 = vld [vmem:[%s243 + $0x18] sm:$0xf]
      %v276 = vld [vmem:[%s243 + $0x1c] sm:$0xf]
      %v277 = vld [vmem:[%s243 + $0x20] sm:$0x1]
      %v278 = vld [vmem:[%s243 + $0x24] sm:$0xf]
      %v279 = vld [vmem:[%s243 + $0x28] sm:$0xf]
      %v280 = vld [vmem:[%s243 + $0x2c] sm:$0x1]
      %v281 = vld [vmem:[%s243 + $0x30] sm:$0xf]
      %v282 = vld [vmem:[%s243 + $0x34] sm:$0xf]
      %v283 = vld [vmem:[%s243 + $0x38] sm:$0x1]
      %v284 = vld [vmem:[%s243 + $0x3c] sm:$0xf]
      %v285 = vld [vmem:[%s243 + $0x40] sm:$0xf]
      %v286 = vld [vmem:[%s243 + $0x44] sm:$0x1]
      %v287 = vld [vmem:[%s243 + $0x48] sm:$0xf]
      %v288 = vld [vmem:[%s243 + $0x4c] sm:$0xf]
      %v289 = vld [vmem:[%s243 + $0x50] sm:$0x1]
      %v290 = vld [vmem:[%s243 + $0x54] sm:$0xf]
      %v291 = vld [vmem:[%s243 + $0x58] sm:$0xf]
      %v292 = vld [vmem:[%s243 + $0x5c] sm:$0x1]
      %v293 = vld [vmem:[%s243 + $0x60] sm:$0xf]
      %v294 = vld [vmem:[%s243 + $0x64] sm:$0xf]
      %v295 = vld [vmem:[%s243 + $0x68] sm:$0x1]
      %v296 = vld [vmem:[%s243 + $0x6c] sm:$0xf]
      %v297 = vld [vmem:[%s243 + $0x70] sm:$0xf]
      %v298 = vld [vmem:[%s243 + $0x74] sm:$0x1]
      %v299 = vld [vmem:[%s243 + $0x78] sm:$0xf]
      %v300 = vld [vmem:[%s243 + $0x7c] sm:$0xf]
      %v301 = vld [vmem:[%s243 + $0x80] sm:$0x1]
      %v302 = vld [vmem:[%s243 + $0x84] sm:$0xf]
      %v303 = vld [vmem:[%s243 + $0x88] sm:$0xf]
      %v304 = vld [vmem:[%s243 + $0x8c] sm:$0x1]
      %v305 = vld [vmem:[%s243 + $0x90] sm:$0xf]
      %v306 = vld [vmem:[%s243 + $0x94] sm:$0xf]
      %v307 = vld [vmem:[%s243 + $0x98] sm:$0x1]
      %v308 = vld [vmem:[%s243 + $0x9c] sm:$0xf]
      %v309 = vld [vmem:[%s243 + $0xa0] sm:$0xf]
      %v310 = vld [vmem:[%s243 + $0xa4] sm:$0x1]
      %v311 = vld [vmem:[%s243 + $0xa8] sm:$0xf]
      %v312 = vld [vmem:[%s243 + $0xac] sm:$0xf]
      %v313 = vld [vmem:[%s243 + $0xb0] sm:$0x1]
      %v314 = vld [vmem:[%s243 + $0xb4] sm:$0xf]
      %v315 = vld [vmem:[%s243 + $0xb8] sm:$0xf]
      %v316 = vld [vmem:[%s243 + $0xbc] sm:$0x1]
      %v317 = vld [vmem:[%s243 + $0xc0] sm:$0xf]
      %v318 = vld [vmem:[%s243 + $0xc4] sm:$0xf]
      %v319 = vld [vmem:[%s243 + $0xc8] sm:$0x1]
      %v320 = vld [vmem:[%s243 + $0xcc] sm:$0xf]
      %v321 = vld [vmem:[%s243 + $0xd0] sm:$0xf]
      %v322 = vld [vmem:[%s243 + $0xd4] sm:$0x1]
      %v323 = vld [vmem:[%s247] sm:$0x3]
      %vm324 = vsmask.f32 3328
      %vm325 = vsmask.f32 7440
      %vm326 = vmor %vm324, %vm325
      %v328 = vshrl.u32 %v269, 16
      %v330 = vrot.slane %v328, 4
      %v331 = vshll.u32 %v269, 16
      %v333 = vrot.slane %v331, 5
      %v334 = vor.u32 %v330, %v333
      %v335 = vrot.slane %v334, 4
      %v337 = vshll.u32 %v270, 16
      %v339 = vrot.slane %v337, 5
      %v340 = vsel %vm326, %v335, %v339
      %v341 = vshrl.u32 %v270, 16
      %v343 = vrot.slane %v341, 4
      %v344 = vor.u32 %v343, %v339
      %v345 = vrot.slane %v344, 4
      %v347 = vshll.u32 %v271, 16
      %v349 = vrot.slane %v347, 5
      %v350 = vsel %vm326, %v345, %v349
      %v352 = vshrl.u32 %v272, 16
      %v354 = vrot.slane %v352, 4
      %v355 = vshll.u32 %v272, 16
      %v357 = vrot.slane %v355, 5
      %v358 = vor.u32 %v354, %v357
      %v359 = vrot.slane %v358, 4
      %v361 = vshll.u32 %v273, 16
      %v363 = vrot.slane %v361, 5
      %v364 = vsel %vm326, %v359, %v363
      %v365 = vshrl.u32 %v273, 16
      %v367 = vrot.slane %v365, 4
      %v368 = vor.u32 %v367, %v363
      %v369 = vrot.slane %v368, 4
      %v371 = vshll.u32 %v274, 16
      %v373 = vrot.slane %v371, 5
      %v374 = vsel %vm326, %v369, %v373
      %v376 = vshrl.u32 %v275, 16
      %v378 = vrot.slane %v376, 4
      %v379 = vshll.u32 %v275, 16
      %v381 = vrot.slane %v379, 5
      %v382 = vor.u32 %v378, %v381
      %v383 = vrot.slane %v382, 4
      %v385 = vshll.u32 %v276, 16
      %v387 = vrot.slane %v385, 5
      %v388 = vsel %vm326, %v383, %v387
      %v389 = vshrl.u32 %v276, 16
      %v391 = vrot.slane %v389, 4
      %v392 = vor.u32 %v391, %v387
      %v393 = vrot.slane %v392, 4
      %v395 = vshll.u32 %v277, 16
      %v397 = vrot.slane %v395, 5
      %v398 = vsel %vm326, %v393, %v397
      %v400 = vshrl.u32 %v278, 16
      %v402 = vrot.slane %v400, 4
      %v403 = vshll.u32 %v278, 16
      %v405 = vrot.slane %v403, 5
      %v406 = vor.u32 %v402, %v405
      %v407 = vrot.slane %v406, 4
      %v409 = vshll.u32 %v279, 16
      %v411 = vrot.slane %v409, 5
      %v412 = vsel %vm326, %v407, %v411
      %v413 = vshrl.u32 %v279, 16
      %v415 = vrot.slane %v413, 4
      %v416 = vor.u32 %v415, %v411
      %v417 = vrot.slane %v416, 4
      %v419 = vshll.u32 %v280, 16
      %v421 = vrot.slane %v419, 5
      %v422 = vsel %vm326, %v417, %v421
      %v424 = vshrl.u32 %v281, 16
      %v426 = vrot.slane %v424, 4
      %v427 = vshll.u32 %v281, 16
      %v429 = vrot.slane %v427, 5
      %v430 = vor.u32 %v426, %v429
      %v431 = vrot.slane %v430, 4
      %v433 = vshll.u32 %v282, 16
      %v435 = vrot.slane %v433, 5
      %v436 = vsel %vm326, %v431, %v435
      %v437 = vshrl.u32 %v282, 16
      %v439 = vrot.slane %v437, 4
      %v440 = vor.u32 %v439, %v435
      %v441 = vrot.slane %v440, 4
      %v443 = vshll.u32 %v283, 16
      %v445 = vrot.slane %v443, 5
      %v446 = vsel %vm326, %v441, %v445
      %v448 = vshrl.u32 %v284, 16
      %v450 = vrot.slane %v448, 4
      %v451 = vshll.u32 %v284, 16
      %v453 = vrot.slane %v451, 5
      %v454 = vor.u32 %v450, %v453
      %v455 = vrot.slane %v454, 4
      %v457 = vshll.u32 %v285, 16
      %v459 = vrot.slane %v457, 5
      %v460 = vsel %vm326, %v455, %v459
      %v461 = vshrl.u32 %v285, 16
      %v463 = vrot.slane %v461, 4
      %v464 = vor.u32 %v463, %v459
      %v465 = vrot.slane %v464, 4
      %v467 = vshll.u32 %v286, 16
      %v469 = vrot.slane %v467, 5
      %v470 = vsel %vm326, %v465, %v469
      %v472 = vshrl.u32 %v287, 16
      %v474 = vrot.slane %v472, 4
      %v475 = vshll.u32 %v287, 16
      %v477 = vrot.slane %v475, 5
      %v478 = vor.u32 %v474, %v477
      %v479 = vrot.slane %v478, 4
      %v481 = vshll.u32 %v288, 16
      %v483 = vrot.slane %v481, 5
      %v484 = vsel %vm326, %v479, %v483
      %v485 = vshrl.u32 %v288, 16
      %v487 = vrot.slane %v485, 4
      %v488 = vor.u32 %v487, %v483
      %v489 = vrot.slane %v488, 4
      %v491 = vshll.u32 %v289, 16
      %v493 = vrot.slane %v491, 5
      %v494 = vsel %vm326, %v489, %v493
      %v496 = vshrl.u32 %v290, 16
      %v498 = vrot.slane %v496, 4
      %v499 = vshll.u32 %v290, 16
      %v501 = vrot.slane %v499, 5
      %v502 = vor.u32 %v498, %v501
      %v503 = vrot.slane %v502, 4
      %v505 = vshll.u32 %v291, 16
      %v507 = vrot.slane %v505, 5
      %v508 = vsel %vm326, %v503, %v507
      %v509 = vshrl.u32 %v291, 16
      %v511 = vrot.slane %v509, 4
      %v512 = vor.u32 %v511, %v507
      %v513 = vrot.slane %v512, 4
      %v515 = vshll.u32 %v292, 16
      %v517 = vrot.slane %v515, 5
      %v518 = vsel %vm326, %v513, %v517
      %v520 = vshrl.u32 %v293, 16
      %v522 = vrot.slane %v520, 4
      %v523 = vshll.u32 %v293, 16
      %v525 = vrot.slane %v523, 5
      %v526 = vor.u32 %v522, %v525
      %v527 = vrot.slane %v526, 4
      %v529 = vshll.u32 %v294, 16
      %v531 = vrot.slane %v529, 5
      %v532 = vsel %vm326, %v527, %v531
      %v533 = vshrl.u32 %v294, 16
      %v535 = vrot.slane %v533, 4
      %v536 = vor.u32 %v535, %v531
      %v537 = vrot.slane %v536, 4
      %v539 = vshll.u32 %v295, 16
      %v541 = vrot.slane %v539, 5
      %v542 = vsel %vm326, %v537, %v541
      %v544 = vshrl.u32 %v296, 16
      %v546 = vrot.slane %v544, 4
      %v547 = vshll.u32 %v296, 16
      %v549 = vrot.slane %v547, 5
      %v550 = vor.u32 %v546, %v549
      %v551 = vrot.slane %v550, 4
      %v553 = vshll.u32 %v297, 16
      %v555 = vrot.slane %v553, 5
      %v556 = vsel %vm326, %v551, %v555
      %v557 = vshrl.u32 %v297, 16
      %v559 = vrot.slane %v557, 4
      %v560 = vor.u32 %v559, %v555
      %v561 = vrot.slane %v560, 4
      %v563 = vshll.u32 %v298, 16
      %v565 = vrot.slane %v563, 5
      %v566 = vsel %vm326, %v561, %v565
      %v568 = vshrl.u32 %v299, 16
      %v570 = vrot.slane %v568, 4
      %v571 = vshll.u32 %v299, 16
      %v573 = vrot.slane %v571, 5
      %v574 = vor.u32 %v570, %v573
      %v575 = vrot.slane %v574, 4
      %v577 = vshll.u32 %v300, 16
      %v579 = vrot.slane %v577, 5
      %v580 = vsel %vm326, %v575, %v579
      %v581 = vshrl.u32 %v300, 16
      %v583 = vrot.slane %v581, 4
      %v584 = vor.u32 %v583, %v579
      %v585 = vrot.slane %v584, 4
      %v587 = vshll.u32 %v301, 16
      %v589 = vrot.slane %v587, 5
      %v590 = vsel %vm326, %v585, %v589
      %v592 = vshrl.u32 %v302, 16
      %v594 = vrot.slane %v592, 4
      %v595 = vshll.u32 %v302, 16
      %v597 = vrot.slane %v595, 5
      %v598 = vor.u32 %v594, %v597
      %v599 = vrot.slane %v598, 4
      %v601 = vshll.u32 %v303, 16
      %v603 = vrot.slane %v601, 5
      %v604 = vsel %vm326, %v599, %v603
      %v605 = vshrl.u32 %v303, 16
      %v607 = vrot.slane %v605, 4
      %v608 = vor.u32 %v607, %v603
      %v609 = vrot.slane %v608, 4
      %v611 = vshll.u32 %v304, 16
      %v613 = vrot.slane %v611, 5
      %v614 = vsel %vm326, %v609, %v613
      %v616 = vshrl.u32 %v305, 16
      %v618 = vrot.slane %v616, 4
      %v619 = vshll.u32 %v305, 16
      %v621 = vrot.slane %v619, 5
      %v622 = vor.u32 %v618, %v621
      %v623 = vrot.slane %v622, 4
      %v625 = vshll.u32 %v306, 16
      %v627 = vrot.slane %v625, 5
      %v628 = vsel %vm326, %v623, %v627
      %v629 = vshrl.u32 %v306, 16
      %v631 = vrot.slane %v629, 4
      %v632 = vor.u32 %v631, %v627
      %v633 = vrot.slane %v632, 4
      %v635 = vshll.u32 %v307, 16
      %v637 = vrot.slane %v635, 5
      %v638 = vsel %vm326, %v633, %v637
      %v640 = vshrl.u32 %v308, 16
      %v642 = vrot.slane %v640, 4
      %v643 = vshll.u32 %v308, 16
      %v645 = vrot.slane %v643, 5
      %v646 = vor.u32 %v642, %v645
      %v647 = vrot.slane %v646, 4
      %v649 = vshll.u32 %v309, 16
      %v651 = vrot.slane %v649, 5
      %v652 = vsel %vm326, %v647, %v651
      %v653 = vshrl.u32 %v309, 16
      %v655 = vrot.slane %v653, 4
      %v656 = vor.u32 %v655, %v651
      %v657 = vrot.slane %v656, 4
      %v659 = vshll.u32 %v310, 16
      %v661 = vrot.slane %v659, 5
      %v662 = vsel %vm326, %v657, %v661
      %v664 = vshrl.u32 %v311, 16
      %v666 = vrot.slane %v664, 4
      %v667 = vshll.u32 %v311, 16
      %v669 = vrot.slane %v667, 5
      %v670 = vor.u32 %v666, %v669
      %v671 = vrot.slane %v670, 4
      %v673 = vshll.u32 %v312, 16
      %v675 = vrot.slane %v673, 5
      %v676 = vsel %vm326, %v671, %v675
      %v677 = vshrl.u32 %v312, 16
      %v679 = vrot.slane %v677, 4
      %v680 = vor.u32 %v679, %v675
      %v681 = vrot.slane %v680, 4
      %v683 = vshll.u32 %v313, 16
      %v685 = vrot.slane %v683, 5
      %v686 = vsel %vm326, %v681, %v685
      %v688 = vshrl.u32 %v314, 16
      %v690 = vrot.slane %v688, 4
      %v691 = vshll.u32 %v314, 16
      %v693 = vrot.slane %v691, 5
      %v694 = vor.u32 %v690, %v693
      %v695 = vrot.slane %v694, 4
      %v697 = vshll.u32 %v315, 16
      %v699 = vrot.slane %v697, 5
      %v700 = vsel %vm326, %v695, %v699
      %v701 = vshrl.u32 %v315, 16
      %v703 = vrot.slane %v701, 4
      %v704 = vor.u32 %v703, %v699
      %v705 = vrot.slane %v704, 4
      %v707 = vshll.u32 %v316, 16
      %v709 = vrot.slane %v707, 5
      %v710 = vsel %vm326, %v705, %v709
      %s711 = scalar_lea.vmem %s247, 2
      %v712 = vld [vmem:[%s711] sm:$0x3]
      %v713 = vunpack.c.l.b16 %v340
      %v714 = vunpack.c.l.b16 %v350
      %v715 = vunpack.c.l.b16 %v364
      %v716 = vunpack.c.l.b16 %v374
      %v717 = vunpack.c.l.b16 %v388
      %v718 = vunpack.c.l.b16 %v398
      %v719 = vunpack.c.l.b16 %v412
      %v720 = vunpack.c.l.b16 %v422
      %v721 = vunpack.c.l.b16 %v436
      %v722 = vunpack.c.l.b16 %v446
      %v723 = vunpack.c.l.b16 %v460
      %v724 = vunpack.c.l.b16 %v470
      %v725 = vunpack.c.l.b16 %v484
      %v726 = vunpack.c.l.b16 %v494
      %v727 = vunpack.c.l.b16 %v508
      %v728 = vunpack.c.l.b16 %v518
      %v729 = vunpack.c.l.b16 %v532
      %v730 = vunpack.c.l.b16 %v542
      %v731 = vunpack.c.l.b16 %v556
      %v732 = vunpack.c.l.b16 %v566
      %v733 = vunpack.c.l.b16 %v580
      %v734 = vunpack.c.l.b16 %v590
      %v735 = vunpack.c.l.b16 %v604
      %v736 = vunpack.c.l.b16 %v614
      %v737 = vunpack.c.l.b16 %v628
      %v738 = vunpack.c.l.b16 %v638
      %v739 = vunpack.c.l.b16 %v652
      %v740 = vunpack.c.l.b16 %v662
      %v741 = vunpack.c.l.b16 %v676
      %v742 = vunpack.c.l.b16 %v686
      %v743 = vunpack.c.l.b16 %v700
      %v744 = vunpack.c.l.b16 %v710
      %v745 = vpack.c.b16 %v714, %v713
      %v746 = vpack.c.b16 %v716, %v715
      %v747 = vpack.c.b16 %v718, %v717
      %v748 = vpack.c.b16 %v720, %v719
      %v749 = vpack.c.b16 %v722, %v721
      %v750 = vpack.c.b16 %v724, %v723
      %v751 = vpack.c.b16 %v726, %v725
      %v752 = vpack.c.b16 %v728, %v727
      %v753 = vpack.c.b16 %v730, %v729
      %v754 = vpack.c.b16 %v732, %v731
      %v755 = vpack.c.b16 %v734, %v733
      %v756 = vpack.c.b16 %v736, %v735
      %v757 = vpack.c.b16 %v738, %v737
      %v758 = vpack.c.b16 %v740, %v739
      %v759 = vpack.c.b16 %v742, %v741
      %v760 = vpack.c.b16 %v744, %v743
      %vm761 = vcmask 31744
      %v763 = vsel %vm761, %v745, 0
      %v766 = vsel %vm761, %v746, 0
      %v769 = vsel %vm761, %v747, 0
      %v772 = vsel %vm761, %v748, 0
      %v775 = vsel %vm761, %v749, 0
      %v778 = vsel %vm761, %v750, 0
      %v781 = vsel %vm761, %v751, 0
      %v784 = vsel %vm761, %v752, 0
      %v787 = vsel %vm761, %v753, 0
      %v790 = vsel %vm761, %v754, 0
      %v793 = vsel %vm761, %v755, 0
      %v796 = vsel %vm761, %v756, 0
      %v799 = vsel %vm761, %v757, 0
      %v802 = vsel %vm761, %v758, 0
      %v805 = vsel %vm761, %v759, 0
      %v808 = vsel %vm761, %v760, 0
      %vm810 = vcmask 1041408
      %v812 = vsel %vm810, %v712, 0
      %814 = vmatpush.bf16.msra.mxu0 0
      %815 = vmatpush.bf16.msra.mxu0 0
      %816 = vmatpush.bf16.msra.mxu0 0
      %817 = vmatpush.bf16.msra.mxu0 0
      %818 = vmatpush.bf16.msra.mxu0 0
      %819 = vmatpush.bf16.msra.mxu0 0
      %820 = vmatpush.bf16.msra.mxu0 0
      %821 = vmatpush.bf16.msra.mxu0 %v812
      %822 = vmatmul.bf16.gmra.mxu0 %v763
      %v823 = vpop.f32.mrf.mxu0
      %v824 = vadd.f32 0.0, %v823
      %v825 = vpop.f32.mrf.mxu0
      %v826 = vadd.f32 0.0, %v825
      %827 = vmatmul.bf16.gmra.mxu0 %v766
      %v828 = vpop.f32.mrf.mxu0
      %v829 = vadd.f32 0.0, %v828
      %v830 = vpop.f32.mrf.mxu0
      %v831 = vadd.f32 0.0, %v830
      %832 = vmatmul.bf16.gmra.mxu0 %v769
      %v833 = vpop.f32.mrf.mxu0
      %v834 = vadd.f32 0.0, %v833
      %v835 = vpop.f32.mrf.mxu0
      %v836 = vadd.f32 0.0, %v835
      %837 = vmatmul.bf16.gmra.mxu0 %v772
      %v838 = vpop.f32.mrf.mxu0
      %v839 = vadd.f32 0.0, %v838
      %v840 = vpop.f32.mrf.mxu0
      %v841 = vadd.f32 0.0, %v840
      %842 = vmatmul.bf16.gmra.mxu0 %v775
      %v843 = vpop.f32.mrf.mxu0
      %v844 = vadd.f32 0.0, %v843
      %v845 = vpop.f32.mrf.mxu0
      %v846 = vadd.f32 0.0, %v845
      %847 = vmatmul.bf16.gmra.mxu0 %v778
      %v848 = vpop.f32.mrf.mxu0
      %v849 = vadd.f32 0.0, %v848
      %v850 = vpop.f32.mrf.mxu0
      %v851 = vadd.f32 0.0, %v850
      %852 = vmatmul.bf16.gmra.mxu0 %v781
      %v853 = vpop.f32.mrf.mxu0
      %v854 = vadd.f32 0.0, %v853
      %v855 = vpop.f32.mrf.mxu0
      %v856 = vadd.f32 0.0, %v855
      %857 = vmatmul.bf16.gmra.mxu0 %v784
      %v858 = vpop.f32.mrf.mxu0
      %v859 = vadd.f32 0.0, %v858
      %v860 = vpop.f32.mrf.mxu0
      %v861 = vadd.f32 0.0, %v860
      %862 = vmatmul.bf16.gmra.mxu0 %v787
      %v863 = vpop.f32.mrf.mxu0
      %v864 = vadd.f32 0.0, %v863
      %v865 = vpop.f32.mrf.mxu0
      %v866 = vadd.f32 0.0, %v865
      %867 = vmatmul.bf16.gmra.mxu0 %v790
      %v868 = vpop.f32.mrf.mxu0
      %v869 = vadd.f32 0.0, %v868
      %v870 = vpop.f32.mrf.mxu0
      %v871 = vadd.f32 0.0, %v870
      %872 = vmatmul.bf16.gmra.mxu0 %v793
      %v873 = vpop.f32.mrf.mxu0
      %v874 = vadd.f32 0.0, %v873
      %v875 = vpop.f32.mrf.mxu0
      %v876 = vadd.f32 0.0, %v875
      %877 = vmatmul.bf16.gmra.mxu0 %v796
      %v878 = vpop.f32.mrf.mxu0
      %v879 = vadd.f32 0.0, %v878
      %v880 = vpop.f32.mrf.mxu0
      %v881 = vadd.f32 0.0, %v880
      %882 = vmatmul.bf16.gmra.mxu0 %v799
      %v883 = vpop.f32.mrf.mxu0
      %v884 = vadd.f32 0.0, %v883
      %v885 = vpop.f32.mrf.mxu0
      %v886 = vadd.f32 0.0, %v885
      %887 = vmatmul.bf16.gmra.mxu0 %v802
      %v888 = vpop.f32.mrf.mxu0
      %v889 = vadd.f32 0.0, %v888
      %v890 = vpop.f32.mrf.mxu0
      %v891 = vadd.f32 0.0, %v890
      %892 = vmatmul.bf16.gmra.mxu0 %v805
      %v893 = vpop.f32.mrf.mxu0
      %v894 = vadd.f32 0.0, %v893
      %v895 = vpop.f32.mrf.mxu0
      %v896 = vadd.f32 0.0, %v895
      %897 = vmatmul.bf16.gmra.mxu0 %v808
      %v898 = vpop.f32.mrf.mxu0
      %v899 = vadd.f32 0.0, %v898
      %v900 = vpop.f32.mrf.mxu0
      %v901 = vadd.f32 0.0, %v900
      %902 = vdwg.mxu0
      %v935 = vunpack.c.l.b16 %v269
      %v936 = vunpack.c.l.b16 %v270
      %v937 = vunpack.c.l.b16 %v272
      %v938 = vunpack.c.l.b16 %v273
      %v939 = vunpack.c.l.b16 %v275
      %v940 = vunpack.c.l.b16 %v276
      %v941 = vunpack.c.l.b16 %v278
      %v942 = vunpack.c.l.b16 %v279
      %v943 = vunpack.c.l.b16 %v281
      %v944 = vunpack.c.l.b16 %v282
      %v945 = vunpack.c.l.b16 %v284
      %v946 = vunpack.c.l.b16 %v285
      %v947 = vunpack.c.l.b16 %v287
      %v948 = vunpack.c.l.b16 %v288
      %v949 = vunpack.c.l.b16 %v290
      %v950 = vunpack.c.l.b16 %v291
      %v951 = vunpack.c.l.b16 %v293
      %v952 = vunpack.c.l.b16 %v294
      %v953 = vunpack.c.l.b16 %v296
      %v954 = vunpack.c.l.b16 %v297
      %v955 = vunpack.c.l.b16 %v299
      %v956 = vunpack.c.l.b16 %v300
      %v957 = vunpack.c.l.b16 %v302
      %v958 = vunpack.c.l.b16 %v303
      %v959 = vunpack.c.l.b16 %v305
      %v960 = vunpack.c.l.b16 %v306
      %v961 = vunpack.c.l.b16 %v308
      %v962 = vunpack.c.l.b16 %v309
      %v963 = vunpack.c.l.b16 %v311
      %v964 = vunpack.c.l.b16 %v312
      %v965 = vunpack.c.l.b16 %v314
      %v966 = vunpack.c.l.b16 %v315
      %v967 = vpack.c.b16 %v936, %v935
      %v968 = vpack.c.b16 %v938, %v937
      %v969 = vpack.c.b16 %v940, %v939
      %v970 = vpack.c.b16 %v942, %v941
      %v971 = vpack.c.b16 %v944, %v943
      %v972 = vpack.c.b16 %v946, %v945
      %v973 = vpack.c.b16 %v948, %v947
      %v974 = vpack.c.b16 %v950, %v949
      %v975 = vpack.c.b16 %v952, %v951
      %v976 = vpack.c.b16 %v954, %v953
      %v977 = vpack.c.b16 %v956, %v955
      %v978 = vpack.c.b16 %v958, %v957
      %v979 = vpack.c.b16 %v960, %v959
      %v980 = vpack.c.b16 %v962, %v961
      %v981 = vpack.c.b16 %v964, %v963
      %v982 = vpack.c.b16 %v966, %v965
      %v984 = vsel %vm761, %v967, 0
      %v987 = vsel %vm761, %v968, 0
      %v990 = vsel %vm761, %v969, 0
      %v993 = vsel %vm761, %v970, 0
      %v996 = vsel %vm761, %v971, 0
      %v999 = vsel %vm761, %v972, 0
      %v1002 = vsel %vm761, %v973, 0
      %v1005 = vsel %vm761, %v974, 0
      %v1008 = vsel %vm761, %v975, 0
      %v1011 = vsel %vm761, %v976, 0
      %v1014 = vsel %vm761, %v977, 0
      %v1017 = vsel %vm761, %v978, 0
      %v1020 = vsel %vm761, %v979, 0
      %v1023 = vsel %vm761, %v980, 0
      %v1026 = vsel %vm761, %v981, 0
      %v1029 = vsel %vm761, %v982, 0
      %v1032 = vsel %vm810, %v323, 0
      %1034 = vmatpush.bf16.msra.mxu0 0
      %1035 = vmatpush.bf16.msra.mxu0 0
      %1036 = vmatpush.bf16.msra.mxu0 0
      %1037 = vmatpush.bf16.msra.mxu0 0
      %1038 = vmatpush.bf16.msra.mxu0 0
      %1039 = vmatpush.bf16.msra.mxu0 0
      %1040 = vmatpush.bf16.msra.mxu0 0
      %1041 = vmatpush.bf16.msra.mxu0 %v1032
      %1042 = vmatmul.bf16.gmra.mxu0 %v984
      %v1043 = vpop.f32.mrf.mxu0
      %v1044 = vadd.f32 %v824, %v1043
      %v1045 = vpop.f32.mrf.mxu0
      %v1046 = vadd.f32 %v826, %v1045
      %1047 = vmatmul.bf16.gmra.mxu0 %v987
      %v1048 = vpop.f32.mrf.mxu0
      %v1049 = vadd.f32 %v829, %v1048
      %v1050 = vpop.f32.mrf.mxu0
      %v1051 = vadd.f32 %v831, %v1050
      %1052 = vmatmul.bf16.gmra.mxu0 %v990
      %v1053 = vpop.f32.mrf.mxu0
      %v1054 = vadd.f32 %v834, %v1053
      %v1055 = vpop.f32.mrf.mxu0
      %v1056 = vadd.f32 %v836, %v1055
      %1057 = vmatmul.bf16.gmra.mxu0 %v993
      %v1058 = vpop.f32.mrf.mxu0
      %v1059 = vadd.f32 %v839, %v1058
      %v1060 = vpop.f32.mrf.mxu0
      %v1061 = vadd.f32 %v841, %v1060
      %1062 = vmatmul.bf16.gmra.mxu0 %v996
      %v1063 = vpop.f32.mrf.mxu0
      %v1064 = vadd.f32 %v844, %v1063
      %v1065 = vpop.f32.mrf.mxu0
      %v1066 = vadd.f32 %v846, %v1065
      %1067 = vmatmul.bf16.gmra.mxu0 %v999
      %v1068 = vpop.f32.mrf.mxu0
      %v1069 = vadd.f32 %v849, %v1068
      %v1070 = vpop.f32.mrf.mxu0
      %v1071 = vadd.f32 %v851, %v1070
      %1072 = vmatmul.bf16.gmra.mxu0 %v1002
      %v1073 = vpop.f32.mrf.mxu0
      %v1074 = vadd.f32 %v854, %v1073
      %v1075 = vpop.f32.mrf.mxu0
      %v1076 = vadd.f32 %v856, %v1075
      %1077 = vmatmul.bf16.gmra.mxu0 %v1005
      %v1078 = vpop.f32.mrf.mxu0
      %v1079 = vadd.f32 %v859, %v1078
      %v1080 = vpop.f32.mrf.mxu0
      %v1081 = vadd.f32 %v861, %v1080
      %1082 = vmatmul.bf16.gmra.mxu0 %v1008
      %v1083 = vpop.f32.mrf.mxu0
      %v1084 = vadd.f32 %v864, %v1083
      %v1085 = vpop.f32.mrf.mxu0
      %v1086 = vadd.f32 %v866, %v1085
      %1087 = vmatmul.bf16.gmra.mxu0 %v1011
      %v1088 = vpop.f32.mrf.mxu0
      %v1089 = vadd.f32 %v869, %v1088
      %v1090 = vpop.f32.mrf.mxu0
      %v1091 = vadd.f32 %v871, %v1090
      %1092 = vmatmul.bf16.gmra.mxu0 %v1014
      %v1093 = vpop.f32.mrf.mxu0
      %v1094 = vadd.f32 %v874, %v1093
      %v1095 = vpop.f32.mrf.mxu0
      %v1096 = vadd.f32 %v876, %v1095
      %1097 = vmatmul.bf16.gmra.mxu0 %v1017
      %v1098 = vpop.f32.mrf.mxu0
      %v1099 = vadd.f32 %v879, %v1098
      %v1100 = vpop.f32.mrf.mxu0
      %v1101 = vadd.f32 %v881, %v1100
      %1102 = vmatmul.bf16.gmra.mxu0 %v1020
      %v1103 = vpop.f32.mrf.mxu0
      %v1104 = vadd.f32 %v884, %v1103
      %v1105 = vpop.f32.mrf.mxu0
      %v1106 = vadd.f32 %v886, %v1105
      %1107 = vmatmul.bf16.gmra.mxu0 %v1023
      %v1108 = vpop.f32.mrf.mxu0
      %v1109 = vadd.f32 %v889, %v1108
      %v1110 = vpop.f32.mrf.mxu0
      %v1111 = vadd.f32 %v891, %v1110
      %1112 = vmatmul.bf16.gmra.mxu0 %v1026
      %v1113 = vpop.f32.mrf.mxu0
      %v1114 = vadd.f32 %v894, %v1113
      %v1115 = vpop.f32.mrf.mxu0
      %v1116 = vadd.f32 %v896, %v1115
      %1117 = vmatmul.bf16.gmra.mxu0 %v1029
      %v1118 = vpop.f32.mrf.mxu0
      %v1119 = vadd.f32 %v899, %v1118
      %v1120 = vpop.f32.mrf.mxu0
      %v1121 = vadd.f32 %v901, %v1120
      %1122 = vdwg.mxu0
      %vm1139 = vcmask 1042432
      %vm1140 = vcmask 1046532
      %vm1141 = vmor %vm1139, %vm1140
      %v1142 = vrot.slane %v269, 5
      %v1143 = vrot.slane %v1142, 4
      %v1144 = vrot.slane %v270, 5
      %v1145 = vsel %vm1141, %v1143, %v1144
      %v1146 = vrot.slane %v1144, 4
      %v1147 = vrot.slane %v271, 5
      %v1148 = vsel %vm1141, %v1146, %v1147
      %v1149 = vrot.slane %v272, 5
      %v1150 = vrot.slane %v1149, 4
      %v1151 = vrot.slane %v273, 5
      %v1152 = vsel %vm1141, %v1150, %v1151
      %v1153 = vrot.slane %v1151, 4
      %v1154 = vrot.slane %v274, 5
      %v1155 = vsel %vm1141, %v1153, %v1154
      %v1156 = vrot.slane %v275, 5
      %v1157 = vrot.slane %v1156, 4
      %v1158 = vrot.slane %v276, 5
      %v1159 = vsel %vm1141, %v1157, %v1158
      %v1160 = vrot.slane %v1158, 4
      %v1161 = vrot.slane %v277, 5
      %v1162 = vsel %vm1141, %v1160, %v1161
      %v1163 = vrot.slane %v278, 5
      %v1164 = vrot.slane %v1163, 4
      %v1165 = vrot.slane %v279, 5
      %v1166 = vsel %vm1141, %v1164, %v1165
      %v1167 = vrot.slane %v1165, 4
      %v1168 = vrot.slane %v280, 5
      %v1169 = vsel %vm1141, %v1167, %v1168
      %v1170 = vrot.slane %v281, 5
      %v1171 = vrot.slane %v1170, 4
      %v1172 = vrot.slane %v282, 5
      %v1173 = vsel %vm1141, %v1171, %v1172
      %v1174 = vrot.slane %v1172, 4
      %v1175 = vrot.slane %v283, 5
      %v1176 = vsel %vm1141, %v1174, %v1175
      %v1177 = vrot.slane %v284, 5
      %v1178 = vrot.slane %v1177, 4
      %v1179 = vrot.slane %v285, 5
      %v1180 = vsel %vm1141, %v1178, %v1179
      %v1181 = vrot.slane %v1179, 4
      %v1182 = vrot.slane %v286, 5
      %v1183 = vsel %vm1141, %v1181, %v1182
      %v1184 = vrot.slane %v287, 5
      %v1185 = vrot.slane %v1184, 4
      %v1186 = vrot.slane %v288, 5
      %v1187 = vsel %vm1141, %v1185, %v1186
      %v1188 = vrot.slane %v1186, 4
      %v1189 = vrot.slane %v289, 5
      %v1190 = vsel %vm1141, %v1188, %v1189
      %v1191 = vrot.slane %v290, 5
      %v1192 = vrot.slane %v1191, 4
      %v1193 = vrot.slane %v291, 5
      %v1194 = vsel %vm1141, %v1192, %v1193
      %v1195 = vrot.slane %v1193, 4
      %v1196 = vrot.slane %v292, 5
      %v1197 = vsel %vm1141, %v1195, %v1196
      %v1198 = vrot.slane %v293, 5
      %v1199 = vrot.slane %v1198, 4
      %v1200 = vrot.slane %v294, 5
      %v1201 = vsel %vm1141, %v1199, %v1200
      %v1202 = vrot.slane %v1200, 4
      %v1203 = vrot.slane %v295, 5
      %v1204 = vsel %vm1141, %v1202, %v1203
      %v1205 = vrot.slane %v296, 5
      %v1206 = vrot.slane %v1205, 4
      %v1207 = vrot.slane %v297, 5
      %v1208 = vsel %vm1141, %v1206, %v1207
      %v1209 = vrot.slane %v1207, 4
      %v1210 = vrot.slane %v298, 5
      %v1211 = vsel %vm1141, %v1209, %v1210
      %v1212 = vrot.slane %v299, 5
      %v1213 = vrot.slane %v1212, 4
      %v1214 = vrot.slane %v300, 5
      %v1215 = vsel %vm1141, %v1213, %v1214
      %v1216 = vrot.slane %v1214, 4
      %v1217 = vrot.slane %v301, 5
      %v1218 = vsel %vm1141, %v1216, %v1217
      %v1219 = vrot.slane %v302, 5
      %v1220 = vrot.slane %v1219, 4
      %v1221 = vrot.slane %v303, 5
      %v1222 = vsel %vm1141, %v1220, %v1221
      %v1223 = vrot.slane %v1221, 4
      %v1224 = vrot.slane %v304, 5
      %v1225 = vsel %vm1141, %v1223, %v1224
      %v1226 = vrot.slane %v305, 5
      %v1227 = vrot.slane %v1226, 4
      %v1228 = vrot.slane %v306, 5
      %v1229 = vsel %vm1141, %v1227, %v1228
      %v1230 = vrot.slane %v1228, 4
      %v1231 = vrot.slane %v307, 5
      %v1232 = vsel %vm1141, %v1230, %v1231
      %v1233 = vrot.slane %v308, 5
      %v1234 = vrot.slane %v1233, 4
      %v1235 = vrot.slane %v309, 5
      %v1236 = vsel %vm1141, %v1234, %v1235
      %v1237 = vrot.slane %v1235, 4
      %v1238 = vrot.slane %v310, 5
      %v1239 = vsel %vm1141, %v1237, %v1238
      %v1240 = vrot.slane %v311, 5
      %v1241 = vrot.slane %v1240, 4
      %v1242 = vrot.slane %v312, 5
      %v1243 = vsel %vm1141, %v1241, %v1242
      %v1244 = vrot.slane %v1242, 4
      %v1245 = vrot.slane %v313, 5
      %v1246 = vsel %vm1141, %v1244, %v1245
      %v1247 = vrot.slane %v314, 5
      %v1248 = vrot.slane %v1247, 4
      %v1249 = vrot.slane %v315, 5
      %v1250 = vsel %vm1141, %v1248, %v1249
      %v1251 = vrot.slane %v1249, 4
      %v1252 = vrot.slane %v316, 5
      %v1253 = vsel %vm1141, %v1251, %v1252
      %s1254 = scalar_lea.vmem %s247, 4
      %v1255 = vld [vmem:[%s1254] sm:$0x3]
      %v1256 = vunpack.c.l.b16 %v1145
      %v1257 = vunpack.c.l.b16 %v1148
      %v1258 = vunpack.c.l.b16 %v1152
      %v1259 = vunpack.c.l.b16 %v1155
      %v1260 = vunpack.c.l.b16 %v1159
      %v1261 = vunpack.c.l.b16 %v1162
      %v1262 = vunpack.c.l.b16 %v1166
      %v1263 = vunpack.c.l.b16 %v1169
      %v1264 = vunpack.c.l.b16 %v1173
      %v1265 = vunpack.c.l.b16 %v1176
      %v1266 = vunpack.c.l.b16 %v1180
      %v1267 = vunpack.c.l.b16 %v1183
      %v1268 = vunpack.c.l.b16 %v1187
      %v1269 = vunpack.c.l.b16 %v1190
      %v1270 = vunpack.c.l.b16 %v1194
      %v1271 = vunpack.c.l.b16 %v1197
      %v1272 = vunpack.c.l.b16 %v1201
      %v1273 = vunpack.c.l.b16 %v1204
      %v1274 = vunpack.c.l.b16 %v1208
      %v1275 = vunpack.c.l.b16 %v1211
      %v1276 = vunpack.c.l.b16 %v1215
      %v1277 = vunpack.c.l.b16 %v1218
      %v1278 = vunpack.c.l.b16 %v1222
      %v1279 = vunpack.c.l.b16 %v1225
      %v1280 = vunpack.c.l.b16 %v1229
      %v1281 = vunpack.c.l.b16 %v1232
      %v1282 = vunpack.c.l.b16 %v1236
      %v1283 = vunpack.c.l.b16 %v1239
      %v1284 = vunpack.c.l.b16 %v1243
      %v1285 = vunpack.c.l.b16 %v1246
      %v1286 = vunpack.c.l.b16 %v1250
      %v1287 = vunpack.c.l.b16 %v1253
      %v1288 = vpack.c.b16 %v1257, %v1256
      %v1289 = vpack.c.b16 %v1259, %v1258
      %v1290 = vpack.c.b16 %v1261, %v1260
      %v1291 = vpack.c.b16 %v1263, %v1262
      %v1292 = vpack.c.b16 %v1265, %v1264
      %v1293 = vpack.c.b16 %v1267, %v1266
      %v1294 = vpack.c.b16 %v1269, %v1268
      %v1295 = vpack.c.b16 %v1271, %v1270
      %v1296 = vpack.c.b16 %v1273, %v1272
      %v1297 = vpack.c.b16 %v1275, %v1274
      %v1298 = vpack.c.b16 %v1277, %v1276
      %v1299 = vpack.c.b16 %v1279, %v1278
      %v1300 = vpack.c.b16 %v1281, %v1280
      %v1301 = vpack.c.b16 %v1283, %v1282
      %v1302 = vpack.c.b16 %v1285, %v1284
      %v1303 = vpack.c.b16 %v1287, %v1286
      %v1305 = vsel %vm761, %v1288, 0
      %v1308 = vsel %vm761, %v1289, 0
      %v1311 = vsel %vm761, %v1290, 0
      %v1314 = vsel %vm761, %v1291, 0
      %v1317 = vsel %vm761, %v1292, 0
      %v1320 = vsel %vm761, %v1293, 0
      %v1323 = vsel %vm761, %v1294, 0
      %v1326 = vsel %vm761, %v1295, 0
      %v1329 = vsel %vm761, %v1296, 0
      %v1332 = vsel %vm761, %v1297, 0
      %v1335 = vsel %vm761, %v1298, 0
      %v1338 = vsel %vm761, %v1299, 0
      %v1341 = vsel %vm761, %v1300, 0
      %v1344 = vsel %vm761, %v1301, 0
      %v1347 = vsel %vm761, %v1302, 0
      %v1350 = vsel %vm761, %v1303, 0
      %v1353 = vsel %vm810, %v1255, 0
      %1355 = vmatpush.bf16.msra.mxu0 0
      %1356 = vmatpush.bf16.msra.mxu0 0
      %1357 = vmatpush.bf16.msra.mxu0 0
      %1358 = vmatpush.bf16.msra.mxu0 0
      %1359 = vmatpush.bf16.msra.mxu0 0
      %1360 = vmatpush.bf16.msra.mxu0 0
      %1361 = vmatpush.bf16.msra.mxu0 0
      %1362 = vmatpush.bf16.msra.mxu0 %v1353
      %1363 = vmatmul.bf16.gmra.mxu0 %v1305
      %v1364 = vpop.f32.mrf.mxu0
      %v1365 = vadd.f32 0.0, %v1364
      %v1366 = vpop.f32.mrf.mxu0
      %v1367 = vadd.f32 0.0, %v1366
      %1368 = vmatmul.bf16.gmra.mxu0 %v1308
      %v1369 = vpop.f32.mrf.mxu0
      %v1370 = vadd.f32 0.0, %v1369
      %v1371 = vpop.f32.mrf.mxu0
      %v1372 = vadd.f32 0.0, %v1371
      %1373 = vmatmul.bf16.gmra.mxu0 %v1311
      %v1374 = vpop.f32.mrf.mxu0
      %v1375 = vadd.f32 0.0, %v1374
      %v1376 = vpop.f32.mrf.mxu0
      %v1377 = vadd.f32 0.0, %v1376
      %1378 = vmatmul.bf16.gmra.mxu0 %v1314
      %v1379 = vpop.f32.mrf.mxu0
      %v1380 = vadd.f32 0.0, %v1379
      %v1381 = vpop.f32.mrf.mxu0
      %v1382 = vadd.f32 0.0, %v1381
      %1383 = vmatmul.bf16.gmra.mxu0 %v1317
      %v1384 = vpop.f32.mrf.mxu0
      %v1385 = vadd.f32 0.0, %v1384
      %v1386 = vpop.f32.mrf.mxu0
      %v1387 = vadd.f32 0.0, %v1386
      %1388 = vmatmul.bf16.gmra.mxu0 %v1320
      %v1389 = vpop.f32.mrf.mxu0
      %v1390 = vadd.f32 0.0, %v1389
      %v1391 = vpop.f32.mrf.mxu0
      %v1392 = vadd.f32 0.0, %v1391
      %1393 = vmatmul.bf16.gmra.mxu0 %v1323
      %v1394 = vpop.f32.mrf.mxu0
      %v1395 = vadd.f32 0.0, %v1394
      %v1396 = vpop.f32.mrf.mxu0
      %v1397 = vadd.f32 0.0, %v1396
      %1398 = vmatmul.bf16.gmra.mxu0 %v1326
      %v1399 = vpop.f32.mrf.mxu0
      %v1400 = vadd.f32 0.0, %v1399
      %v1401 = vpop.f32.mrf.mxu0
      %v1402 = vadd.f32 0.0, %v1401
      %1403 = vmatmul.bf16.gmra.mxu0 %v1329
      %v1404 = vpop.f32.mrf.mxu0
      %v1405 = vadd.f32 0.0, %v1404
      %v1406 = vpop.f32.mrf.mxu0
      %v1407 = vadd.f32 0.0, %v1406
      %1408 = vmatmul.bf16.gmra.mxu0 %v1332
      %v1409 = vpop.f32.mrf.mxu0
      %v1410 = vadd.f32 0.0, %v1409
      %v1411 = vpop.f32.mrf.mxu0
      %v1412 = vadd.f32 0.0, %v1411
      %1413 = vmatmul.bf16.gmra.mxu0 %v1335
      %v1414 = vpop.f32.mrf.mxu0
      %v1415 = vadd.f32 0.0, %v1414
      %v1416 = vpop.f32.mrf.mxu0
      %v1417 = vadd.f32 0.0, %v1416
      %1418 = vmatmul.bf16.gmra.mxu0 %v1338
      %v1419 = vpop.f32.mrf.mxu0
      %v1420 = vadd.f32 0.0, %v1419
      %v1421 = vpop.f32.mrf.mxu0
      %v1422 = vadd.f32 0.0, %v1421
      %1423 = vmatmul.bf16.gmra.mxu0 %v1341
      %v1424 = vpop.f32.mrf.mxu0
      %v1425 = vadd.f32 0.0, %v1424
      %v1426 = vpop.f32.mrf.mxu0
      %v1427 = vadd.f32 0.0, %v1426
      %1428 = vmatmul.bf16.gmra.mxu0 %v1344
      %v1429 = vpop.f32.mrf.mxu0
      %v1430 = vadd.f32 0.0, %v1429
      %v1431 = vpop.f32.mrf.mxu0
      %v1432 = vadd.f32 0.0, %v1431
      %1433 = vmatmul.bf16.gmra.mxu0 %v1347
      %v1434 = vpop.f32.mrf.mxu0
      %v1435 = vadd.f32 0.0, %v1434
      %v1436 = vpop.f32.mrf.mxu0
      %v1437 = vadd.f32 0.0, %v1436
      %1438 = vmatmul.bf16.gmra.mxu0 %v1350
      %v1439 = vpop.f32.mrf.mxu0
      %v1440 = vadd.f32 0.0, %v1439
      %v1441 = vpop.f32.mrf.mxu0
      %v1442 = vadd.f32 0.0, %v1441
      %1443 = vdwg.mxu0
      %v1444 = vadd.f32 %v1044, %v1365
      %v1445 = vadd.f32 %v1046, %v1367
      %v1446 = vadd.f32 %v1049, %v1370
      %v1447 = vadd.f32 %v1051, %v1372
      %v1448 = vadd.f32 %v1054, %v1375
      %v1449 = vadd.f32 %v1056, %v1377
      %v1450 = vadd.f32 %v1059, %v1380
      %v1451 = vadd.f32 %v1061, %v1382
      %v1452 = vadd.f32 %v1064, %v1385
      %v1453 = vadd.f32 %v1066, %v1387
      %v1454 = vadd.f32 %v1069, %v1390
      %v1455 = vadd.f32 %v1071, %v1392
      %v1456 = vadd.f32 %v1074, %v1395
      %v1457 = vadd.f32 %v1076, %v1397
      %v1458 = vadd.f32 %v1079, %v1400
      %v1459 = vadd.f32 %v1081, %v1402
      %v1460 = vadd.f32 %v1084, %v1405
      %v1461 = vadd.f32 %v1086, %v1407
      %v1462 = vadd.f32 %v1089, %v1410
      %v1463 = vadd.f32 %v1091, %v1412
      %v1464 = vadd.f32 %v1094, %v1415
      %v1465 = vadd.f32 %v1096, %v1417
      %v1466 = vadd.f32 %v1099, %v1420
      %v1467 = vadd.f32 %v1101, %v1422
      %v1468 = vadd.f32 %v1104, %v1425
      %v1469 = vadd.f32 %v1106, %v1427
      %v1470 = vadd.f32 %v1109, %v1430
      %v1471 = vadd.f32 %v1111, %v1432
      %v1472 = vadd.f32 %v1114, %v1435
      %v1473 = vadd.f32 %v1116, %v1437
      %v1474 = vadd.f32 %v1119, %v1440
      %v1475 = vadd.f32 %v1121, %v1442
      %s1476 = scalar_lea.vmem %s247, 6
      %v1477 = vld [vmem:[%s1476] sm:$0x3]
      %v1480 = vunpack.c.l.b16 %v317
      %v1481 = vunpack.c.l.b16 %v318
      %v1482 = vpack.c.b16 %v1481, %v1480
      %v1484 = vsel %vm761, %v1482, 0
      %v1487 = vsel %vm810, %v1477, 0
      %1489 = vmatpush.bf16.msra.mxu0 0
      %1490 = vmatpush.bf16.msra.mxu0 0
      %1491 = vmatpush.bf16.msra.mxu0 0
      %1492 = vmatpush.bf16.msra.mxu0 0
      %1493 = vmatpush.bf16.msra.mxu0 0
      %1494 = vmatpush.bf16.msra.mxu0 0
      %1495 = vmatpush.bf16.msra.mxu0 0
      %1496 = vmatpush.bf16.msra.mxu0 %v1487
      %1497 = vmatmul.bf16.gmra.mxu0 %v987
      %v1498 = vpop.f32.mrf.mxu0
      %v1499 = vadd.f32 0.0, %v1498
      %v1500 = vpop.f32.mrf.mxu0
      %v1501 = vadd.f32 0.0, %v1500
      %1502 = vmatmul.bf16.gmra.mxu0 %v990
      %v1503 = vpop.f32.mrf.mxu0
      %v1504 = vadd.f32 0.0, %v1503
      %v1505 = vpop.f32.mrf.mxu0
      %v1506 = vadd.f32 0.0, %v1505
      %1507 = vmatmul.bf16.gmra.mxu0 %v993
      %v1508 = vpop.f32.mrf.mxu0
      %v1509 = vadd.f32 0.0, %v1508
      %v1510 = vpop.f32.mrf.mxu0
      %v1511 = vadd.f32 0.0, %v1510
      %1512 = vmatmul.bf16.gmra.mxu0 %v996
      %v1513 = vpop.f32.mrf.mxu0
      %v1514 = vadd.f32 0.0, %v1513
      %v1515 = vpop.f32.mrf.mxu0
      %v1516 = vadd.f32 0.0, %v1515
      %1517 = vmatmul.bf16.gmra.mxu0 %v999
      %v1518 = vpop.f32.mrf.mxu0
      %v1519 = vadd.f32 0.0, %v1518
      %v1520 = vpop.f32.mrf.mxu0
      %v1521 = vadd.f32 0.0, %v1520
      %1522 = vmatmul.bf16.gmra.mxu0 %v1002
      %v1523 = vpop.f32.mrf.mxu0
      %v1524 = vadd.f32 0.0, %v1523
      %v1525 = vpop.f32.mrf.mxu0
      %v1526 = vadd.f32 0.0, %v1525
      %1527 = vmatmul.bf16.gmra.mxu0 %v1005
      %v1528 = vpop.f32.mrf.mxu0
      %v1529 = vadd.f32 0.0, %v1528
      %v1530 = vpop.f32.mrf.mxu0
      %v1531 = vadd.f32 0.0, %v1530
      %1532 = vmatmul.bf16.gmra.mxu0 %v1008
      %v1533 = vpop.f32.mrf.mxu0
      %v1534 = vadd.f32 0.0, %v1533
      %v1535 = vpop.f32.mrf.mxu0
      %v1536 = vadd.f32 0.0, %v1535
      %1537 = vmatmul.bf16.gmra.mxu0 %v1011
      %v1538 = vpop.f32.mrf.mxu0
      %v1539 = vadd.f32 0.0, %v1538
      %v1540 = vpop.f32.mrf.mxu0
      %v1541 = vadd.f32 0.0, %v1540
      %1542 = vmatmul.bf16.gmra.mxu0 %v1014
      %v1543 = vpop.f32.mrf.mxu0
      %v1544 = vadd.f32 0.0, %v1543
      %v1545 = vpop.f32.mrf.mxu0
      %v1546 = vadd.f32 0.0, %v1545
      %1547 = vmatmul.bf16.gmra.mxu0 %v1017
      %v1548 = vpop.f32.mrf.mxu0
      %v1549 = vadd.f32 0.0, %v1548
      %v1550 = vpop.f32.mrf.mxu0
      %v1551 = vadd.f32 0.0, %v1550
      %1552 = vmatmul.bf16.gmra.mxu0 %v1020
      %v1553 = vpop.f32.mrf.mxu0
      %v1554 = vadd.f32 0.0, %v1553
      %v1555 = vpop.f32.mrf.mxu0
      %v1556 = vadd.f32 0.0, %v1555
      %1557 = vmatmul.bf16.gmra.mxu0 %v1023
      %v1558 = vpop.f32.mrf.mxu0
      %v1559 = vadd.f32 0.0, %v1558
      %v1560 = vpop.f32.mrf.mxu0
      %v1561 = vadd.f32 0.0, %v1560
      %1562 = vmatmul.bf16.gmra.mxu0 %v1026
      %v1563 = vpop.f32.mrf.mxu0
      %v1564 = vadd.f32 0.0, %v1563
      %v1565 = vpop.f32.mrf.mxu0
      %v1566 = vadd.f32 0.0, %v1565
      %1567 = vmatmul.bf16.gmra.mxu0 %v1029
      %v1568 = vpop.f32.mrf.mxu0
      %v1569 = vadd.f32 0.0, %v1568
      %v1570 = vpop.f32.mrf.mxu0
      %v1571 = vadd.f32 0.0, %v1570
      %1572 = vmatmul.bf16.gmra.mxu0 %v1484
      %v1573 = vpop.f32.mrf.mxu0
      %v1574 = vadd.f32 0.0, %v1573
      %v1575 = vpop.f32.mrf.mxu0
      %v1576 = vadd.f32 0.0, %v1575
      %1577 = vdwg.mxu0
      %v1578 = vadd.f32 %v1444, %v1499
      %v1579 = vadd.f32 %v1445, %v1501
      %v1580 = vadd.f32 %v1446, %v1504
      %v1581 = vadd.f32 %v1447, %v1506
      %v1582 = vadd.f32 %v1448, %v1509
      %v1583 = vadd.f32 %v1449, %v1511
      %v1584 = vadd.f32 %v1450, %v1514
      %v1585 = vadd.f32 %v1451, %v1516
      %v1586 = vadd.f32 %v1452, %v1519
      %v1587 = vadd.f32 %v1453, %v1521
      %v1588 = vadd.f32 %v1454, %v1524
      %v1589 = vadd.f32 %v1455, %v1526
      %v1590 = vadd.f32 %v1456, %v1529
      %v1591 = vadd.f32 %v1457, %v1531
      %v1592 = vadd.f32 %v1458, %v1534
      %v1593 = vadd.f32 %v1459, %v1536
      %v1594 = vadd.f32 %v1460, %v1539
      %v1595 = vadd.f32 %v1461, %v1541
      %v1596 = vadd.f32 %v1462, %v1544
      %v1597 = vadd.f32 %v1463, %v1546
      %v1598 = vadd.f32 %v1464, %v1549
      %v1599 = vadd.f32 %v1465, %v1551
      %v1600 = vadd.f32 %v1466, %v1554
      %v1601 = vadd.f32 %v1467, %v1556
      %v1602 = vadd.f32 %v1468, %v1559
      %v1603 = vadd.f32 %v1469, %v1561
      %v1604 = vadd.f32 %v1470, %v1564
      %v1605 = vadd.f32 %v1471, %v1566
      %v1606 = vadd.f32 %v1472, %v1569
      %v1607 = vadd.f32 %v1473, %v1571
      %v1608 = vadd.f32 %v1474, %v1574
      %v1609 = vadd.f32 %v1475, %v1576
      %v1611 = vshrl.u32 %v317, 16
      %v1613 = vrot.slane %v1611, 4
      %v1614 = vshll.u32 %v317, 16
      %v1616 = vrot.slane %v1614, 5
      %v1617 = vor.u32 %v1613, %v1616
      %v1618 = vrot.slane %v1617, 4
      %v1620 = vshll.u32 %v318, 16
      %v1622 = vrot.slane %v1620, 5
      %v1623 = vsel %vm326, %v1618, %v1622
      %v1624 = vshrl.u32 %v318, 16
      %v1626 = vrot.slane %v1624, 4
      %v1627 = vor.u32 %v1626, %v1622
      %v1628 = vrot.slane %v1627, 4
      %v1630 = vshll.u32 %v319, 16
      %v1632 = vrot.slane %v1630, 5
      %v1633 = vsel %vm326, %v1628, %v1632
      %s1634 = scalar_lea.vmem %s247, 8
      %v1635 = vld [vmem:[%s1634] sm:$0x3]
      %v1636 = vunpack.c.l.b16 %v1623
      %v1637 = vunpack.c.l.b16 %v1633
      %v1638 = vpack.c.b16 %v1637, %v1636
      %v1640 = vsel %vm761, %v1638, 0
      %v1643 = vsel %vm810, %v1635, 0
      %1645 = vmatpush.bf16.msra.mxu0 0
      %1646 = vmatpush.bf16.msra.mxu0 0
      %1647 = vmatpush.bf16.msra.mxu0 0
      %1648 = vmatpush.bf16.msra.mxu0 0
      %1649 = vmatpush.bf16.msra.mxu0 0
      %1650 = vmatpush.bf16.msra.mxu0 0
      %1651 = vmatpush.bf16.msra.mxu0 0
      %1652 = vmatpush.bf16.msra.mxu0 %v1643
      %1653 = vmatmul.bf16.gmra.mxu0 %v766
      %v1654 = vpop.f32.mrf.mxu0
      %v1655 = vadd.f32 0.0, %v1654
      %v1656 = vpop.f32.mrf.mxu0
      %v1657 = vadd.f32 0.0, %v1656
      %1658 = vmatmul.bf16.gmra.mxu0 %v769
      %v1659 = vpop.f32.mrf.mxu0
      %v1660 = vadd.f32 0.0, %v1659
      %v1661 = vpop.f32.mrf.mxu0
      %v1662 = vadd.f32 0.0, %v1661
      %1663 = vmatmul.bf16.gmra.mxu0 %v772
      %v1664 = vpop.f32.mrf.mxu0
      %v1665 = vadd.f32 0.0, %v1664
      %v1666 = vpop.f32.mrf.mxu0
      %v1667 = vadd.f32 0.0, %v1666
      %1668 = vmatmul.bf16.gmra.mxu0 %v775
      %v1669 = vpop.f32.mrf.mxu0
      %v1670 = vadd.f32 0.0, %v1669
      %v1671 = vpop.f32.mrf.mxu0
      %v1672 = vadd.f32 0.0, %v1671
      %1673 = vmatmul.bf16.gmra.mxu0 %v778
      %v1674 = vpop.f32.mrf.mxu0
      %v1675 = vadd.f32 0.0, %v1674
      %v1676 = vpop.f32.mrf.mxu0
      %v1677 = vadd.f32 0.0, %v1676
      %1678 = vmatmul.bf16.gmra.mxu0 %v781
      %v1679 = vpop.f32.mrf.mxu0
      %v1680 = vadd.f32 0.0, %v1679
      %v1681 = vpop.f32.mrf.mxu0
      %v1682 = vadd.f32 0.0, %v1681
      %1683 = vmatmul.bf16.gmra.mxu0 %v784
      %v1684 = vpop.f32.mrf.mxu0
      %v1685 = vadd.f32 0.0, %v1684
      %v1686 = vpop.f32.mrf.mxu0
      %v1687 = vadd.f32 0.0, %v1686
      %1688 = vmatmul.bf16.gmra.mxu0 %v787
      %v1689 = vpop.f32.mrf.mxu0
      %v1690 = vadd.f32 0.0, %v1689
      %v1691 = vpop.f32.mrf.mxu0
      %v1692 = vadd.f32 0.0, %v1691
      %1693 = vmatmul.bf16.gmra.mxu0 %v790
      %v1694 = vpop.f32.mrf.mxu0
      %v1695 = vadd.f32 0.0, %v1694
      %v1696 = vpop.f32.mrf.mxu0
      %v1697 = vadd.f32 0.0, %v1696
      %1698 = vmatmul.bf16.gmra.mxu0 %v793
      %v1699 = vpop.f32.mrf.mxu0
      %v1700 = vadd.f32 0.0, %v1699
      %v1701 = vpop.f32.mrf.mxu0
      %v1702 = vadd.f32 0.0, %v1701
      %1703 = vmatmul.bf16.gmra.mxu0 %v796
      %v1704 = vpop.f32.mrf.mxu0
      %v1705 = vadd.f32 0.0, %v1704
      %v1706 = vpop.f32.mrf.mxu0
      %v1707 = vadd.f32 0.0, %v1706
      %1708 = vmatmul.bf16.gmra.mxu0 %v799
      %v1709 = vpop.f32.mrf.mxu0
      %v1710 = vadd.f32 0.0, %v1709
      %v1711 = vpop.f32.mrf.mxu0
      %v1712 = vadd.f32 0.0, %v1711
      %1713 = vmatmul.bf16.gmra.mxu0 %v802
      %v1714 = vpop.f32.mrf.mxu0
      %v1715 = vadd.f32 0.0, %v1714
      %v1716 = vpop.f32.mrf.mxu0
      %v1717 = vadd.f32 0.0, %v1716
      %1718 = vmatmul.bf16.gmra.mxu0 %v805
      %v1719 = vpop.f32.mrf.mxu0
      %v1720 = vadd.f32 0.0, %v1719
      %v1721 = vpop.f32.mrf.mxu0
      %v1722 = vadd.f32 0.0, %v1721
      %1723 = vmatmul.bf16.gmra.mxu0 %v808
      %v1724 = vpop.f32.mrf.mxu0
      %v1725 = vadd.f32 0.0, %v1724
      %v1726 = vpop.f32.mrf.mxu0
      %v1727 = vadd.f32 0.0, %v1726
      %1728 = vmatmul.bf16.gmra.mxu0 %v1640
      %v1729 = vpop.f32.mrf.mxu0
      %v1730 = vadd.f32 0.0, %v1729
      %v1731 = vpop.f32.mrf.mxu0
      %v1732 = vadd.f32 0.0, %v1731
      %1733 = vdwg.mxu0
      %v1734 = vadd.f32 %v1578, %v1655
      %v1735 = vadd.f32 %v1579, %v1657
      %v1736 = vadd.f32 %v1580, %v1660
      %v1737 = vadd.f32 %v1581, %v1662
      %v1738 = vadd.f32 %v1582, %v1665
      %v1739 = vadd.f32 %v1583, %v1667
      %v1740 = vadd.f32 %v1584, %v1670
      %v1741 = vadd.f32 %v1585, %v1672
      %v1742 = vadd.f32 %v1586, %v1675
      %v1743 = vadd.f32 %v1587, %v1677
      %v1744 = vadd.f32 %v1588, %v1680
      %v1745 = vadd.f32 %v1589, %v1682
      %v1746 = vadd.f32 %v1590, %v1685
      %v1747 = vadd.f32 %v1591, %v1687
      %v1748 = vadd.f32 %v1592, %v1690
      %v1749 = vadd.f32 %v1593, %v1692
      %v1750 = vadd.f32 %v1594, %v1695
      %v1751 = vadd.f32 %v1595, %v1697
      %v1752 = vadd.f32 %v1596, %v1700
      %v1753 = vadd.f32 %v1597, %v1702
      %v1754 = vadd.f32 %v1598, %v1705
      %v1755 = vadd.f32 %v1599, %v1707
      %v1756 = vadd.f32 %v1600, %v1710
      %v1757 = vadd.f32 %v1601, %v1712
      %v1758 = vadd.f32 %v1602, %v1715
      %v1759 = vadd.f32 %v1603, %v1717
      %v1760 = vadd.f32 %v1604, %v1720
      %v1761 = vadd.f32 %v1605, %v1722
      %v1762 = vadd.f32 %v1606, %v1725
      %v1763 = vadd.f32 %v1607, %v1727
      %v1764 = vadd.f32 %v1608, %v1730
      %v1765 = vadd.f32 %v1609, %v1732
      %v1767 = vrot.slane %v317, 5
      %v1768 = vrot.slane %v1767, 4
      %v1769 = vrot.slane %v318, 5
      %v1770 = vsel %vm1141, %v1768, %v1769
      %v1771 = vrot.slane %v1769, 4
      %v1772 = vrot.slane %v319, 5
      %v1773 = vsel %vm1141, %v1771, %v1772
      %s1774 = scalar_lea.vmem %s247, 10
      %v1775 = vld [vmem:[%s1774] sm:$0x3]
      %v1776 = vunpack.c.l.b16 %v1770
      %v1777 = vunpack.c.l.b16 %v1773
      %v1778 = vpack.c.b16 %v1777, %v1776
      %v1780 = vsel %vm761, %v1778, 0
      %v1783 = vsel %vm810, %v1775, 0
      %1785 = vmatpush.bf16.msra.mxu0 0
      %1786 = vmatpush.bf16.msra.mxu0 0
      %1787 = vmatpush.bf16.msra.mxu0 0
      %1788 = vmatpush.bf16.msra.mxu0 0
      %1789 = vmatpush.bf16.msra.mxu0 0
      %1790 = vmatpush.bf16.msra.mxu0 0
      %1791 = vmatpush.bf16.msra.mxu0 0
      %1792 = vmatpush.bf16.msra.mxu0 %v1783
      %1793 = vmatmul.bf16.gmra.mxu0 %v1308
      %v1794 = vpop.f32.mrf.mxu0
      %v1795 = vadd.f32 0.0, %v1794
      %v1796 = vpop.f32.mrf.mxu0
      %v1797 = vadd.f32 0.0, %v1796
      %1798 = vmatmul.bf16.gmra.mxu0 %v1311
      %v1799 = vpop.f32.mrf.mxu0
      %v1800 = vadd.f32 0.0, %v1799
      %v1801 = vpop.f32.mrf.mxu0
      %v1802 = vadd.f32 0.0, %v1801
      %1803 = vmatmul.bf16.gmra.mxu0 %v1314
      %v1804 = vpop.f32.mrf.mxu0
      %v1805 = vadd.f32 0.0, %v1804
      %v1806 = vpop.f32.mrf.mxu0
      %v1807 = vadd.f32 0.0, %v1806
      %1808 = vmatmul.bf16.gmra.mxu0 %v1317
      %v1809 = vpop.f32.mrf.mxu0
      %v1810 = vadd.f32 0.0, %v1809
      %v1811 = vpop.f32.mrf.mxu0
      %v1812 = vadd.f32 0.0, %v1811
      %1813 = vmatmul.bf16.gmra.mxu0 %v1320
      %v1814 = vpop.f32.mrf.mxu0
      %v1815 = vadd.f32 0.0, %v1814
      %v1816 = vpop.f32.mrf.mxu0
      %v1817 = vadd.f32 0.0, %v1816
      %1818 = vmatmul.bf16.gmra.mxu0 %v1323
      %v1819 = vpop.f32.mrf.mxu0
      %v1820 = vadd.f32 0.0, %v1819
      %v1821 = vpop.f32.mrf.mxu0
      %v1822 = vadd.f32 0.0, %v1821
      %1823 = vmatmul.bf16.gmra.mxu0 %v1326
      %v1824 = vpop.f32.mrf.mxu0
      %v1825 = vadd.f32 0.0, %v1824
      %v1826 = vpop.f32.mrf.mxu0
      %v1827 = vadd.f32 0.0, %v1826
      %1828 = vmatmul.bf16.gmra.mxu0 %v1329
      %v1829 = vpop.f32.mrf.mxu0
      %v1830 = vadd.f32 0.0, %v1829
      %v1831 = vpop.f32.mrf.mxu0
      %v1832 = vadd.f32 0.0, %v1831
      %1833 = vmatmul.bf16.gmra.mxu0 %v1332
      %v1834 = vpop.f32.mrf.mxu0
      %v1835 = vadd.f32 0.0, %v1834
      %v1836 = vpop.f32.mrf.mxu0
      %v1837 = vadd.f32 0.0, %v1836
      %1838 = vmatmul.bf16.gmra.mxu0 %v1335
      %v1839 = vpop.f32.mrf.mxu0
      %v1840 = vadd.f32 0.0, %v1839
      %v1841 = vpop.f32.mrf.mxu0
      %v1842 = vadd.f32 0.0, %v1841
      %1843 = vmatmul.bf16.gmra.mxu0 %v1338
      %v1844 = vpop.f32.mrf.mxu0
      %v1845 = vadd.f32 0.0, %v1844
      %v1846 = vpop.f32.mrf.mxu0
      %v1847 = vadd.f32 0.0, %v1846
      %1848 = vmatmul.bf16.gmra.mxu0 %v1341
      %v1849 = vpop.f32.mrf.mxu0
      %v1850 = vadd.f32 0.0, %v1849
      %v1851 = vpop.f32.mrf.mxu0
      %v1852 = vadd.f32 0.0, %v1851
      %1853 = vmatmul.bf16.gmra.mxu0 %v1344
      %v1854 = vpop.f32.mrf.mxu0
      %v1855 = vadd.f32 0.0, %v1854
      %v1856 = vpop.f32.mrf.mxu0
      %v1857 = vadd.f32 0.0, %v1856
      %1858 = vmatmul.bf16.gmra.mxu0 %v1347
      %v1859 = vpop.f32.mrf.mxu0
      %v1860 = vadd.f32 0.0, %v1859
      %v1861 = vpop.f32.mrf.mxu0
      %v1862 = vadd.f32 0.0, %v1861
      %1863 = vmatmul.bf16.gmra.mxu0 %v1350
      %v1864 = vpop.f32.mrf.mxu0
      %v1865 = vadd.f32 0.0, %v1864
      %v1866 = vpop.f32.mrf.mxu0
      %v1867 = vadd.f32 0.0, %v1866
      %1868 = vmatmul.bf16.gmra.mxu0 %v1780
      %v1869 = vpop.f32.mrf.mxu0
      %v1870 = vadd.f32 0.0, %v1869
      %v1871 = vpop.f32.mrf.mxu0
      %v1872 = vadd.f32 0.0, %v1871
      %1873 = vdwg.mxu0
      %v1874 = vadd.f32 %v1734, %v1795
      %v1875 = vadd.f32 %v1735, %v1797
      %v1876 = vadd.f32 %v1736, %v1800
      %v1877 = vadd.f32 %v1737, %v1802
      %v1878 = vadd.f32 %v1738, %v1805
      %v1879 = vadd.f32 %v1739, %v1807
      %v1880 = vadd.f32 %v1740, %v1810
      %v1881 = vadd.f32 %v1741, %v1812
      %v1882 = vadd.f32 %v1742, %v1815
      %v1883 = vadd.f32 %v1743, %v1817
      %v1884 = vadd.f32 %v1744, %v1820
      %v1885 = vadd.f32 %v1745, %v1822
      %v1886 = vadd.f32 %v1746, %v1825
      %v1887 = vadd.f32 %v1747, %v1827
      %v1888 = vadd.f32 %v1748, %v1830
      %v1889 = vadd.f32 %v1749, %v1832
      %v1890 = vadd.f32 %v1750, %v1835
      %v1891 = vadd.f32 %v1751, %v1837
      %v1892 = vadd.f32 %v1752, %v1840
      %v1893 = vadd.f32 %v1753, %v1842
      %v1894 = vadd.f32 %v1754, %v1845
      %v1895 = vadd.f32 %v1755, %v1847
      %v1896 = vadd.f32 %v1756, %v1850
      %v1897 = vadd.f32 %v1757, %v1852
      %v1898 = vadd.f32 %v1758, %v1855
      %v1899 = vadd.f32 %v1759, %v1857
      %v1900 = vadd.f32 %v1760, %v1860
      %v1901 = vadd.f32 %v1761, %v1862
      %v1902 = vadd.f32 %v1762, %v1865
      %v1903 = vadd.f32 %v1763, %v1867
      %v1904 = vadd.f32 %v1764, %v1870
      %v1905 = vadd.f32 %v1765, %v1872
      %s1906 = scalar_lea.vmem %s247, 12
      %v1907 = vld [vmem:[%s1906] sm:$0x3]
      %v1910 = vunpack.c.l.b16 %v320
      %v1911 = vunpack.c.l.b16 %v321
      %v1912 = vpack.c.b16 %v1911, %v1910
      %v1914 = vsel %vm761, %v1912, 0
      %v1917 = vsel %vm810, %v1907, 0
      %1919 = vmatpush.bf16.msra.mxu0 0
      %1920 = vmatpush.bf16.msra.mxu0 0
      %1921 = vmatpush.bf16.msra.mxu0 0
      %1922 = vmatpush.bf16.msra.mxu0 0
      %1923 = vmatpush.bf16.msra.mxu0 0
      %1924 = vmatpush.bf16.msra.mxu0 0
      %1925 = vmatpush.bf16.msra.mxu0 0
      %1926 = vmatpush.bf16.msra.mxu0 %v1917
      %1927 = vmatmul.bf16.gmra.mxu0 %v990
      %v1928 = vpop.f32.mrf.mxu0
      %v1929 = vadd.f32 0.0, %v1928
      %v1930 = vpop.f32.mrf.mxu0
      %v1931 = vadd.f32 0.0, %v1930
      %1932 = vmatmul.bf16.gmra.mxu0 %v993
      %v1933 = vpop.f32.mrf.mxu0
      %v1934 = vadd.f32 0.0, %v1933
      %v1935 = vpop.f32.mrf.mxu0
      %v1936 = vadd.f32 0.0, %v1935
      %1937 = vmatmul.bf16.gmra.mxu0 %v996
      %v1938 = vpop.f32.mrf.mxu0
      %v1939 = vadd.f32 0.0, %v1938
      %v1940 = vpop.f32.mrf.mxu0
      %v1941 = vadd.f32 0.0, %v1940
      %1942 = vmatmul.bf16.gmra.mxu0 %v999
      %v1943 = vpop.f32.mrf.mxu0
      %v1944 = vadd.f32 0.0, %v1943
      %v1945 = vpop.f32.mrf.mxu0
      %v1946 = vadd.f32 0.0, %v1945
      %1947 = vmatmul.bf16.gmra.mxu0 %v1002
      %v1948 = vpop.f32.mrf.mxu0
      %v1949 = vadd.f32 0.0, %v1948
      %v1950 = vpop.f32.mrf.mxu0
      %v1951 = vadd.f32 0.0, %v1950
      %1952 = vmatmul.bf16.gmra.mxu0 %v1005
      %v1953 = vpop.f32.mrf.mxu0
      %v1954 = vadd.f32 0.0, %v1953
      %v1955 = vpop.f32.mrf.mxu0
      %v1956 = vadd.f32 0.0, %v1955
      %1957 = vmatmul.bf16.gmra.mxu0 %v1008
      %v1958 = vpop.f32.mrf.mxu0
      %v1959 = vadd.f32 0.0, %v1958
      %v1960 = vpop.f32.mrf.mxu0
      %v1961 = vadd.f32 0.0, %v1960
      %1962 = vmatmul.bf16.gmra.mxu0 %v1011
      %v1963 = vpop.f32.mrf.mxu0
      %v1964 = vadd.f32 0.0, %v1963
      %v1965 = vpop.f32.mrf.mxu0
      %v1966 = vadd.f32 0.0, %v1965
      %1967 = vmatmul.bf16.gmra.mxu0 %v1014
      %v1968 = vpop.f32.mrf.mxu0
      %v1969 = vadd.f32 0.0, %v1968
      %v1970 = vpop.f32.mrf.mxu0
      %v1971 = vadd.f32 0.0, %v1970
      %1972 = vmatmul.bf16.gmra.mxu0 %v1017
      %v1973 = vpop.f32.mrf.mxu0
      %v1974 = vadd.f32 0.0, %v1973
      %v1975 = vpop.f32.mrf.mxu0
      %v1976 = vadd.f32 0.0, %v1975
      %1977 = vmatmul.bf16.gmra.mxu0 %v1020
      %v1978 = vpop.f32.mrf.mxu0
      %v1979 = vadd.f32 0.0, %v1978
      %v1980 = vpop.f32.mrf.mxu0
      %v1981 = vadd.f32 0.0, %v1980
      %1982 = vmatmul.bf16.gmra.mxu0 %v1023
      %v1983 = vpop.f32.mrf.mxu0
      %v1984 = vadd.f32 0.0, %v1983
      %v1985 = vpop.f32.mrf.mxu0
      %v1986 = vadd.f32 0.0, %v1985
      %1987 = vmatmul.bf16.gmra.mxu0 %v1026
      %v1988 = vpop.f32.mrf.mxu0
      %v1989 = vadd.f32 0.0, %v1988
      %v1990 = vpop.f32.mrf.mxu0
      %v1991 = vadd.f32 0.0, %v1990
      %1992 = vmatmul.bf16.gmra.mxu0 %v1029
      %v1993 = vpop.f32.mrf.mxu0
      %v1994 = vadd.f32 0.0, %v1993
      %v1995 = vpop.f32.mrf.mxu0
      %v1996 = vadd.f32 0.0, %v1995
      %1997 = vmatmul.bf16.gmra.mxu0 %v1484
      %v1998 = vpop.f32.mrf.mxu0
      %v1999 = vadd.f32 0.0, %v1998
      %v2000 = vpop.f32.mrf.mxu0
      %v2001 = vadd.f32 0.0, %v2000
      %2002 = vmatmul.bf16.gmra.mxu0 %v1914
      %v2003 = vpop.f32.mrf.mxu0
      %v2004 = vadd.f32 0.0, %v2003
      %v2005 = vpop.f32.mrf.mxu0
      %v2006 = vadd.f32 0.0, %v2005
      %2007 = vdwg.mxu0
      %v2008 = vadd.f32 %v1874, %v1929
      %v2009 = vadd.f32 %v1875, %v1931
      %v2010 = vadd.f32 %v1876, %v1934
      %v2011 = vadd.f32 %v1877, %v1936
      %v2012 = vadd.f32 %v1878, %v1939
      %v2013 = vadd.f32 %v1879, %v1941
      %v2014 = vadd.f32 %v1880, %v1944
      %v2015 = vadd.f32 %v1881, %v1946
      %v2016 = vadd.f32 %v1882, %v1949
      %v2017 = vadd.f32 %v1883, %v1951
      %v2018 = vadd.f32 %v1884, %v1954
      %v2019 = vadd.f32 %v1885, %v1956
      %v2020 = vadd.f32 %v1886, %v1959
      %v2021 = vadd.f32 %v1887, %v1961
      %v2022 = vadd.f32 %v1888, %v1964
      %v2023 = vadd.f32 %v1889, %v1966
      %v2024 = vadd.f32 %v1890, %v1969
      %v2025 = vadd.f32 %v1891, %v1971
      %v2026 = vadd.f32 %v1892, %v1974
      %v2027 = vadd.f32 %v1893, %v1976
      %v2028 = vadd.f32 %v1894, %v1979
      %v2029 = vadd.f32 %v1895, %v1981
      %v2030 = vadd.f32 %v1896, %v1984
      %v2031 = vadd.f32 %v1897, %v1986
      %v2032 = vadd.f32 %v1898, %v1989
      %v2033 = vadd.f32 %v1899, %v1991
      %v2034 = vadd.f32 %v1900, %v1994
      %v2035 = vadd.f32 %v1901, %v1996
      %v2036 = vadd.f32 %v1902, %v1999
      %v2037 = vadd.f32 %v1903, %v2001
      %v2038 = vadd.f32 %v1904, %v2004
      %v2039 = vadd.f32 %v1905, %v2006
      %v2041 = vshrl.u32 %v320, 16
      %v2043 = vrot.slane %v2041, 4
      %v2044 = vshll.u32 %v320, 16
      %v2046 = vrot.slane %v2044, 5
      %v2047 = vor.u32 %v2043, %v2046
      %v2048 = vrot.slane %v2047, 4
      %v2050 = vshll.u32 %v321, 16
      %v2052 = vrot.slane %v2050, 5
      %v2053 = vsel %vm326, %v2048, %v2052
      %v2054 = vshrl.u32 %v321, 16
      %v2056 = vrot.slane %v2054, 4
      %v2057 = vor.u32 %v2056, %v2052
      %v2058 = vrot.slane %v2057, 4
      %v2060 = vshll.u32 %v322, 16
      %v2062 = vrot.slane %v2060, 5
      %v2063 = vsel %vm326, %v2058, %v2062
      %s2064 = scalar_lea.vmem %s247, 14
      %v2065 = vld [vmem:[%s2064] sm:$0x3]
      %v2066 = vunpack.c.l.b16 %v2053
      %v2067 = vunpack.c.l.b16 %v2063
      %v2068 = vpack.c.b16 %v2067, %v2066
      %v2070 = vsel %vm761, %v2068, 0
      %v2073 = vsel %vm810, %v2065, 0
      %2075 = vmatpush.bf16.msra.mxu0 0
      %2076 = vmatpush.bf16.msra.mxu0 0
      %2077 = vmatpush.bf16.msra.mxu0 0
      %2078 = vmatpush.bf16.msra.mxu0 0
      %2079 = vmatpush.bf16.msra.mxu0 0
      %2080 = vmatpush.bf16.msra.mxu0 0
      %2081 = vmatpush.bf16.msra.mxu0 0
      %2082 = vmatpush.bf16.msra.mxu0 %v2073
      %2083 = vmatmul.bf16.gmra.mxu0 %v769
      %v2084 = vpop.f32.mrf.mxu0
      %v2085 = vadd.f32 0.0, %v2084
      %v2086 = vpop.f32.mrf.mxu0
      %v2087 = vadd.f32 0.0, %v2086
      %2088 = vmatmul.bf16.gmra.mxu0 %v772
      %v2089 = vpop.f32.mrf.mxu0
      %v2090 = vadd.f32 0.0, %v2089
      %v2091 = vpop.f32.mrf.mxu0
      %v2092 = vadd.f32 0.0, %v2091
      %2093 = vmatmul.bf16.gmra.mxu0 %v775
      %v2094 = vpop.f32.mrf.mxu0
      %v2095 = vadd.f32 0.0, %v2094
      %v2096 = vpop.f32.mrf.mxu0
      %v2097 = vadd.f32 0.0, %v2096
      %2098 = vmatmul.bf16.gmra.mxu0 %v778
      %v2099 = vpop.f32.mrf.mxu0
      %v2100 = vadd.f32 0.0, %v2099
      %v2101 = vpop.f32.mrf.mxu0
      %v2102 = vadd.f32 0.0, %v2101
      %2103 = vmatmul.bf16.gmra.mxu0 %v781
      %v2104 = vpop.f32.mrf.mxu0
      %v2105 = vadd.f32 0.0, %v2104
      %v2106 = vpop.f32.mrf.mxu0
      %v2107 = vadd.f32 0.0, %v2106
      %2108 = vmatmul.bf16.gmra.mxu0 %v784
      %v2109 = vpop.f32.mrf.mxu0
      %v2110 = vadd.f32 0.0, %v2109
      %v2111 = vpop.f32.mrf.mxu0
      %v2112 = vadd.f32 0.0, %v2111
      %2113 = vmatmul.bf16.gmra.mxu0 %v787
      %v2114 = vpop.f32.mrf.mxu0
      %v2115 = vadd.f32 0.0, %v2114
      %v2116 = vpop.f32.mrf.mxu0
      %v2117 = vadd.f32 0.0, %v2116
      %2118 = vmatmul.bf16.gmra.mxu0 %v790
      %v2119 = vpop.f32.mrf.mxu0
      %v2120 = vadd.f32 0.0, %v2119
      %v2121 = vpop.f32.mrf.mxu0
      %v2122 = vadd.f32 0.0, %v2121
      %2123 = vmatmul.bf16.gmra.mxu0 %v793
      %v2124 = vpop.f32.mrf.mxu0
      %v2125 = vadd.f32 0.0, %v2124
      %v2126 = vpop.f32.mrf.mxu0
      %v2127 = vadd.f32 0.0, %v2126
      %2128 = vmatmul.bf16.gmra.mxu0 %v796
      %v2129 = vpop.f32.mrf.mxu0
      %v2130 = vadd.f32 0.0, %v2129
      %v2131 = vpop.f32.mrf.mxu0
      %v2132 = vadd.f32 0.0, %v2131
      %2133 = vmatmul.bf16.gmra.mxu0 %v799
      %v2134 = vpop.f32.mrf.mxu0
      %v2135 = vadd.f32 0.0, %v2134
      %v2136 = vpop.f32.mrf.mxu0
      %v2137 = vadd.f32 0.0, %v2136
      %2138 = vmatmul.bf16.gmra.mxu0 %v802
      %v2139 = vpop.f32.mrf.mxu0
      %v2140 = vadd.f32 0.0, %v2139
      %v2141 = vpop.f32.mrf.mxu0
      %v2142 = vadd.f32 0.0, %v2141
      %2143 = vmatmul.bf16.gmra.mxu0 %v805
      %v2144 = vpop.f32.mrf.mxu0
      %v2145 = vadd.f32 0.0, %v2144
      %v2146 = vpop.f32.mrf.mxu0
      %v2147 = vadd.f32 0.0, %v2146
      %2148 = vmatmul.bf16.gmra.mxu0 %v808
      %v2149 = vpop.f32.mrf.mxu0
      %v2150 = vadd.f32 0.0, %v2149
      %v2151 = vpop.f32.mrf.mxu0
      %v2152 = vadd.f32 0.0, %v2151
      %2153 = vmatmul.bf16.gmra.mxu0 %v1640
      %v2154 = vpop.f32.mrf.mxu0
      %v2155 = vadd.f32 0.0, %v2154
      %v2156 = vpop.f32.mrf.mxu0
      %v2157 = vadd.f32 0.0, %v2156
      %2158 = vmatmul.bf16.gmra.mxu0 %v2070
      %v2159 = vpop.f32.mrf.mxu0
      %v2160 = vadd.f32 0.0, %v2159
      %v2161 = vpop.f32.mrf.mxu0
      %v2162 = vadd.f32 0.0, %v2161
      %2163 = vdwg.mxu0
      %v2164 = vadd.f32 %v2008, %v2085
      %v2165 = vadd.f32 %v2009, %v2087
      %v2166 = vadd.f32 %v2010, %v2090
      %v2167 = vadd.f32 %v2011, %v2092
      %v2168 = vadd.f32 %v2012, %v2095
      %v2169 = vadd.f32 %v2013, %v2097
      %v2170 = vadd.f32 %v2014, %v2100
      %v2171 = vadd.f32 %v2015, %v2102
      %v2172 = vadd.f32 %v2016, %v2105
      %v2173 = vadd.f32 %v2017, %v2107
      %v2174 = vadd.f32 %v2018, %v2110
      %v2175 = vadd.f32 %v2019, %v2112
      %v2176 = vadd.f32 %v2020, %v2115
      %v2177 = vadd.f32 %v2021, %v2117
      %v2178 = vadd.f32 %v2022, %v2120
      %v2179 = vadd.f32 %v2023, %v2122
      %v2180 = vadd.f32 %v2024, %v2125
      %v2181 = vadd.f32 %v2025, %v2127
      %v2182 = vadd.f32 %v2026, %v2130
      %v2183 = vadd.f32 %v2027, %v2132
      %v2184 = vadd.f32 %v2028, %v2135
      %v2185 = vadd.f32 %v2029, %v2137
      %v2186 = vadd.f32 %v2030, %v2140
      %v2187 = vadd.f32 %v2031, %v2142
      %v2188 = vadd.f32 %v2032, %v2145
      %v2189 = vadd.f32 %v2033, %v2147
      %v2190 = vadd.f32 %v2034, %v2150
      %v2191 = vadd.f32 %v2035, %v2152
      %v2192 = vadd.f32 %v2036, %v2155
      %v2193 = vadd.f32 %v2037, %v2157
      %v2194 = vadd.f32 %v2038, %v2160
      %v2195 = vadd.f32 %v2039, %v2162
      %v2197 = vrot.slane %v320, 5
      %v2198 = vrot.slane %v2197, 4
      %v2199 = vrot.slane %v321, 5
      %v2200 = vsel %vm1141, %v2198, %v2199
      %v2201 = vrot.slane %v2199, 4
      %v2202 = vrot.slane %v322, 5
      %v2203 = vsel %vm1141, %v2201, %v2202
      %s2204 = scalar_lea.vmem %s247, 16
      %v2205 = vld [vmem:[%s2204] sm:$0x3]
      %v2206 = vunpack.c.l.b16 %v2200
      %v2207 = vunpack.c.l.b16 %v2203
      %v2208 = vpack.c.b16 %v2207, %v2206
      %v2210 = vsel %vm761, %v2208, 0
      %v2213 = vsel %vm810, %v2205, 0
      %2215 = vmatpush.bf16.msra.mxu0 0
      %2216 = vmatpush.bf16.msra.mxu0 0
      %2217 = vmatpush.bf16.msra.mxu0 0
      %2218 = vmatpush.bf16.msra.mxu0 0
      %2219 = vmatpush.bf16.msra.mxu0 0
      %2220 = vmatpush.bf16.msra.mxu0 0
      %2221 = vmatpush.bf16.msra.mxu0 0
      %2222 = vmatpush.bf16.msra.mxu0 %v2213
      %2223 = vmatmul.bf16.gmra.mxu0 %v1311
      %v2224 = vpop.f32.mrf.mxu0
      %v2225 = vadd.f32 0.0, %v2224
      %v2226 = vpop.f32.mrf.mxu0
      %v2227 = vadd.f32 0.0, %v2226
      %2228 = vmatmul.bf16.gmra.mxu0 %v1314
      %v2229 = vpop.f32.mrf.mxu0
      %v2230 = vadd.f32 0.0, %v2229
      %v2231 = vpop.f32.mrf.mxu0
      %v2232 = vadd.f32 0.0, %v2231
      %2233 = vmatmul.bf16.gmra.mxu0 %v1317
      %v2234 = vpop.f32.mrf.mxu0
      %v2235 = vadd.f32 0.0, %v2234
      %v2236 = vpop.f32.mrf.mxu0
      %v2237 = vadd.f32 0.0, %v2236
      %2238 = vmatmul.bf16.gmra.mxu0 %v1320
      %v2239 = vpop.f32.mrf.mxu0
      %v2240 = vadd.f32 0.0, %v2239
      %v2241 = vpop.f32.mrf.mxu0
      %v2242 = vadd.f32 0.0, %v2241
      %2243 = vmatmul.bf16.gmra.mxu0 %v1323
      %v2244 = vpop.f32.mrf.mxu0
      %v2245 = vadd.f32 0.0, %v2244
      %v2246 = vpop.f32.mrf.mxu0
      %v2247 = vadd.f32 0.0, %v2246
      %2248 = vmatmul.bf16.gmra.mxu0 %v1326
      %v2249 = vpop.f32.mrf.mxu0
      %v2250 = vadd.f32 0.0, %v2249
      %v2251 = vpop.f32.mrf.mxu0
      %v2252 = vadd.f32 0.0, %v2251
      %2253 = vmatmul.bf16.gmra.mxu0 %v1329
      %v2254 = vpop.f32.mrf.mxu0
      %v2255 = vadd.f32 0.0, %v2254
      %v2256 = vpop.f32.mrf.mxu0
      %v2257 = vadd.f32 0.0, %v2256
      %2258 = vmatmul.bf16.gmra.mxu0 %v1332
      %v2259 = vpop.f32.mrf.mxu0
      %v2260 = vadd.f32 0.0, %v2259
      %v2261 = vpop.f32.mrf.mxu0
      %v2262 = vadd.f32 0.0, %v2261
      %2263 = vmatmul.bf16.gmra.mxu0 %v1335
      %v2264 = vpop.f32.mrf.mxu0
      %v2265 = vadd.f32 0.0, %v2264
      %v2266 = vpop.f32.mrf.mxu0
      %v2267 = vadd.f32 0.0, %v2266
      %2268 = vmatmul.bf16.gmra.mxu0 %v1338
      %v2269 = vpop.f32.mrf.mxu0
      %v2270 = vadd.f32 0.0, %v2269
      %v2271 = vpop.f32.mrf.mxu0
      %v2272 = vadd.f32 0.0, %v2271
      %2273 = vmatmul.bf16.gmra.mxu0 %v1341
      %v2274 = vpop.f32.mrf.mxu0
      %v2275 = vadd.f32 0.0, %v2274
      %v2276 = vpop.f32.mrf.mxu0
      %v2277 = vadd.f32 0.0, %v2276
      %2278 = vmatmul.bf16.gmra.mxu0 %v1344
      %v2279 = vpop.f32.mrf.mxu0
      %v2280 = vadd.f32 0.0, %v2279
      %v2281 = vpop.f32.mrf.mxu0
      %v2282 = vadd.f32 0.0, %v2281
      %2283 = vmatmul.bf16.gmra.mxu0 %v1347
      %v2284 = vpop.f32.mrf.mxu0
      %v2285 = vadd.f32 0.0, %v2284
      %v2286 = vpop.f32.mrf.mxu0
      %v2287 = vadd.f32 0.0, %v2286
      %2288 = vmatmul.bf16.gmra.mxu0 %v1350
      %v2289 = vpop.f32.mrf.mxu0
      %v2290 = vadd.f32 0.0, %v2289
      %v2291 = vpop.f32.mrf.mxu0
      %v2292 = vadd.f32 0.0, %v2291
      %2293 = vmatmul.bf16.gmra.mxu0 %v1780
      %v2294 = vpop.f32.mrf.mxu0
      %v2295 = vadd.f32 0.0, %v2294
      %v2296 = vpop.f32.mrf.mxu0
      %v2297 = vadd.f32 0.0, %v2296
      %2298 = vmatmul.bf16.gmra.mxu0 %v2210
      %v2299 = vpop.f32.mrf.mxu0
      %v2300 = vadd.f32 0.0, %v2299
      %v2301 = vpop.f32.mrf.mxu0
      %v2302 = vadd.f32 0.0, %v2301
      %2303 = vdwg.mxu0
      %v2304 = vadd.f32 %v2164, %v2225
      %v2305 = vadd.f32 %v2165, %v2227
      %v2306 = vadd.f32 %v2166, %v2230
      %v2307 = vadd.f32 %v2167, %v2232
      %v2308 = vadd.f32 %v2168, %v2235
      %v2309 = vadd.f32 %v2169, %v2237
      %v2310 = vadd.f32 %v2170, %v2240
      %v2311 = vadd.f32 %v2171, %v2242
      %v2312 = vadd.f32 %v2172, %v2245
      %v2313 = vadd.f32 %v2173, %v2247
      %v2314 = vadd.f32 %v2174, %v2250
      %v2315 = vadd.f32 %v2175, %v2252
      %v2316 = vadd.f32 %v2176, %v2255
      %v2317 = vadd.f32 %v2177, %v2257
      %v2318 = vadd.f32 %v2178, %v2260
      %v2319 = vadd.f32 %v2179, %v2262
      %v2320 = vadd.f32 %v2180, %v2265
      %v2321 = vadd.f32 %v2181, %v2267
      %v2322 = vadd.f32 %v2182, %v2270
      %v2323 = vadd.f32 %v2183, %v2272
      %v2324 = vadd.f32 %v2184, %v2275
      %v2325 = vadd.f32 %v2185, %v2277
      %v2326 = vadd.f32 %v2186, %v2280
      %v2327 = vadd.f32 %v2187, %v2282
      %v2328 = vadd.f32 %v2188, %v2285
      %v2329 = vadd.f32 %v2189, %v2287
      %v2330 = vadd.f32 %v2190, %v2290
      %v2331 = vadd.f32 %v2191, %v2292
      %v2332 = vadd.f32 %v2192, %v2295
      %v2333 = vadd.f32 %v2193, %v2297
      %v2334 = vadd.f32 %v2194, %v2300
      %v2335 = vadd.f32 %v2195, %v2302
      %v2336 = vpack.c.bf16 %v2304, %v2304
      %v2337 = vpack.c.bf16 %v2305, %v2305
      %v2338 = vpack.c.bf16 %v2306, %v2306
      %v2339 = vpack.c.bf16 %v2307, %v2307
      %v2340 = vpack.c.bf16 %v2308, %v2308
      %v2341 = vpack.c.bf16 %v2309, %v2309
      %v2342 = vpack.c.bf16 %v2310, %v2310
      %v2343 = vpack.c.bf16 %v2311, %v2311
      %v2344 = vpack.c.bf16 %v2312, %v2312
      %v2345 = vpack.c.bf16 %v2313, %v2313
      %v2346 = vpack.c.bf16 %v2314, %v2314
      %v2347 = vpack.c.bf16 %v2315, %v2315
      %v2348 = vpack.c.bf16 %v2316, %v2316
      %v2349 = vpack.c.bf16 %v2317, %v2317
      %v2350 = vpack.c.bf16 %v2318, %v2318
      %v2351 = vpack.c.bf16 %v2319, %v2319
      %v2352 = vpack.c.bf16 %v2320, %v2320
      %v2353 = vpack.c.bf16 %v2321, %v2321
      %v2354 = vpack.c.bf16 %v2322, %v2322
      %v2355 = vpack.c.bf16 %v2323, %v2323
      %v2356 = vpack.c.bf16 %v2324, %v2324
      %v2357 = vpack.c.bf16 %v2325, %v2325
      %v2358 = vpack.c.bf16 %v2326, %v2326
      %v2359 = vpack.c.bf16 %v2327, %v2327
      %v2360 = vpack.c.bf16 %v2328, %v2328
      %v2361 = vpack.c.bf16 %v2329, %v2329
      %v2362 = vpack.c.bf16 %v2330, %v2330
      %v2363 = vpack.c.bf16 %v2331, %v2331
      %v2364 = vpack.c.bf16 %v2332, %v2332
      %v2365 = vpack.c.bf16 %v2333, %v2333
      %v2366 = vpack.c.bf16 %v2334, %v2334
      %v2367 = vpack.c.bf16 %v2335, %v2335
      %vm2368 = vcmask 257024
      %2369 = vst.msk [vmem:[%s255] sm:$0xf] %vm2368, %v2336
      %2370 = vst.msk [vmem:[%s255 + $0x4] sm:$0xf] %vm2368, %v2337
      %2371 = vst.msk [vmem:[%s255 + $0x8] sm:$0xf] %vm2368, %v2338
      %2372 = vst.msk [vmem:[%s255 + $0xc] sm:$0xf] %vm2368, %v2339
      %2373 = vst.msk [vmem:[%s255 + $0x10] sm:$0xf] %vm2368, %v2340
      %2374 = vst.msk [vmem:[%s255 + $0x14] sm:$0xf] %vm2368, %v2341
      %2375 = vst.msk [vmem:[%s255 + $0x18] sm:$0xf] %vm2368, %v2342
      %2376 = vst.msk [vmem:[%s255 + $0x1c] sm:$0xf] %vm2368, %v2343
      %2377 = vst.msk [vmem:[%s255 + $0x20] sm:$0xf] %vm2368, %v2344
      %2378 = vst.msk [vmem:[%s255 + $0x24] sm:$0xf] %vm2368, %v2345
      %2379 = vst.msk [vmem:[%s255 + $0x28] sm:$0xf] %vm2368, %v2346
      %2380 = vst.msk [vmem:[%s255 + $0x2c] sm:$0xf] %vm2368, %v2347
      %2381 = vst.msk [vmem:[%s255 + $0x30] sm:$0xf] %vm2368, %v2348
      %2382 = vst.msk [vmem:[%s255 + $0x34] sm:$0xf] %vm2368, %v2349
      %2383 = vst.msk [vmem:[%s255 + $0x38] sm:$0xf] %vm2368, %v2350
      %2384 = vst.msk [vmem:[%s255 + $0x3c] sm:$0xf] %vm2368, %v2351
      %2385 = vst.msk [vmem:[%s255 + $0x40] sm:$0xf] %vm2368, %v2352
      %2386 = vst.msk [vmem:[%s255 + $0x44] sm:$0xf] %vm2368, %v2353
      %2387 = vst.msk [vmem:[%s255 + $0x48] sm:$0xf] %vm2368, %v2354
      %2388 = vst.msk [vmem:[%s255 + $0x4c] sm:$0xf] %vm2368, %v2355
      %2389 = vst.msk [vmem:[%s255 + $0x50] sm:$0xf] %vm2368, %v2356
      %2390 = vst.msk [vmem:[%s255 + $0x54] sm:$0xf] %vm2368, %v2357
      %2391 = vst.msk [vmem:[%s255 + $0x58] sm:$0xf] %vm2368, %v2358
      %2392 = vst.msk [vmem:[%s255 + $0x5c] sm:$0xf] %vm2368, %v2359
      %2393 = vst.msk [vmem:[%s255 + $0x60] sm:$0xf] %vm2368, %v2360
      %2394 = vst.msk [vmem:[%s255 + $0x64] sm:$0xf] %vm2368, %v2361
      %2395 = vst.msk [vmem:[%s255 + $0x68] sm:$0xf] %vm2368, %v2362
      %2396 = vst.msk [vmem:[%s255 + $0x6c] sm:$0xf] %vm2368, %v2363
      %2397 = vst.msk [vmem:[%s255 + $0x70] sm:$0xf] %vm2368, %v2364
      %2398 = vst.msk [vmem:[%s255 + $0x74] sm:$0xf] %vm2368, %v2365
      %2399 = vst.msk [vmem:[%s255 + $0x78] sm:$0xf] %vm2368, %v2366
      %2400 = vst.msk [vmem:[%s255 + $0x7c] sm:$0xf] %vm2368, %v2367
      %vm2401 = vcmask 261120
      %v2402 = vsel %vm2401, %v2304, 0.0
      %v2403 = vsel %vm2401, %v2305, 0.0
      %v2404 = vadd.f32 %v2402, %v2403
      %v2405 = vsel %vm2401, %v2306, 0.0
      %v2406 = vadd.f32 %v2404, %v2405
      %v2407 = vsel %vm2401, %v2307, 0.0
      %v2408 = vadd.f32 %v2406, %v2407
      %v2409 = vsel %vm2401, %v2308, 0.0
      %v2410 = vadd.f32 %v2408, %v2409
      %v2411 = vsel %vm2401, %v2309, 0.0
      %v2412 = vadd.f32 %v2410, %v2411
      %v2413 = vsel %vm2401, %v2310, 0.0
      %v2414 = vadd.f32 %v2412, %v2413
      %v2415 = vsel %vm2401, %v2311, 0.0
      %v2416 = vadd.f32 %v2414, %v2415
      %v2417 = vsel %vm2401, %v2312, 0.0
      %v2418 = vadd.f32 %v2416, %v2417
      %v2419 = vsel %vm2401, %v2313, 0.0
      %v2420 = vadd.f32 %v2418, %v2419
      %v2421 = vsel %vm2401, %v2314, 0.0
      %v2422 = vadd.f32 %v2420, %v2421
      %v2423 = vsel %vm2401, %v2315, 0.0
      %v2424 = vadd.f32 %v2422, %v2423
      %v2425 = vsel %vm2401, %v2316, 0.0
      %v2426 = vadd.f32 %v2424, %v2425
      %v2427 = vsel %vm2401, %v2317, 0.0
      %v2428 = vadd.f32 %v2426, %v2427
      %v2429 = vsel %vm2401, %v2318, 0.0
      %v2430 = vadd.f32 %v2428, %v2429
      %v2431 = vsel %vm2401, %v2319, 0.0
      %v2432 = vadd.f32 %v2430, %v2431
      %v2433 = vsel %vm2401, %v2320, 0.0
      %v2434 = vadd.f32 %v2432, %v2433
      %v2435 = vsel %vm2401, %v2321, 0.0
      %v2436 = vadd.f32 %v2434, %v2435
      %v2437 = vsel %vm2401, %v2322, 0.0
      %v2438 = vadd.f32 %v2436, %v2437
      %v2439 = vsel %vm2401, %v2323, 0.0
      %v2440 = vadd.f32 %v2438, %v2439
      %v2441 = vsel %vm2401, %v2324, 0.0
      %v2442 = vadd.f32 %v2440, %v2441
      %v2443 = vsel %vm2401, %v2325, 0.0
      %v2444 = vadd.f32 %v2442, %v2443
      %v2445 = vsel %vm2401, %v2326, 0.0
      %v2446 = vadd.f32 %v2444, %v2445
      %v2447 = vsel %vm2401, %v2327, 0.0
      %v2448 = vadd.f32 %v2446, %v2447
      %v2449 = vsel %vm2401, %v2328, 0.0
      %v2450 = vadd.f32 %v2448, %v2449
      %v2451 = vsel %vm2401, %v2329, 0.0
      %v2452 = vadd.f32 %v2450, %v2451
      %v2453 = vsel %vm2401, %v2330, 0.0
      %v2454 = vadd.f32 %v2452, %v2453
      %v2455 = vsel %vm2401, %v2331, 0.0
      %v2456 = vadd.f32 %v2454, %v2455
      %v2457 = vsel %vm2401, %v2332, 0.0
      %v2458 = vadd.f32 %v2456, %v2457
      %v2459 = vsel %vm2401, %v2333, 0.0
      %v2460 = vadd.f32 %v2458, %v2459
      %v2461 = vsel %vm2401, %v2334, 0.0
      %v2462 = vadd.f32 %v2460, %v2461
      %v2463 = vsel %vm2401, %v2335, 0.0
      %v2464 = vadd.f32 %v2462, %v2463
      %v2465 = vrot.slane %v2464, 4
      %v2466 = vadd.f32 %v2464, %v2465
      %v2467 = vrot.slane %v2466, 2
      %v2468 = vadd.f32 %v2466, %v2467
      %v2469 = vrot.slane %v2468, 1
      %v2470 = vadd.f32 %v2468, %v2469
      %vm2471 = vcmask 253952
      %2472 = vst.msk [vmem:[%s261] sm:$0x1] %vm2471, %v2470
      %v2473 = vmul.f32 %v2304, %v2304
      %v2474 = vmul.f32 %v2305, %v2305
      %v2475 = vmul.f32 %v2306, %v2306
      %v2476 = vmul.f32 %v2307, %v2307
      %v2477 = vmul.f32 %v2308, %v2308
      %v2478 = vmul.f32 %v2309, %v2309
      %v2479 = vmul.f32 %v2310, %v2310
      %v2480 = vmul.f32 %v2311, %v2311
      %v2481 = vmul.f32 %v2312, %v2312
      %v2482 = vmul.f32 %v2313, %v2313
      %v2483 = vmul.f32 %v2314, %v2314
      %v2484 = vmul.f32 %v2315, %v2315
      %v2485 = vmul.f32 %v2316, %v2316
      %v2486 = vmul.f32 %v2317, %v2317
      %v2487 = vmul.f32 %v2318, %v2318
      %v2488 = vmul.f32 %v2319, %v2319
      %v2489 = vmul.f32 %v2320, %v2320
      %v2490 = vmul.f32 %v2321, %v2321
      %v2491 = vmul.f32 %v2322, %v2322
      %v2492 = vmul.f32 %v2323, %v2323
      %v2493 = vmul.f32 %v2324, %v2324
      %v2494 = vmul.f32 %v2325, %v2325
      %v2495 = vmul.f32 %v2326, %v2326
      %v2496 = vmul.f32 %v2327, %v2327
      %v2497 = vmul.f32 %v2328, %v2328
      %v2498 = vmul.f32 %v2329, %v2329
      %v2499 = vmul.f32 %v2330, %v2330
      %v2500 = vmul.f32 %v2331, %v2331
      %v2501 = vmul.f32 %v2332, %v2332
      %v2502 = vmul.f32 %v2333, %v2333
      %v2503 = vmul.f32 %v2334, %v2334
      %v2504 = vmul.f32 %v2335, %v2335
      %v2505 = vsel %vm2401, %v2473, 0.0
      %v2506 = vsel %vm2401, %v2474, 0.0
      %v2507 = vadd.f32 %v2505, %v2506
      %v2508 = vsel %vm2401, %v2475, 0.0
      %v2509 = vadd.f32 %v2507, %v2508
      %v2510 = vsel %vm2401, %v2476, 0.0
      %v2511 = vadd.f32 %v2509, %v2510
      %v2512 = vsel %vm2401, %v2477, 0.0
      %v2513 = vadd.f32 %v2511, %v2512
      %v2514 = vsel %vm2401, %v2478, 0.0
      %v2515 = vadd.f32 %v2513, %v2514
      %v2516 = vsel %vm2401, %v2479, 0.0
      %v2517 = vadd.f32 %v2515, %v2516
      %v2518 = vsel %vm2401, %v2480, 0.0
      %v2519 = vadd.f32 %v2517, %v2518
      %v2520 = vsel %vm2401, %v2481, 0.0
      %v2521 = vadd.f32 %v2519, %v2520
      %v2522 = vsel %vm2401, %v2482, 0.0
      %v2523 = vadd.f32 %v2521, %v2522
      %v2524 = vsel %vm2401, %v2483, 0.0
      %v2525 = vadd.f32 %v2523, %v2524
      %v2526 = vsel %vm2401, %v2484, 0.0
      %v2527 = vadd.f32 %v2525, %v2526
      %v2528 = vsel %vm2401, %v2485, 0.0
      %v2529 = vadd.f32 %v2527, %v2528
      %v2530 = vsel %vm2401, %v2486, 0.0
      %v2531 = vadd.f32 %v2529, %v2530
      %v2532 = vsel %vm2401, %v2487, 0.0
      %v2533 = vadd.f32 %v2531, %v2532
      %v2534 = vsel %vm2401, %v2488, 0.0
      %v2535 = vadd.f32 %v2533, %v2534
      %v2536 = vsel %vm2401, %v2489, 0.0
      %v2537 = vadd.f32 %v2535, %v2536
      %v2538 = vsel %vm2401, %v2490, 0.0
      %v2539 = vadd.f32 %v2537, %v2538
      %v2540 = vsel %vm2401, %v2491, 0.0
      %v2541 = vadd.f32 %v2539, %v2540
      %v2542 = vsel %vm2401, %v2492, 0.0
      %v2543 = vadd.f32 %v2541, %v2542
      %v2544 = vsel %vm2401, %v2493, 0.0
      %v2545 = vadd.f32 %v2543, %v2544
      %v2546 = vsel %vm2401, %v2494, 0.0
      %v2547 = vadd.f32 %v2545, %v2546
      %v2548 = vsel %vm2401, %v2495, 0.0
      %v2549 = vadd.f32 %v2547, %v2548
      %v2550 = vsel %vm2401, %v2496, 0.0
      %v2551 = vadd.f32 %v2549, %v2550
      %v2552 = vsel %vm2401, %v2497, 0.0
      %v2553 = vadd.f32 %v2551, %v2552
      %v2554 = vsel %vm2401, %v2498, 0.0
      %v2555 = vadd.f32 %v2553, %v2554
      %v2556 = vsel %vm2401, %v2499, 0.0
      %v2557 = vadd.f32 %v2555, %v2556
      %v2558 = vsel %vm2401, %v2500, 0.0
      %v2559 = vadd.f32 %v2557, %v2558
      %v2560 = vsel %vm2401, %v2501, 0.0
      %v2561 = vadd.f32 %v2559, %v2560
      %v2562 = vsel %vm2401, %v2502, 0.0
      %v2563 = vadd.f32 %v2561, %v2562
      %v2564 = vsel %vm2401, %v2503, 0.0
      %v2565 = vadd.f32 %v2563, %v2564
      %v2566 = vsel %vm2401, %v2504, 0.0
      %v2567 = vadd.f32 %v2565, %v2566
      %v2568 = vrot.slane %v2567, 4
      %v2569 = vadd.f32 %v2567, %v2568
      %v2570 = vrot.slane %v2569, 2
      %v2571 = vadd.f32 %v2569, %v2570
      %v2572 = vrot.slane %v2571, 1
      %v2573 = vadd.f32 %v2571, %v2572
      %2574 = vst.msk [vmem:[%s267] sm:$0x1] %vm2471, %v2573
      %p2575 = scmp.lt.s32.totalorder %s20, 1
      %s2576 = scalar_select %p2575, %s20, 1
      %p2577 = scmp.lt.s32.totalorder %s21, 0
      %s2578 = scalar_select %p2577, %s21, 0
      %s2579 = smul.addr %s2576, 32
      %s2580 = sadd.s32 %s2578, %s2579
      %s2581 = smul.addr %s2580, 4
      %s2582 = scalar_lea.vmem %s2, %s2581
      %p2583 = scmp.lt.s32.totalorder %s20, 1
      %s2584 = scalar_select %p2583, %s20, 1
      %p2585 = scmp.lt.s32.totalorder %s21, 0
      %s2586 = scalar_select %p2585, %s21, 0
      %s2587 = sadd.s32 %s2586, %s2584
      %s2588 = scalar_lea.vmem %s3, %s2587
      %p2589 = scmp.lt.s32.totalorder %s20, 1
      %s2590 = scalar_select %p2589, %s20, 1
      %p2591 = scmp.lt.s32.totalorder %s21, 0
      %s2592 = scalar_select %p2591, %s21, 0
      %s2593 = sadd.s32 %s2592, %s2590
      %s2594 = scalar_lea.vmem %s4, %s2593
      // Predicated region
      $region29: #{conv_block_apply.4} parent=27 // pred_check
        %p2595 = pneg %p100
      $region30: #{conv_block_apply.4} parent=27 // pred_check_branch
        %2597 = sbr.rel (%p2595) target = $region32
      $region31: #{conv_block_apply.4} parent=27 // pred_region
        _
      $region32: #{conv_block_apply.4} parent=27 // pred_fallthru
        _
      // Predicated region
      $region33: #{conv_block_apply.4} parent=27 // pred_check
        %p2598 = pneg %p128
      $region34: #{conv_block_apply.4} parent=27 // pred_check_branch
        %2600 = sbr.rel (%p2598) target = $region36
      $region35: #{conv_block_apply.4} parent=27 // pred_region
        _
      $region36: #{conv_block_apply.4} parent=27 // pred_fallthru
        _
      // Predicated region
      $region37: #{conv_block_apply.4} parent=27 // pred_check
        %p2601 = pneg %p156
      $region38: #{conv_block_apply.4} parent=27 // pred_check_branch
        %2603 = sbr.rel (%p2601) target = $region40
      $region39: #{conv_block_apply.4} parent=27 // pred_region
        _
      $region40: #{conv_block_apply.4} parent=27 // pred_fallthru
        _
    $region28: #{conv_block_apply.4} parent=5 // pred_fallthru
      _
    %p2604 = scmp.le.s32.totalorder 2, %s11
    // Predicated region
    $region41: #{conv_block_apply.4} parent=5 // pred_check
      %p2605 = pneg %p2604
    $region42: #{conv_block_apply.4} parent=5 // pred_check_branch
      %2607 = sbr.rel (%p2605) target = $region44
    $region43: #{conv_block_apply.4} parent=5 // pred_region
      %s2608 = ssub.s32 %s11, 2
      // Predicated region
      $region45: #{conv_block_apply.4} parent=43 // pred_check
        %p2609 = pneg %p106
      $region46: #{conv_block_apply.4} parent=43 // pred_check_branch
        %2611 = sbr.rel (%p2609) target = $region48
      $region47: #{conv_block_apply.4} parent=43 // pred_region
        %p2612 = scmp.lt.s32.totalorder %s22, 1
        %s2613 = scalar_select %p2612, %s22, 1
        %p2614 = scmp.lt.s32.totalorder %s23, 0
        %s2615 = scalar_select %p2614, %s23, 0
        %s2616 = smul.addr %s2613, 32
        %s2617 = sadd.s32 %s2615, %s2616
        %s2618 = smul.addr %s2617, 4
        %s2619 = scalar_lea.vmem %s2, %s2618
      $region48: #{conv_block_apply.4} parent=43 // pred_fallthru
        _
      // Predicated region
      $region49: #{conv_block_apply.4} parent=43 // pred_check
        %p2620 = pneg %p134
      $region50: #{conv_block_apply.4} parent=43 // pred_check_branch
        %2622 = sbr.rel (%p2620) target = $region52
      $region51: #{conv_block_apply.4} parent=43 // pred_region
        %p2623 = scmp.lt.s32.totalorder %s22, 1
        %s2624 = scalar_select %p2623, %s22, 1
        %p2625 = scmp.lt.s32.totalorder %s23, 0
        %s2626 = scalar_select %p2625, %s23, 0
        %s2627 = sadd.s32 %s2626, %s2624
        %s2628 = scalar_lea.vmem %s3, %s2627
      $region52: #{conv_block_apply.4} parent=43 // pred_fallthru
        _
      // Predicated region
      $region53: #{conv_block_apply.4} parent=43 // pred_check
        %p2629 = pneg %p162
      $region54: #{conv_block_apply.4} parent=43 // pred_check_branch
        %2631 = sbr.rel (%p2629) target = $region56
      $region55: #{conv_block_apply.4} parent=43 // pred_region
        %p2632 = scmp.lt.s32.totalorder %s22, 1
        %s2633 = scalar_select %p2632, %s22, 1
        %p2634 = scmp.lt.s32.totalorder %s23, 0
        %s2635 = scalar_select %p2634, %s23, 0
        %s2636 = sadd.s32 %s2635, %s2633
        %s2637 = scalar_lea.vmem %s4, %s2636
      $region56: #{conv_block_apply.4} parent=43 // pred_fallthru
        _
    $region44: #{conv_block_apply.4} parent=5 // pred_fallthru
      _
  $region6: #{conv_block_apply.4} parent=0 // loop_footer
    %s15 = sadd.s32 1, %s11
  $region7: #{conv_block_apply.4} parent=0 // loop_footer_branch
    %10 = sbr.rel target = $region3
  $region8: #{conv_block_apply.4} parent=0 // loop_exit
    _

// kernel: conv_block_apply.7
$region0: #{conv_block_apply.7}
  #allocation0 [shape = 'u32[]', space=smem, size = 0x4, offset = 0x4, fixed_abs, tag = 'smem constant byte address 0x4 - core index']
  #allocation1 [shape = 'u32[72,128]{1,0:T(1,128)}', space=vmem, size = 0x9000, scoped, tag = 'internal scratch']
  %s0 = inlined_call_operand.vmem [shape: bf16[512,32], index: 0, kind: input, shape index: {}]
  %s1 = inlined_call_operand.vmem [shape: f32[1,32], index: 1, kind: input, shape index: {}]
  %s2 = inlined_call_operand.vmem [shape: f32[1,32], index: 2, kind: input, shape index: {}]
  %s3 = inlined_call_operand.hbm [shape: f32[512,32], index: 3, kind: output, shape index: {}]
  %s4 = sld [smem:[#allocation0]]
  $region45: #{conv_block_apply.7} parent=0
    _
  %s6 = ssub.s32 1, %s4
  %s7 = scalar_select 0, %s6, %s4
  $region1: #{conv_block_apply.7} parent=0
    #allocation2 [shape = 'u8[262144]{0}', space=vmem, size = 0x40000, scoped, tag = 'output window, operand 0']
    #allocation3 [shape = 's32[2]{0}', space=sflag, size = 0x8, scoped, tag = 'scoped memory for conv_block_apply.7']
    %8 = vsyncpa [#allocation3], 0
    %s9 = scalar_lea.sflag [#allocation3], 1
    %10 = vsyncpa %s9, 0
    loop: start=0, step=1, limit=4
    $region2: #{conv_block_apply.7} parent=1 // loop_pre_header
      _
    $region3: #{conv_block_apply.7} parent=1 // loop_header
      %s12 = sphi 0, %s16
      %p13 = scmp.ge.s32.totalorder %s12, 4
      %s22 = sphi 0, %s24
      %s25 = sphi 0, %s22
      %s26 = sphi 0, %s25
      %s42 = sphi 0, %s26
      %s46 = sphi 0, %s46
      %s48 = sphi 0, %s46
      %s49 = sphi 0, %s48
      %s63 = sphi 0, %s49
      %s67 = sphi 0, %s67
      %s69 = sphi 0, %s67
      %s70 = sphi 0, %s69
      %s84 = sphi 0, %s70
      %s90 = sphi 0, %s92
      %s93 = sphi 0, %s90
      %s94 = sphi 0, %s93
      %s110 = sphi 0, %s94
    $region4: #{conv_block_apply.7} parent=1 // loop_header_branch
      %15 = sbr.rel (%p13) target = $region8
    $region5: #{conv_block_apply.7} parent=1 // loop_body
      %s17 = ssub.s32 %s12, 1
      %s18 = ssub.s32 %s12, 2
      %s19 = sadd.s32 %s12, 1
      %s20 = ssub.s32 %s12, %s19
      %p21 = scmp.eq.s32.totalorder %s20, 0
      %s23 = sadd.s32 %s22, 1
      %s24 = scalar_select %p21, %s22, %s23
      %p27 = pneg %p21
      %p28 = scmp.eq.s32.totalorder %s12, 1
      %p29 = por %p27, %p28
      %p30 = scmp.ne.s32.totalorder %s22, %s25
      %p31 = scmp.eq.s32.totalorder %s12, 0
      %p32 = por %p30, %p31
      %p33 = scmp.ne.s32.totalorder %s22, %s25
      %p34 = scmp.eq.s32.totalorder %s17, 1
      %p35 = por %p33, %p34
      %p36 = scmp.ne.s32.totalorder %s25, %s26
      %p37 = scmp.eq.s32.totalorder %s17, 0
      %p38 = por %p36, %p37
      %p39 = scmp.ne.s32.totalorder %s25, %s26
      %p40 = scmp.eq.s32.totalorder %s18, 1
      %p41 = por %p39, %p40
      %p43 = scmp.ne.s32.totalorder %s26, %s42
      %p44 = scmp.eq.s32.totalorder %s18, 0
      %p45 = por %p43, %p44
      %s47 = sadd.s32 %s46, 1
      %p50 = scmp.eq.s32.totalorder %s12, 1
      %p51 = scmp.ne.s32.totalorder %s46, %s48
      %p52 = scmp.eq.s32.totalorder %s12, 0
      %p53 = por %p51, %p52
      %p54 = scmp.ne.s32.totalorder %s46, %s48
      %p55 = scmp.eq.s32.totalorder %s17, 1
      %p56 = por %p54, %p55
      %p57 = scmp.ne.s32.totalorder %s48, %s49
      %p58 = scmp.eq.s32.totalorder %s17, 0
      %p59 = por %p57, %p58
      %p60 = scmp.ne.s32.totalorder %s48, %s49
      %p61 = scmp.eq.s32.totalorder %s18, 1
      %p62 = por %p60, %p61
      %p64 = scmp.ne.s32.totalorder %s49, %s63
      %p65 = scmp.eq.s32.totalorder %s18, 0
      %p66 = por %p64, %p65
      %s68 = sadd.s32 %s67, 1
      %p71 = scmp.eq.s32.totalorder %s12, 1
      %p72 = scmp.ne.s32.totalorder %s67, %s69
      %p73 = scmp.eq.s32.totalorder %s12, 0
      %p74 = por %p72, %p73
      %p75 = scmp.ne.s32.totalorder %s67, %s69
      %p76 = scmp.eq.s32.totalorder %s17, 1
      %p77 = por %p75, %p76
      %p78 = scmp.ne.s32.totalorder %s69, %s70
      %p79 = scmp.eq.s32.totalorder %s17, 0
      %p80 = por %p78, %p79
      %p81 = scmp.ne.s32.totalorder %s69, %s70
      %p82 = scmp.eq.s32.totalorder %s18, 1
      %p83 = por %p81, %p82
      %p85 = scmp.ne.s32.totalorder %s70, %s84
      %p86 = scmp.eq.s32.totalorder %s18, 0
      %p87 = por %p85, %p86
      %s88 = ssub.s32 %s12, %s19
      %p89 = scmp.eq.s32.totalorder %s88, 0
      %s91 = sadd.s32 %s90, 1
      %s92 = scalar_select %p89, %s90, %s91
      %p95 = pneg %p89
      %p96 = scmp.eq.s32.totalorder %s12, 1
      %p97 = por %p95, %p96
      %p98 = scmp.ne.s32.totalorder %s90, %s93
      %p99 = scmp.eq.s32.totalorder %s12, 0
      %p100 = por %p98, %p99
      %p101 = scmp.ne.s32.totalorder %s90, %s93
      %p102 = scmp.eq.s32.totalorder %s17, 1
      %p103 = por %p101, %p102
      %p104 = scmp.ne.s32.totalorder %s93, %s94
      %p105 = scmp.eq.s32.totalorder %s17, 0
      %p106 = por %p104, %p105
      %p107 = scmp.ne.s32.totalorder %s93, %s94
      %p108 = scmp.eq.s32.totalorder %s18, 1
      %p109 = por %p107, %p108
      %p111 = scmp.ne.s32.totalorder %s94, %s110
      %p112 = scmp.eq.s32.totalorder %s18, 0
      %p113 = por %p111, %p112
      %p114 = scmp.le.s32.totalorder 1, %s12
      %p115 = scmp.lt.s32.totalorder %s12, 3
      %p116 = pnand %p114, %p115
      %p117 = pneg %p116
      // Predicated region
      $region9: #{conv_block_apply.7} parent=5 // pred_check
        _
      $region10: #{conv_block_apply.7} parent=5 // pred_check_branch
        %119 = sbr.rel (%p116) target = $region12
      $region11: #{conv_block_apply.7} parent=5 // pred_region
        %s120 = ssub.s32 %s12, 1
        // Predicated region
        $region13: #{conv_block_apply.7} parent=11 // pred_check
          %p121 = pneg %p59
        $region14: #{conv_block_apply.7} parent=11 // pred_check_branch
          %123 = sbr.rel (%p121) target = $region16
        $region15: #{conv_block_apply.7} parent=11 // pred_region
          _
        $region16: #{conv_block_apply.7} parent=11 // pred_fallthru
          _
        // Predicated region
        $region17: #{conv_block_apply.7} parent=11 // pred_check
          %p124 = pneg %p80
        $region18: #{conv_block_apply.7} parent=11 // pred_check_branch
          %126 = sbr.rel (%p124) target = $region20
        $region19: #{conv_block_apply.7} parent=11 // pred_region
          _
        $region20: #{conv_block_apply.7} parent=11 // pred_fallthru
          _
      $region12: #{conv_block_apply.7} parent=5 // pred_fallthru
        _
      %p127 = scmp.lt.s32.totalorder %s12, 2
      // Predicated region
      $region21: #{conv_block_apply.7} parent=5 // pred_check
        %p128 = pneg %p127
      $region22: #{conv_block_apply.7} parent=5 // pred_check_branch
        %130 = sbr.rel (%p128) target = $region24
      $region23: #{conv_block_apply.7} parent=5 // pred_region
        // Predicated region
        $region25: #{conv_block_apply.7} parent=23 // pred_check
          %p131 = pneg %p32
        $region26: #{conv_block_apply.7} parent=23 // pred_check_branch
          %133 = sbr.rel (%p131) target = $region28
        $region27: #{conv_block_apply.7} parent=23 // pred_region
          %s134 = smul.u32 32, %s12
          %p135 = scmp.lt.s32.totalorder %s134, 63
          %s136 = scalar_select %p135, %s134, 63
          %s137 = smul.addr %s136, 4
          %s138 = scalar_lea.vmem %s0, %s137
          %s139 = smul.u32 32, %s12
        $region28: #{conv_block_apply.7} parent=23 // pred_fallthru
          _
      $region24: #{conv_block_apply.7} parent=5 // pred_fallthru
        _
      %p140 = scmp.le.s32.totalorder 1, %s12
      %p141 = scmp.lt.s32.totalorder %s12, 3
      %p142 = pnand %p140, %p141
      %p143 = pneg %p142
      // Predicated region
      $region29: #{conv_block_apply.7} parent=5 // pred_check
        _
      $region30: #{conv_block_apply.7} parent=5 // pred_check_branch
        %145 = sbr.rel (%p142) target = $region32
      $region31: #{conv_block_apply.7} parent=5 // pred_region
        %s146 = ssub.s32 %s12, 1
        %s147 = smul.u32 32, %s17
        %p148 = scmp.lt.s32.totalorder %s147, 63
        %s149 = scalar_select %p148, %s147, 63
        %s150 = smul.addr %s149, 4
        %s151 = scalar_lea.vmem %s0, %s150
        %p152 = pneg %p38
        %p153 = pneg %p35
        %p154 = pneg %p59
        %p155 = pneg %p56
        %p156 = pneg %p80
        %p157 = pneg %p77
        %p158 = pneg %p106
        %p159 = pneg %p103
        %s160 = sand.u32 %s93, 1
        %s161 = scalar_lea.sflag [#allocation3], %s160
        %s162 = sand.u32 %s93, 1
        %s163 = smul.addr %s162, 256
        %s164 = scalar_lea.vmem [#allocation2], %s163
        %s165 = smul.u32 32, %s17
        %p166 = scmp.lt.s32.totalorder %s165, 63
        %s167 = scalar_select %p166, %s165, 63
        %s168 = smul.addr %s167, 4
        %s169 = scalar_lea.vmem %s0, %s168
        %s170 = smul.u32 32, %s17
        %s171 = smul.u32 32, %s17
        %v172 = vld [vmem:[%s169] sm:$0xf]
        %v173 = vld [vmem:[%s169 + $0x4] sm:$0xf]
        %v174 = vld [vmem:[%s169 + $0x8] sm:$0xf]
        %v175 = vld [vmem:[%s169 + $0xc] sm:$0xf]
        %v176 = vld [vmem:[%s169 + $0x10] sm:$0xf]
        %v177 = vld [vmem:[%s169 + $0x14] sm:$0xf]
        %v178 = vld [vmem:[%s169 + $0x18] sm:$0xf]
        %v179 = vld [vmem:[%s169 + $0x1c] sm:$0xf]
        %v180 = vld [vmem:[%s169 + $0x20] sm:$0xf]
        %v181 = vld [vmem:[%s169 + $0x24] sm:$0xf]
        %v182 = vld [vmem:[%s169 + $0x28] sm:$0xf]
        %v183 = vld [vmem:[%s169 + $0x2c] sm:$0xf]
        %v184 = vld [vmem:[%s169 + $0x30] sm:$0xf]
        %v185 = vld [vmem:[%s169 + $0x34] sm:$0xf]
        %v186 = vld [vmem:[%s169 + $0x38] sm:$0xf]
        %v187 = vld [vmem:[%s169 + $0x3c] sm:$0xf]
        %v188 = vld [vmem:[%s169 + $0x40] sm:$0xf]
        %v189 = vld [vmem:[%s169 + $0x44] sm:$0xf]
        %v190 = vld [vmem:[%s169 + $0x48] sm:$0xf]
        %v191 = vld [vmem:[%s169 + $0x4c] sm:$0xf]
        %v192 = vld [vmem:[%s169 + $0x50] sm:$0xf]
        %v193 = vld [vmem:[%s169 + $0x54] sm:$0xf]
        %v194 = vld [vmem:[%s169 + $0x58] sm:$0xf]
        %v195 = vld [vmem:[%s169 + $0x5c] sm:$0xf]
        %v196 = vld [vmem:[%s169 + $0x60] sm:$0xf]
        %v197 = vld [vmem:[%s169 + $0x64] sm:$0xf]
        %v198 = vld [vmem:[%s169 + $0x68] sm:$0xf]
        %v199 = vld [vmem:[%s169 + $0x6c] sm:$0xf]
        %v200 = vld [vmem:[%s169 + $0x70] sm:$0xf]
        %v201 = vld [vmem:[%s169 + $0x74] sm:$0xf]
        %v202 = vld [vmem:[%s169 + $0x78] sm:$0xf]
        %v203 = vld [vmem:[%s169 + $0x7c] sm:$0xf]
        %v204 = vunpack.c.l.bf16 %v172
        %v205 = vunpack.c.l.bf16 %v173
        %v206 = vunpack.c.l.bf16 %v174
        %v207 = vunpack.c.l.bf16 %v175
        %v208 = vunpack.c.l.bf16 %v176
        %v209 = vunpack.c.l.bf16 %v177
        %v210 = vunpack.c.l.bf16 %v178
        %v211 = vunpack.c.l.bf16 %v179
        %v212 = vunpack.c.l.bf16 %v180
        %v213 = vunpack.c.l.bf16 %v181
        %v214 = vunpack.c.l.bf16 %v182
        %v215 = vunpack.c.l.bf16 %v183
        %v216 = vunpack.c.l.bf16 %v184
        %v217 = vunpack.c.l.bf16 %v185
        %v218 = vunpack.c.l.bf16 %v186
        %v219 = vunpack.c.l.bf16 %v187
        %v220 = vunpack.c.l.bf16 %v188
        %v221 = vunpack.c.l.bf16 %v189
        %v222 = vunpack.c.l.bf16 %v190
        %v223 = vunpack.c.l.bf16 %v191
        %v224 = vunpack.c.l.bf16 %v192
        %v225 = vunpack.c.l.bf16 %v193
        %v226 = vunpack.c.l.bf16 %v194
        %v227 = vunpack.c.l.bf16 %v195
        %v228 = vunpack.c.l.bf16 %v196
        %v229 = vunpack.c.l.bf16 %v197
        %v230 = vunpack.c.l.bf16 %v198
        %v231 = vunpack.c.l.bf16 %v199
        %v232 = vunpack.c.l.bf16 %v200
        %v233 = vunpack.c.l.bf16 %v201
        %v234 = vunpack.c.l.bf16 %v202
        %v235 = vunpack.c.l.bf16 %v203
        %v236 = vld [vmem:[%s1] sm:$0x1]
        %v238 = vperm.slane %v236, 0
        %v240 = vmul.f32 %v204, %v238
        %v241 = vmul.f32 %v205, %v238
        %v242 = vmul.f32 %v206, %v238
        %v243 = vmul.f32 %v207, %v238
        %v244 = vmul.f32 %v208, %v238
        %v245 = vmul.f32 %v209, %v238
        %v246 = vmul.f32 %v210, %v238
        %v247 = vmul.f32 %v211, %v238
        %v248 = vmul.f32 %v212, %v238
        %v249 = vmul.f32 %v213, %v238
        %v250 = vmul.f32 %v214, %v238
        %v251 = vmul.f32 %v215, %v238
        %v252 = vmul.f32 %v216, %v238
        %v253 = vmul.f32 %v217, %v238
        %v254 = vmul.f32 %v218, %v238
        %v255 = vmul.f32 %v219, %v238
        %v256 = vmul.f32 %v220, %v238
        %v257 = vmul.f32 %v221, %v238
        %v258 = vmul.f32 %v222, %v238
        %v259 = vmul.f32 %v223, %v238
        %v260 = vmul.f32 %v224, %v238
        %v261 = vmul.f32 %v225, %v238
        %v262 = vmul.f32 %v226, %v238
        %v263 = vmul.f32 %v227, %v238
        %v264 = vmul.f32 %v228, %v238
        %v265 = vmul.f32 %v229, %v238
        %v266 = vmul.f32 %v230, %v238
        %v267 = vmul.f32 %v231, %v238
        %v268 = vmul.f32 %v232, %v238
        %v269 = vmul.f32 %v233, %v238
        %v270 = vmul.f32 %v234, %v238
        %v271 = vmul.f32 %v235, %v238
        %v272 = vld [vmem:[%s2] sm:$0x1]
        %v274 = vperm.slane %v272, 0
        %v276 = vadd.f32 %v240, %v274
        %v277 = vadd.f32 %v241, %v274
        %v278 = vadd.f32 %v242, %v274
        %v279 = vadd.f32 %v243, %v274
        %v280 = vadd.f32 %v244, %v274
        %v281 = vadd.f32 %v245, %v274
        %v282 = vadd.f32 %v246, %v274
        %v283 = vadd.f32 %v247, %v274
        %v284 = vadd.f32 %v248, %v274
        %v285 = vadd.f32 %v249, %v274
        %v286 = vadd.f32 %v250, %v274
        %v287 = vadd.f32 %v251, %v274
        %v288 = vadd.f32 %v252, %v274
        %v289 = vadd.f32 %v253, %v274
        %v290 = vadd.f32 %v254, %v274
        %v291 = vadd.f32 %v255, %v274
        %v292 = vadd.f32 %v256, %v274
        %v293 = vadd.f32 %v257, %v274
        %v294 = vadd.f32 %v258, %v274
        %v295 = vadd.f32 %v259, %v274
        %v296 = vadd.f32 %v260, %v274
        %v297 = vadd.f32 %v261, %v274
        %v298 = vadd.f32 %v262, %v274
        %v299 = vadd.f32 %v263, %v274
        %v300 = vadd.f32 %v264, %v274
        %v301 = vadd.f32 %v265, %v274
        %v302 = vadd.f32 %v266, %v274
        %v303 = vadd.f32 %v267, %v274
        %v304 = vadd.f32 %v268, %v274
        %v305 = vadd.f32 %v269, %v274
        %v306 = vadd.f32 %v270, %v274
        %v307 = vadd.f32 %v271, %v274
        %v308 = vmax.f32 %v276, 0.0
        %v309 = vmax.f32 %v277, 0.0
        %v310 = vmax.f32 %v278, 0.0
        %v311 = vmax.f32 %v279, 0.0
        %v312 = vmax.f32 %v280, 0.0
        %v313 = vmax.f32 %v281, 0.0
        %v314 = vmax.f32 %v282, 0.0
        %v315 = vmax.f32 %v283, 0.0
        %v316 = vmax.f32 %v284, 0.0
        %v317 = vmax.f32 %v285, 0.0
        %v318 = vmax.f32 %v286, 0.0
        %v319 = vmax.f32 %v287, 0.0
        %v320 = vmax.f32 %v288, 0.0
        %v321 = vmax.f32 %v289, 0.0
        %v322 = vmax.f32 %v290, 0.0
        %v323 = vmax.f32 %v291, 0.0
        %v324 = vmax.f32 %v292, 0.0
        %v325 = vmax.f32 %v293, 0.0
        %v326 = vmax.f32 %v294, 0.0
        %v327 = vmax.f32 %v295, 0.0
        %v328 = vmax.f32 %v296, 0.0
        %v329 = vmax.f32 %v297, 0.0
        %v330 = vmax.f32 %v298, 0.0
        %v331 = vmax.f32 %v299, 0.0
        %v332 = vmax.f32 %v300, 0.0
        %v333 = vmax.f32 %v301, 0.0
        %v334 = vmax.f32 %v302, 0.0
        %v335 = vmax.f32 %v303, 0.0
        %v336 = vmax.f32 %v304, 0.0
        %v337 = vmax.f32 %v305, 0.0
        %v338 = vmax.f32 %v306, 0.0
        %v339 = vmax.f32 %v307, 0.0
        %vm340 = vcmask 261120
        %341 = vst.msk [vmem:[%s164] sm:$0xff] %vm340, %v308
        %342 = vst.msk [vmem:[%s164 + $0x8] sm:$0xff] %vm340, %v309
        %343 = vst.msk [vmem:[%s164 + $0x10] sm:$0xff] %vm340, %v310
        %344 = vst.msk [vmem:[%s164 + $0x18] sm:$0xff] %vm340, %v311
        %345 = vst.msk [vmem:[%s164 + $0x20] sm:$0xff] %vm340, %v312
        %346 = vst.msk [vmem:[%s164 + $0x28] sm:$0xff] %vm340, %v313
        %347 = vst.msk [vmem:[%s164 + $0x30] sm:$0xff] %vm340, %v314
        %348 = vst.msk [vmem:[%s164 + $0x38] sm:$0xff] %vm340, %v315
        %349 = vst.msk [vmem:[%s164 + $0x40] sm:$0xff] %vm340, %v316
        %350 = vst.msk [vmem:[%s164 + $0x48] sm:$0xff] %vm340, %v317
        %351 = vst.msk [vmem:[%s164 + $0x50] sm:$0xff] %vm340, %v318
        %352 = vst.msk [vmem:[%s164 + $0x58] sm:$0xff] %vm340, %v319
        %353 = vst.msk [vmem:[%s164 + $0x60] sm:$0xff] %vm340, %v320
        %354 = vst.msk [vmem:[%s164 + $0x68] sm:$0xff] %vm340, %v321
        %355 = vst.msk [vmem:[%s164 + $0x70] sm:$0xff] %vm340, %v322
        %356 = vst.msk [vmem:[%s164 + $0x78] sm:$0xff] %vm340, %v323
        %357 = vst.msk [vmem:[%s164 + $0x80] sm:$0xff] %vm340, %v324
        %358 = vst.msk [vmem:[%s164 + $0x88] sm:$0xff] %vm340, %v325
        %359 = vst.msk [vmem:[%s164 + $0x90] sm:$0xff] %vm340, %v326
        %360 = vst.msk [vmem:[%s164 + $0x98] sm:$0xff] %vm340, %v327
        %361 = vst.msk [vmem:[%s164 + $0xa0] sm:$0xff] %vm340, %v328
        %362 = vst.msk [vmem:[%s164 + $0xa8] sm:$0xff] %vm340, %v329
        %363 = vst.msk [vmem:[%s164 + $0xb0] sm:$0xff] %vm340, %v330
        %364 = vst.msk [vmem:[%s164 + $0xb8] sm:$0xff] %vm340, %v331
        %365 = vst.msk [vmem:[%s164 + $0xc0] sm:$0xff] %vm340, %v332
        %366 = vst.msk [vmem:[%s164 + $0xc8] sm:$0xff] %vm340, %v333
        %367 = vst.msk [vmem:[%s164 + $0xd0] sm:$0xff] %vm340, %v334
        %368 = vst.msk [vmem:[%s164 + $0xd8] sm:$0xff] %vm340, %v335
        %369 = vst.msk [vmem:[%s164 + $0xe0] sm:$0xff] %vm340, %v336
        %370 = vst.msk [vmem:[%s164 + $0xe8] sm:$0xff] %vm340, %v337
        %371 = vst.msk [vmem:[%s164 + $0xf0] sm:$0xff] %vm340, %v338
        %372 = vst.msk [vmem:[%s164 + $0xf8] sm:$0xff] %vm340, %v339
        %s373 = sand.u32 %s93, 1
        %s374 = scalar_lea.sflag [#allocation3], %s373
        %s375 = sand.u32 %s93, 1
        %s376 = smul.addr %s375, 256
        %s377 = scalar_lea.vmem [#allocation2], %s376
        // Predicated region
        $region33: #{conv_block_apply.7} parent=31 // pred_check
          %p378 = pneg %p103
        $region34: #{conv_block_apply.7} parent=31 // pred_check_branch
          %380 = sbr.rel (%p378) target = $region36
        $region35: #{conv_block_apply.7} parent=31 // pred_region
          %s381 = smul.u32 32, %s17
          %383 = vsyncadd %s374, 0
          %s384 = smul.addr %s381, 8
          %s385 = scalar_lea.hbm %s3, %s384
          %s386 = sshll.u32 %s377, 4
          %s387 = int_to_ptr.vmem [resolvable:$true] %s386
          %s388 = sshll.u32 %s385, 4
          %s389 = int_to_ptr.hbm [resolvable:$true] %s388
          %394 = dma.vmem_to_hbm [thread:$0]  %s387, 4096, %s389, %s374, 128, 128, 8
        $region36: #{conv_block_apply.7} parent=31 // pred_fallthru
          _
      $region32: #{conv_block_apply.7} parent=5 // pred_fallthru
        _
      %p395 = scmp.le.s32.totalorder 2, %s12
      // Predicated region
      $region37: #{conv_block_apply.7} parent=5 // pred_check
        %p396 = pneg %p395
      $region38: #{conv_block_apply.7} parent=5 // pred_check_branch
        %398 = sbr.rel (%p396) target = $region40
      $region39: #{conv_block_apply.7} parent=5 // pred_region
        %s399 = ssub.s32 %s12, 2
        // Predicated region
        $region41: #{conv_block_apply.7} parent=39 // pred_check
          %p400 = pneg %p109
        $region42: #{conv_block_apply.7} parent=39 // pred_check_branch
          %402 = sbr.rel (%p400) target = $region44
        $region43: #{conv_block_apply.7} parent=39 // pred_region
          %s403 = sand.u32 %s94, 1
          %s404 = scalar_lea.sflag [#allocation3], %s403
          %s405 = sand.u32 %s94, 1
          %s406 = smul.addr %s405, 256
          %s407 = scalar_lea.vmem [#allocation2], %s406
          %409 = dma.done %s404, 4096
        $region44: #{conv_block_apply.7} parent=39 // pred_fallthru
          _
      $region40: #{conv_block_apply.7} parent=5 // pred_fallthru
        _
    $region6: #{conv_block_apply.7} parent=1 // loop_footer
      %s16 = sadd.s32 1, %s12
    $region7: #{conv_block_apply.7} parent=1 // loop_footer_branch
      %11 = sbr.rel target = $region3
    $region8: #{conv_block_apply.7} parent=1 // loop_exit
      _
    %410 = vsyncpa [#allocation3], 1
    %s411 = scalar_lea.sflag [#allocation3], 1
    %412 = vsyncpa %s411, 1

// kernel: conv_block_apply.6
$region0: #{conv_block_apply.6}
  #allocation0 [shape = 'u32[]', space=smem, size = 0x4, offset = 0x4, fixed_abs, tag = 'smem constant byte address 0x4 - core index']
  #allocation1 [shape = 'u32[72,128]{1,0:T(1,128)}', space=vmem, size = 0x9000, scoped, tag = 'internal scratch']
  %s0 = inlined_call_operand.vmem [shape: bf16[2,18,18,32], index: 0, kind: input, shape index: {}]
  %s1 = inlined_call_operand.vmem [shape: bf16[3,3,32,32], index: 1, kind: input, shape index: {}]
  %s2 = inlined_call_operand.vmem [shape: bf16[2,256,32], index: 2, kind: output, shape index: {0}]
  %s3 = inlined_call_operand.vmem [shape: f32[2,1,32], index: 3, kind: output, shape index: {1}]
  %s4 = inlined_call_operand.vmem [shape: f32[2,1,32], index: 4, kind: output, shape index: {2}]
  %5 = xla_tuple %s2, %s3, %s4
  %s6 = sld [smem:[#allocation0]]
  $region57: #{conv_block_apply.6} parent=0
    _
  %s8 = ssub.s32 1, %s6
  %s9 = scalar_select 0, %s8, %s6
  loop: start=0, step=1, limit=4
  $region2: #{conv_block_apply.6} parent=0 // loop_pre_header
    _
  $region3: #{conv_block_apply.6} parent=0 // loop_header
    %s11 = sphi 0, %s15
    %p12 = scmp.ge.s32.totalorder %s11, 4
    %s18 = sphi 0, %s30
    %s19 = sphi 0, %s26
    %s20 = sphi 0, %s18
    %s21 = sphi 0, %s19
    %s22 = sphi 0, %s20
    %s23 = sphi 0, %s21
    %s33 = sphi 0, %s35
    %s36 = sphi 0, %s33
    %s37 = sphi 0, %s36
    %s53 = sphi 0, %s37
    %s59 = sphi 0, %s61
    %s62 = sphi 0, %s59
    %s63 = sphi 0, %s62
    %s79 = sphi 0, %s63
    %s87 = sphi 0, %s89
    %s90 = sphi 0, %s87
    %s91 = sphi 0, %s90
    %s107 = sphi 0, %s91
    %s115 = sphi 0, %s117
    %s118 = sphi 0, %s115
    %s119 = sphi 0, %s118
    %s135 = sphi 0, %s119
    %s143 = sphi 0, %s145
    %s146 = sphi 0, %s143
    %s147 = sphi 0, %s146
    %s163 = sphi 0, %s147
  $region4: #{conv_block_apply.6} parent=0 // loop_header_branch
    %14 = sbr.rel (%p12) target = $region8
  $region5: #{conv_block_apply.6} parent=0 // loop_body
    %s16 = ssub.s32 %s11, 1
    %s17 = ssub.s32 %s11, 2
    %s24 = sadd.s32 1, %s19
    %p25 = scmp.ge.s32.totalorder %s24, 1
    %s26 = scalar_select %p25, 0, %s24
    %s27 = sadd.s32 1, %s18
    %s28 = scalar_select %p25, %s27, %s18
    %p29 = scmp.ge.s32.totalorder %s28, 2
    %s30 = scalar_select %p29, 0, %s28
    %s31 = ssub.s32 %s18, %s30
    %p32 = scmp.eq.s32.totalorder %s31, 0
    %s34 = sadd.s32 %s33, 1
    %s35 = scalar_select %p32, %s33, %s34
    %p38 = pneg %p32
    %p39 = scmp.eq.s32.totalorder %s11, 1
    %p40 = por %p38, %p39
    %p41 = scmp.ne.s32.totalorder %s33, %s36
    %p42 = scmp.eq.s32.totalorder %s11, 0
    %p43 = por %p41, %p42
    %p44 = scmp.ne.s32.totalorder %s33, %s36
    %p45 = scmp.eq.s32.totalorder %s16, 1
    %p46 = por %p44, %p45
    %p47 = scmp.ne.s32.totalorder %s36, %s37
    %p48 = scmp.eq.s32.totalorder %s16, 0
    %p49 = por %p47, %p48
    %p50 = scmp.ne.s32.totalorder %s36, %s37
    %p51 = scmp.eq.s32.totalorder %s17, 1
    %p52 = por %p50, %p51
    %p54 = scmp.ne.s32.totalorder %s37, %s53
    %p55 = scmp.eq.s32.totalorder %s17, 0
    %p56 = por %p54, %p55
    %s57 = ssub.s32 %s19, %s26
    %p58 = scmp.eq.s32.totalorder %s57, 0
    %s60 = sadd.s32 %s59, 1
    %s61 = scalar_select %p58, %s59, %s60
    %p64 = pneg %p58
    %p65 = scmp.eq.s32.totalorder %s11, 1
    %p66 = por %p64, %p65
    %p67 = scmp.ne.s32.totalorder %s59, %s62
    %p68 = scmp.eq.s32.totalorder %s11, 0
    %p69 = por %p67, %p68
    %p70 = scmp.ne.s32.totalorder %s59, %s62
    %p71 = scmp.eq.s32.totalorder %s16, 1
    %p72 = por %p70, %p71
    %p73 = scmp.ne.s32.totalorder %s62, %s63
    %p74 = scmp.eq.s32.totalorder %s16, 0
    %p75 = por %p73, %p74
    %p76 = scmp.ne.s32.totalorder %s62, %s63
    %p77 = scmp.eq.s32.totalorder %s17, 1
    %p78 = por %p76, %p77
    %p80 = scmp.ne.s32.totalorder %s63, %s79
    %p81 = scmp.eq.s32.totalorder %s17, 0
    %p82 = por %p80, %p81
    %s83 = ssub.s32 %s18, %s30
    %s84 = ssub.s32 %s19, %s26
    %s85 = sor.u32 %s83, %s84
    %p86 = scmp.eq.s32.totalorder %s85, 0
    %s88 = sadd.s32 %s87, 1
    %s89 = scalar_select %p86, %s87, %s88
    %p92 = pneg %p86
    %p93 = scmp.eq.s32.totalorder %s11, 1
    %p94 = por %p92, %p93
    %p95 = scmp.ne.s32.totalorder %s87, %s90
    %p96 = scmp.eq.s32.totalorder %s11, 0
    %p97 = por %p95, %p96
    %p98 = scmp.ne.s32.totalorder %s87, %s90
    %p99 = scmp.eq.s32.totalorder %s16, 1
    %p100 = por %p98, %p99
    %p101 = scmp.ne.s32.totalorder %s90, %s91
    %p102 = scmp.eq.s32.totalorder %s16, 0
    %p103 = por %p101, %p102
    %p104 = scmp.ne.s32.totalorder %s90, %s91
    %p105 = scmp.eq.s32.totalorder %s17, 1
    %p106 = por %p104, %p105
    %p108 = scmp.ne.s32.totalorder %s91, %s107
    %p109 = scmp.eq.s32.totalorder %s17, 0
    %p110 = por %p108, %p109
    %s111 = ssub.s32 %s18, %s30
    %s112 = ssub.s32 %s19, %s26
    %s113 = sor.u32 %s111, %s112
    %p114 = scmp.eq.s32.totalorder %s113, 0
    %s116 = sadd.s32 %s115, 1
    %s117 = scalar_select %p114, %s115, %s116
    %p120 = pneg %p114
    %p121 = scmp.eq.s32.totalorder %s11, 1
    %p122 = por %p120, %p121
    %p123 = scmp.ne.s32.totalorder %s115, %s118
    %p124 = scmp.eq.s32.totalorder %s11, 0
    %p125 = por %p123, %p124
    %p126 = scmp.ne.s32.totalorder %s115, %s118
    %p127 = scmp.eq.s32.totalorder %s16, 1
    %p128 = por %p126, %p127
    %p129 = scmp.ne.s32.totalorder %s118, %s119
    %p130 = scmp.eq.s32.totalorder %s16, 0
    %p131 = por %p129, %p130
    %p132 = scmp.ne.s32.totalorder %s118, %s119
    %p133 = scmp.eq.s32.totalorder %s17, 1
    %p134 = por %p132, %p133
    %p136 = scmp.ne.s32.totalorder %s119, %s135
    %p137 = scmp.eq.s32.totalorder %s17, 0
    %p138 = por %p136, %p137
    %s139 = ssub.s32 %s18, %s30
    %s140 = ssub.s32 %s19, %s26
    %s141 = sor.u32 %s139, %s140
    %p142 = scmp.eq.s32.totalorder %s141, 0
    %s144 = sadd.s32 %s143, 1
    %s145 = scalar_select %p142, %s143, %s144
    %p148 = pneg %p142
    %p149 = scmp.eq.s32.totalorder %s11, 1
    %p150 = por %p148, %p149
    %p151 = scmp.ne.s32.totalorder %s143, %s146
    %p152 = scmp.eq.s32.totalorder %s11, 0
    %p153 = por %p151, %p152
    %p154 = scmp.ne.s32.totalorder %s143, %s146
    %p155 = scmp.eq.s32.totalorder %s16, 1
    %p156 = por %p154, %p155
    %p157 = scmp.ne.s32.totalorder %s146, %s147
    %p158 = scmp.eq.s32.totalorder %s16, 0
    %p159 = por %p157, %p158
    %p160 = scmp.ne.s32.totalorder %s146, %s147
    %p161 = scmp.eq.s32.totalorder %s17, 1
    %p162 = por %p160, %p161
    %p164 = scmp.ne.s32.totalorder %s147, %s163
    %p165 = scmp.eq.s32.totalorder %s17, 0
    %p166 = por %p164, %p165
    %p167 = scmp.le.s32.totalorder 1, %s11
    %p168 = scmp.lt.s32.totalorder %s11, 3
    %p169 = pnand %p167, %p168
    %p170 = pneg %p169
    // Predicated region
    $region9: #{conv_block_apply.6} parent=5 // pred_check
      _
    $region10: #{conv_block_apply.6} parent=5 // pred_check_branch
      %172 = sbr.rel (%p169) target = $region12
    $region11: #{conv_block_apply.6} parent=5 // pred_region
      %s173 = ssub.s32 %s11, 1
      // Predicated region
      $region13: #{conv_block_apply.6} parent=11 // pred_check
        %p174 = pneg %p75
      $region14: #{conv_block_apply.6} parent=11 // pred_check_branch
        %176 = sbr.rel (%p174) target = $region16
      $region15: #{conv_block_apply.6} parent=11 // pred_region
        %p177 = scmp.lt.s32.totalorder %s21, 0
        %s178 = scalar_select %p177, %s21, 0
        %s179 = smul.addr %s178, 4
        %s180 = scalar_lea.vmem %s1, %s179
      $region16: #{conv_block_apply.6} parent=11 // pred_fallthru
        _
    $region12: #{conv_block_apply.6} parent=5 // pred_fallthru
      _
    %p181 = scmp.lt.s32.totalorder %s11, 2
    // Predicated region
    $region17: #{conv_block_apply.6} parent=5 // pred_check
      %p182 = pneg %p181
    $region18: #{conv_block_apply.6} parent=5 // pred_check_branch
      %184 = sbr.rel (%p182) target = $region20
    $region19: #{conv_block_apply.6} parent=5 // pred_region
      // Predicated region
      $region21: #{conv_block_apply.6} parent=19 // pred_check
        %p185 = pneg %p43
      $region22: #{conv_block_apply.6} parent=19 // pred_check_branch
        %187 = sbr.rel (%p185) target = $region24
      $region23: #{conv_block_apply.6} parent=19 // pred_region
        %p188 = scmp.lt.s32.totalorder %s18, 1
        %s189 = scalar_select %p188, %s18, 1
        %s190 = smul.addr %s189, 54
        %s191 = smul.addr %s190, 4
        %s192 = scalar_lea.vmem %s0, %s191
      $region24: #{conv_block_apply.6} parent=19 // pred_fallthru
        _
    $region20: #{conv_block_apply.6} parent=5 // pred_fallthru
      _
    %p193 = scmp.le.s32.totalorder 1, %s11
    %p194 = scmp.lt.s32.totalorder %s11, 3
    %p195 = pnand %p193, %p194
    %p196 = pneg %p195
    // Predicated region
    $region25: #{conv_block_apply.6} parent=5 // pred_check
      _
    $region26: #{conv_block_apply.6} parent=5 // pred_check_branch
      %198 = sbr.rel (%p195) target = $region28
    $region27: #{conv_block_apply.6} parent=5 // pred_region
      %s199 = ssub.s32 %s11, 1
      %p200 = scmp.lt.s32.totalorder %s20, 1
      %s201 = scalar_select %p200, %s20, 1
      %s202 = smul.addr %s201, 54
      %s203 = smul.addr %s202, 4
      %s204 = scalar_lea.vmem %s0, %s203
      %p205 = pneg %p49
      %p206 = pneg %p46
      %p207 = scmp.lt.s32.totalorder %s21, 0
      %s208 = scalar_select %p207, %s21, 0
      %s209 = smul.addr %s208, 4
      %s210 = scalar_lea.vmem %s1, %s209
      %p211 = pneg %p75
      %p212 = pneg %p72
      %p213 = pneg %p103
      %p214 = pneg %p100
      %p215 = scmp.lt.s32.totalorder %s20, 1
      %s216 = scalar_select %p215, %s20, 1
      %p217 = scmp.lt.s32.totalorder %s21, 0
      %s218 = scalar_select %p217, %s21, 0
      %s219 = smul.addr %s216, 32
      %s220 = sadd.s32 %s218, %s219
      %s221 = smul.addr %s220, 4
      %s222 = scalar_lea.vmem %s2, %s221
      %p223 = pneg %p131
      %p224 = pneg %p128
      %p225 = scmp.lt.s32.totalorder %s20, 1
      %s226 = scalar_select %p225, %s20, 1
      %p227 = scmp.lt.s32.totalorder %s21, 0
      %s228 = scalar_select %p227, %s21, 0
      %s229 = sadd.s32 %s228, %s226
      %s230 = scalar_lea.vmem %s3, %s229
      %p231 = pneg %p159
      %p232 = pneg %p156
      %p233 = scmp.lt.s32.totalorder %s20, 1
      %s234 = scalar_select %p233, %s20, 1
      %p235 = scmp.lt.s32.totalorder %s21, 0
      %s236 = scalar_select %p235, %s21, 0
      %s237 = sadd.s32 %s236, %s234
      %s238 = scalar_lea.vmem %s4, %s237
      %p239 = scmp.lt.s32.totalorder %s20, 1
      %s240 = scalar_select %p239, %s20, 1
      %s241 = smul.addr %s240, 54
      %s242 = smul.addr %s241, 4
      %s243 = scalar_lea.vmem %s0, %s242
      %p244 = scmp.lt.s32.totalorder %s21, 0
      %s245 = scalar_select %p244, %s21, 0
      %s246 = smul.addr %s245, 4
      %s247 = scalar_lea.vmem %s1, %s246
      %p248 = scmp.lt.s32.totalorder %s20, 1
      %s249 = scalar_select %p248, %s20, 1
      %p250 = scmp.lt.s32.totalorder %s21, 0
      %s251 = scalar_select %p250, %s21, 0
      %s252 = smul.addr %s249, 32
      %s253 = sadd.s32 %s251, %s252
      %s254 = smul.addr %s253, 4
      %s255 = scalar_lea.vmem %s2, %s254
      %p256 = scmp.lt.s32.totalorder %s20, 1
      %s257 = scalar_select %p256, %s20, 1
      %p258 = scmp.lt.s32.totalorder %s21, 0
      %s259 = scalar_select %p258, %s21, 0
      %s260 = sadd.s32 %s259, %s257
      %s261 = scalar_lea.vmem %s3, %s260
      %p262 = scmp.lt.s32.totalorder %s20, 1
      %s263 = scalar_select %p262, %s20, 1
      %p264 = scmp.lt.s32.totalorder %s21, 0
      %s265 = scalar_select %p264, %s21, 0
      %s266 = sadd.s32 %s265, %s263
      %s267 = scalar_lea.vmem %s4, %s266
      %v269 = vld [vmem:[%s243] sm:$0xf]
      %v270 = vld [vmem:[%s243 + $0x4] sm:$0xf]
      %v271 = vld [vmem:[%s243 + $0x8] sm:$0x1]
      %v272 = vld [vmem:[%s243 + $0xc] sm:$0xf]
      %v273 = vld [vmem:[%s243 + $0x10] sm:$0xf]
      %v274 = vld [vmem:[%s243 + $0x14] sm:$0x1]
      %v275 = vld [vmem:[%s243 + $0x18] sm:$0xf]
      %v276 = vld [vmem:[%s243 + $0x1c] sm:$0xf]
      %v277 = vld [vmem:[%s243 + $0x20] sm:$0x1]
      %v278 = vld [vmem:[%s243 + $0x24] sm:$0xf]
      %v279 = vld [vmem:[%s243 + $0x28] sm:$0xf]
      %v280 = vld [vmem:[%s243 + $0x2c] sm:$0x1]
      %v281 = vld [vmem:[%s243 + $0x30] sm:$0xf]
      %v282 = vld [vmem:[%s243 + $0x34] sm:$0xf]
      %v283 = vld [vmem:[%s243 + $0x38] sm:$0x1]
      %v284 = vld [vmem:[%s243 + $0x3c] sm:$0xf]
      %v285 = vld [vmem:[%s243 + $0x40] sm:$0xf]
      %v286 = vld [vmem:[%s243 + $0x44] sm:$0x1]
      %v287 = vld [vmem:[%s243 + $0x48] sm:$0xf]
      %v288 = vld [vmem:[%s243 + $0x4c] sm:$0xf]
      %v289 = vld [vmem:[%s243 + $0x50] sm:$0x1]
      %v290 = vld [vmem:[%s243 + $0x54] sm:$0xf]
      %v291 = vld [vmem:[%s243 + $0x58] sm:$0xf]
      %v292 = vld [vmem:[%s243 + $0x5c] sm:$0x1]
      %v293 = vld [vmem:[%s243 + $0x60] sm:$0xf]
      %v294 = vld [vmem:[%s243 + $0x64] sm:$0xf]
      %v295 = vld [vmem:[%s243 + $0x68] sm:$0x1]
      %v296 = vld [vmem:[%s243 + $0x6c] sm:$0xf]
      %v297 = vld [vmem:[%s243 + $0x70] sm:$0xf]
      %v298 = vld [vmem:[%s243 + $0x74] sm:$0x1]
      %v299 = vld [vmem:[%s243 + $0x78] sm:$0xf]
      %v300 = vld [vmem:[%s243 + $0x7c] sm:$0xf]
      %v301 = vld [vmem:[%s243 + $0x80] sm:$0x1]
      %v302 = vld [vmem:[%s243 + $0x84] sm:$0xf]
      %v303 = vld [vmem:[%s243 + $0x88] sm:$0xf]
      %v304 = vld [vmem:[%s243 + $0x8c] sm:$0x1]
      %v305 = vld [vmem:[%s243 + $0x90] sm:$0xf]
      %v306 = vld [vmem:[%s243 + $0x94] sm:$0xf]
      %v307 = vld [vmem:[%s243 + $0x98] sm:$0x1]
      %v308 = vld [vmem:[%s243 + $0x9c] sm:$0xf]
      %v309 = vld [vmem:[%s243 + $0xa0] sm:$0xf]
      %v310 = vld [vmem:[%s243 + $0xa4] sm:$0x1]
      %v311 = vld [vmem:[%s243 + $0xa8] sm:$0xf]
      %v312 = vld [vmem:[%s243 + $0xac] sm:$0xf]
      %v313 = vld [vmem:[%s243 + $0xb0] sm:$0x1]
      %v314 = vld [vmem:[%s243 + $0xb4] sm:$0xf]
      %v315 = vld [vmem:[%s243 + $0xb8] sm:$0xf]
      %v316 = vld [vmem:[%s243 + $0xbc] sm:$0x1]
      %v317 = vld [vmem:[%s243 + $0xc0] sm:$0xf]
      %v318 = vld [vmem:[%s243 + $0xc4] sm:$0xf]
      %v319 = vld [vmem:[%s243 + $0xc8] sm:$0x1]
      %v320 = vld [vmem:[%s243 + $0xcc] sm:$0xf]
      %v321 = vld [vmem:[%s243 + $0xd0] sm:$0xf]
      %v322 = vld [vmem:[%s243 + $0xd4] sm:$0x1]
      %v323 = vld [vmem:[%s247] sm:$0xf]
      %v324 = vld [vmem:[%s247 + $0x4] sm:$0xf]
      %v325 = vld [vmem:[%s247 + $0x8] sm:$0xf]
      %v326 = vld [vmem:[%s247 + $0xc] sm:$0xf]
      %vm327 = vsmask.f32 3328
      %vm328 = vsmask.f32 7440
      %vm329 = vmor %vm327, %vm328
      %v331 = vshrl.u32 %v269, 16
      %v333 = vrot.slane %v331, 4
      %v334 = vshll.u32 %v269, 16
      %v336 = vrot.slane %v334, 5
      %v337 = vor.u32 %v333, %v336
      %v338 = vrot.slane %v337, 4
      %v340 = vshll.u32 %v270, 16
      %v342 = vrot.slane %v340, 5
      %v343 = vsel %vm329, %v338, %v342
      %v344 = vshrl.u32 %v270, 16
      %v346 = vrot.slane %v344, 4
      %v347 = vor.u32 %v346, %v342
      %v348 = vrot.slane %v347, 4
      %v350 = vshll.u32 %v271, 16
      %v352 = vrot.slane %v350, 5
      %v353 = vsel %vm329, %v348, %v352
      %v355 = vshrl.u32 %v272, 16
      %v357 = vrot.slane %v355, 4
      %v358 = vshll.u32 %v272, 16
      %v360 = vrot.slane %v358, 5
      %v361 = vor.u32 %v357, %v360
      %v362 = vrot.slane %v361, 4
      %v364 = vshll.u32 %v273, 16
      %v366 = vrot.slane %v364, 5
      %v367 = vsel %vm329, %v362, %v366
      %v368 = vshrl.u32 %v273, 16
      %v370 = vrot.slane %v368, 4
      %v371 = vor.u32 %v370, %v366
      %v372 = vrot.slane %v371, 4
      %v374 = vshll.u32 %v274, 16
      %v376 = vrot.slane %v374, 5
      %v377 = vsel %vm329, %v372, %v376
      %v379 = vshrl.u32 %v275, 16
      %v381 = vrot.slane %v379, 4
      %v382 = vshll.u32 %v275, 16
      %v384 = vrot.slane %v382, 5
      %v385 = vor.u32 %v381, %v384
      %v386 = vrot.slane %v385, 4
      %v388 = vshll.u32 %v276, 16
      %v390 = vrot.slane %v388, 5
      %v391 = vsel %vm329, %v386, %v390
      %v392 = vshrl.u32 %v276, 16
      %v394 = vrot.slane %v392, 4
      %v395 = vor.u32 %v394, %v390
      %v396 = vrot.slane %v395, 4
      %v398 = vshll.u32 %v277, 16
      %v400 = vrot.slane %v398, 5
      %v401 = vsel %vm329, %v396, %v400
      %v403 = vshrl.u32 %v278, 16
      %v405 = vrot.slane %v403, 4
      %v406 = vshll.u32 %v278, 16
      %v408 = vrot.slane %v406, 5
      %v409 = vor.u32 %v405, %v408
      %v410 = vrot.slane %v409, 4
      %v412 = vshll.u32 %v279, 16
      %v414 = vrot.slane %v412, 5
      %v415 = vsel %vm329, %v410, %v414
      %v416 = vshrl.u32 %v279, 16
      %v418 = vrot.slane %v416, 4
      %v419 = vor.u32 %v418, %v414
      %v420 = vrot.slane %v419, 4
      %v422 = vshll.u32 %v280, 16
      %v424 = vrot.slane %v422, 5
      %v425 = vsel %vm329, %v420, %v424
      %v427 = vshrl.u32 %v281, 16
      %v429 = vrot.slane %v427, 4
      %v430 = vshll.u32 %v281, 16
      %v432 = vrot.slane %v430, 5
      %v433 = vor.u32 %v429, %v432
      %v434 = vrot.slane %v433, 4
      %v436 = vshll.u32 %v282, 16
      %v438 = vrot.slane %v436, 5
      %v439 = vsel %vm329, %v434, %v438
      %v440 = vshrl.u32 %v282, 16
      %v442 = vrot.slane %v440, 4
      %v443 = vor.u32 %v442, %v438
      %v444 = vrot.slane %v443, 4
      %v446 = vshll.u32 %v283, 16
      %v448 = vrot.slane %v446, 5
      %v449 = vsel %vm329, %v444, %v448
      %v451 = vshrl.u32 %v284, 16
      %v453 = vrot.slane %v451, 4
      %v454 = vshll.u32 %v284, 16
      %v456 = vrot.slane %v454, 5
      %v457 = vor.u32 %v453, %v456
      %v458 = vrot.slane %v457, 4
      %v460 = vshll.u32 %v285, 16
      %v462 = vrot.slane %v460, 5
      %v463 = vsel %vm329, %v458, %v462
      %v464 = vshrl.u32 %v285, 16
      %v466 = vrot.slane %v464, 4
      %v467 = vor.u32 %v466, %v462
      %v468 = vrot.slane %v467, 4
      %v470 = vshll.u32 %v286, 16
      %v472 = vrot.slane %v470, 5
      %v473 = vsel %vm329, %v468, %v472
      %v475 = vshrl.u32 %v287, 16
      %v477 = vrot.slane %v475, 4
      %v478 = vshll.u32 %v287, 16
      %v480 = vrot.slane %v478, 5
      %v481 = vor.u32 %v477, %v480
      %v482 = vrot.slane %v481, 4
      %v484 = vshll.u32 %v288, 16
      %v486 = vrot.slane %v484, 5
      %v487 = vsel %vm329, %v482, %v486
      %v488 = vshrl.u32 %v288, 16
      %v490 = vrot.slane %v488, 4
      %v491 = vor.u32 %v490, %v486
      %v492 = vrot.slane %v491, 4
      %v494 = vshll.u32 %v289, 16
      %v496 = vrot.slane %v494, 5
      %v497 = vsel %vm329, %v492, %v496
      %v499 = vshrl.u32 %v290, 16
      %v501 = vrot.slane %v499, 4
      %v502 = vshll.u32 %v290, 16
      %v504 = vrot.slane %v502, 5
      %v505 = vor.u32 %v501, %v504
      %v506 = vrot.slane %v505, 4
      %v508 = vshll.u32 %v291, 16
      %v510 = vrot.slane %v508, 5
      %v511 = vsel %vm329, %v506, %v510
      %v512 = vshrl.u32 %v291, 16
      %v514 = vrot.slane %v512, 4
      %v515 = vor.u32 %v514, %v510
      %v516 = vrot.slane %v515, 4
      %v518 = vshll.u32 %v292, 16
      %v520 = vrot.slane %v518, 5
      %v521 = vsel %vm329, %v516, %v520
      %v523 = vshrl.u32 %v293, 16
      %v525 = vrot.slane %v523, 4
      %v526 = vshll.u32 %v293, 16
      %v528 = vrot.slane %v526, 5
      %v529 = vor.u32 %v525, %v528
      %v530 = vrot.slane %v529, 4
      %v532 = vshll.u32 %v294, 16
      %v534 = vrot.slane %v532, 5
      %v535 = vsel %vm329, %v530, %v534
      %v536 = vshrl.u32 %v294, 16
      %v538 = vrot.slane %v536, 4
      %v539 = vor.u32 %v538, %v534
      %v540 = vrot.slane %v539, 4
      %v542 = vshll.u32 %v295, 16
      %v544 = vrot.slane %v542, 5
      %v545 = vsel %vm329, %v540, %v544
      %v547 = vshrl.u32 %v296, 16
      %v549 = vrot.slane %v547, 4
      %v550 = vshll.u32 %v296, 16
      %v552 = vrot.slane %v550, 5
      %v553 = vor.u32 %v549, %v552
      %v554 = vrot.slane %v553, 4
      %v556 = vshll.u32 %v297, 16
      %v558 = vrot.slane %v556, 5
      %v559 = vsel %vm329, %v554, %v558
      %v560 = vshrl.u32 %v297, 16
      %v562 = vrot.slane %v560, 4
      %v563 = vor.u32 %v562, %v558
      %v564 = vrot.slane %v563, 4
      %v566 = vshll.u32 %v298, 16
      %v568 = vrot.slane %v566, 5
      %v569 = vsel %vm329, %v564, %v568
      %v571 = vshrl.u32 %v299, 16
      %v573 = vrot.slane %v571, 4
      %v574 = vshll.u32 %v299, 16
      %v576 = vrot.slane %v574, 5
      %v577 = vor.u32 %v573, %v576
      %v578 = vrot.slane %v577, 4
      %v580 = vshll.u32 %v300, 16
      %v582 = vrot.slane %v580, 5
      %v583 = vsel %vm329, %v578, %v582
      %v584 = vshrl.u32 %v300, 16
      %v586 = vrot.slane %v584, 4
      %v587 = vor.u32 %v586, %v582
      %v588 = vrot.slane %v587, 4
      %v590 = vshll.u32 %v301, 16
      %v592 = vrot.slane %v590, 5
      %v593 = vsel %vm329, %v588, %v592
      %v595 = vshrl.u32 %v302, 16
      %v597 = vrot.slane %v595, 4
      %v598 = vshll.u32 %v302, 16
      %v600 = vrot.slane %v598, 5
      %v601 = vor.u32 %v597, %v600
      %v602 = vrot.slane %v601, 4
      %v604 = vshll.u32 %v303, 16
      %v606 = vrot.slane %v604, 5
      %v607 = vsel %vm329, %v602, %v606
      %v608 = vshrl.u32 %v303, 16
      %v610 = vrot.slane %v608, 4
      %v611 = vor.u32 %v610, %v606
      %v612 = vrot.slane %v611, 4
      %v614 = vshll.u32 %v304, 16
      %v616 = vrot.slane %v614, 5
      %v617 = vsel %vm329, %v612, %v616
      %v619 = vshrl.u32 %v305, 16
      %v621 = vrot.slane %v619, 4
      %v622 = vshll.u32 %v305, 16
      %v624 = vrot.slane %v622, 5
      %v625 = vor.u32 %v621, %v624
      %v626 = vrot.slane %v625, 4
      %v628 = vshll.u32 %v306, 16
      %v630 = vrot.slane %v628, 5
      %v631 = vsel %vm329, %v626, %v630
      %v632 = vshrl.u32 %v306, 16
      %v634 = vrot.slane %v632, 4
      %v635 = vor.u32 %v634, %v630
      %v636 = vrot.slane %v635, 4
      %v638 = vshll.u32 %v307, 16
      %v640 = vrot.slane %v638, 5
      %v641 = vsel %vm329, %v636, %v640
      %v643 = vshrl.u32 %v308, 16
      %v645 = vrot.slane %v643, 4
      %v646 = vshll.u32 %v308, 16
      %v648 = vrot.slane %v646, 5
      %v649 = vor.u32 %v645, %v648
      %v650 = vrot.slane %v649, 4
      %v652 = vshll.u32 %v309, 16
      %v654 = vrot.slane %v652, 5
      %v655 = vsel %vm329, %v650, %v654
      %v656 = vshrl.u32 %v309, 16
      %v658 = vrot.slane %v656, 4
      %v659 = vor.u32 %v658, %v654
      %v660 = vrot.slane %v659, 4
      %v662 = vshll.u32 %v310, 16
      %v664 = vrot.slane %v662, 5
      %v665 = vsel %vm329, %v660, %v664
      %v667 = vshrl.u32 %v311, 16
      %v669 = vrot.slane %v667, 4
      %v670 = vshll.u32 %v311, 16
      %v672 = vrot.slane %v670, 5
      %v673 = vor.u32 %v669, %v672
      %v674 = vrot.slane %v673, 4
      %v676 = vshll.u32 %v312, 16
      %v678 = vrot.slane %v676, 5
      %v679 = vsel %vm329, %v674, %v678
      %v680 = vshrl.u32 %v312, 16
      %v682 = vrot.slane %v680, 4
      %v683 = vor.u32 %v682, %v678
      %v684 = vrot.slane %v683, 4
      %v686 = vshll.u32 %v313, 16
      %v688 = vrot.slane %v686, 5
      %v689 = vsel %vm329, %v684, %v688
      %v691 = vshrl.u32 %v314, 16
      %v693 = vrot.slane %v691, 4
      %v694 = vshll.u32 %v314, 16
      %v696 = vrot.slane %v694, 5
      %v697 = vor.u32 %v693, %v696
      %v698 = vrot.slane %v697, 4
      %v700 = vshll.u32 %v315, 16
      %v702 = vrot.slane %v700, 5
      %v703 = vsel %vm329, %v698, %v702
      %v704 = vshrl.u32 %v315, 16
      %v706 = vrot.slane %v704, 4
      %v707 = vor.u32 %v706, %v702
      %v708 = vrot.slane %v707, 4
      %v710 = vshll.u32 %v316, 16
      %v712 = vrot.slane %v710, 5
      %v713 = vsel %vm329, %v708, %v712
      %s714 = scalar_lea.vmem %s247, 16
      %v715 = vld [vmem:[%s714] sm:$0xf]
      %v716 = vld [vmem:[%s714 + $0x4] sm:$0xf]
      %v717 = vld [vmem:[%s714 + $0x8] sm:$0xf]
      %v718 = vld [vmem:[%s714 + $0xc] sm:$0xf]
      %v719 = vunpack.c.l.b16 %v343
      %v720 = vunpack.c.l.b16 %v353
      %v721 = vunpack.c.l.b16 %v367
      %v722 = vunpack.c.l.b16 %v377
      %v723 = vunpack.c.l.b16 %v391
      %v724 = vunpack.c.l.b16 %v401
      %v725 = vunpack.c.l.b16 %v415
      %v726 = vunpack.c.l.b16 %v425
      %v727 = vunpack.c.l.b16 %v439
      %v728 = vunpack.c.l.b16 %v449
      %v729 = vunpack.c.l.b16 %v463
      %v730 = vunpack.c.l.b16 %v473
      %v731 = vunpack.c.l.b16 %v487
      %v732 = vunpack.c.l.b16 %v497
      %v733 = vunpack.c.l.b16 %v511
      %v734 = vunpack.c.l.b16 %v521
      %v735 = vunpack.c.l.b16 %v535
      %v736 = vunpack.c.l.b16 %v545
      %v737 = vunpack.c.l.b16 %v559
      %v738 = vunpack.c.l.b16 %v569
      %v739 = vunpack.c.l.b16 %v583
      %v740 = vunpack.c.l.b16 %v593
      %v741 = vunpack.c.l.b16 %v607
      %v742 = vunpack.c.l.b16 %v617
      %v743 = vunpack.c.l.b16 %v631
      %v744 = vunpack.c.l.b16 %v641
      %v745 = vunpack.c.l.b16 %v655
      %v746 = vunpack.c.l.b16 %v665
      %v747 = vunpack.c.l.b16 %v679
      %v748 = vunpack.c.l.b16 %v689
      %v749 = vunpack.c.l.b16 %v703
      %v750 = vunpack.c.l.b16 %v713
      %v751 = vpack.c.b16 %v720, %v719
      %v752 = vpack.c.b16 %v722, %v721
      %v753 = vpack.c.b16 %v724, %v723
      %v754 = vpack.c.b16 %v726, %v725
      %v755 = vpack.c.b16 %v728, %v727
      %v756 = vpack.c.b16 %v730, %v729
      %v757 = vpack.c.b16 %v732, %v731
      %v758 = vpack.c.b16 %v734, %v733
      %v759 = vpack.c.b16 %v736, %v735
      %v760 = vpack.c.b16 %v738, %v737
      %v761 = vpack.c.b16 %v740, %v739
      %v762 = vpack.c.b16 %v742, %v741
      %v763 = vpack.c.b16 %v744, %v743
      %v764 = vpack.c.b16 %v746, %v745
      %v765 = vpack.c.b16 %v748, %v747
      %v766 = vpack.c.b16 %v750, %v749
      %v771 = vunpack.c.l.b16 %v715
      %v772 = vunpack.c.l.b16 %v716
      %v773 = vunpack.c.l.b16 %v717
      %v774 = vunpack.c.l.b16 %v718
      %v775 = vpack.c.b16 %v772, %v771
      %v776 = vpack.c.b16 %v774, %v773
      %vm779 = vcmask 261120
      %v781 = vsel %vm779, %v751, 0
      %v784 = vsel %vm779, %v752, 0
      %v787 = vsel %vm779, %v753, 0
      %v790 = vsel %vm779, %v754, 0
      %v793 = vsel %vm779, %v755, 0
      %v796 = vsel %vm779, %v756, 0
      %v799 = vsel %vm779, %v757, 0
      %v802 = vsel %vm779, %v758, 0
      %v805 = vsel %vm779, %v759, 0
      %v808 = vsel %vm779, %v760, 0
      %v811 = vsel %vm779, %v761, 0
      %v814 = vsel %vm779, %v762, 0
      %v817 = vsel %vm779, %v763, 0
      %v820 = vsel %vm779, %v764, 0
      %v823 = vsel %vm779, %v765, 0
      %v826 = vsel %vm779, %v766, 0
      %828 = vmatpush.bf16.msra.mxu0 0
      %829 = vmatpush.bf16.msra.mxu0 0
      %830 = vmatpush.bf16.msra.mxu0 0
      %831 = vmatpush.bf16.msra.mxu0 0
      %832 = vmatpush.bf16.msra.mxu0 0
      %833 = vmatpush.bf16.msra.mxu0 0
      %834 = vmatpush.bf16.msra.mxu0 %v776
      %835 = vmatpush.bf16.msra.mxu0 %v775
      %836 = vmatmul.bf16.gmra.mxu0 %v781
      %v837 = vpop.f32.mrf.mxu0
      %v838 = vadd.f32 0.0, %v837
      %v839 = vpop.f32.mrf.mxu0
      %v840 = vadd.f32 0.0, %v839
      %841 = vmatmul.bf16.gmra.mxu0 %v784
      %v842 = vpop.f32.mrf.mxu0
      %v843 = vadd.f32 0.0, %v842
      %v844 = vpop.f32.mrf.mxu0
      %v845 = vadd.f32 0.0, %v844
      %846 = vmatmul.bf16.gmra.mxu0 %v787
      %v847 = vpop.f32.mrf.mxu0
      %v848 = vadd.f32 0.0, %v847
      %v849 = vpop.f32.mrf.mxu0
      %v850 = vadd.f32 0.0, %v849
      %851 = vmatmul.bf16.gmra.mxu0 %v790
      %v852 = vpop.f32.mrf.mxu0
      %v853 = vadd.f32 0.0, %v852
      %v854 = vpop.f32.mrf.mxu0
      %v855 = vadd.f32 0.0, %v854
      %856 = vmatmul.bf16.gmra.mxu0 %v793
      %v857 = vpop.f32.mrf.mxu0
      %v858 = vadd.f32 0.0, %v857
      %v859 = vpop.f32.mrf.mxu0
      %v860 = vadd.f32 0.0, %v859
      %861 = vmatmul.bf16.gmra.mxu0 %v796
      %v862 = vpop.f32.mrf.mxu0
      %v863 = vadd.f32 0.0, %v862
      %v864 = vpop.f32.mrf.mxu0
      %v865 = vadd.f32 0.0, %v864
      %866 = vmatmul.bf16.gmra.mxu0 %v799
      %v867 = vpop.f32.mrf.mxu0
      %v868 = vadd.f32 0.0, %v867
      %v869 = vpop.f32.mrf.mxu0
      %v870 = vadd.f32 0.0, %v869
      %871 = vmatmul.bf16.gmra.mxu0 %v802
      %v872 = vpop.f32.mrf.mxu0
      %v873 = vadd.f32 0.0, %v872
      %v874 = vpop.f32.mrf.mxu0
      %v875 = vadd.f32 0.0, %v874
      %876 = vmatmul.bf16.gmra.mxu0 %v805
      %v877 = vpop.f32.mrf.mxu0
      %v878 = vadd.f32 0.0, %v877
      %v879 = vpop.f32.mrf.mxu0
      %v880 = vadd.f32 0.0, %v879
      %881 = vmatmul.bf16.gmra.mxu0 %v808
      %v882 = vpop.f32.mrf.mxu0
      %v883 = vadd.f32 0.0, %v882
      %v884 = vpop.f32.mrf.mxu0
      %v885 = vadd.f32 0.0, %v884
      %886 = vmatmul.bf16.gmra.mxu0 %v811
      %v887 = vpop.f32.mrf.mxu0
      %v888 = vadd.f32 0.0, %v887
      %v889 = vpop.f32.mrf.mxu0
      %v890 = vadd.f32 0.0, %v889
      %891 = vmatmul.bf16.gmra.mxu0 %v814
      %v892 = vpop.f32.mrf.mxu0
      %v893 = vadd.f32 0.0, %v892
      %v894 = vpop.f32.mrf.mxu0
      %v895 = vadd.f32 0.0, %v894
      %896 = vmatmul.bf16.gmra.mxu0 %v817
      %v897 = vpop.f32.mrf.mxu0
      %v898 = vadd.f32 0.0, %v897
      %v899 = vpop.f32.mrf.mxu0
      %v900 = vadd.f32 0.0, %v899
      %901 = vmatmul.bf16.gmra.mxu0 %v820
      %v902 = vpop.f32.mrf.mxu0
      %v903 = vadd.f32 0.0, %v902
      %v904 = vpop.f32.mrf.mxu0
      %v905 = vadd.f32 0.0, %v904
      %906 = vmatmul.bf16.gmra.mxu0 %v823
      %v907 = vpop.f32.mrf.mxu0
      %v908 = vadd.f32 0.0, %v907
      %v909 = vpop.f32.mrf.mxu0
      %v910 = vadd.f32 0.0, %v909
      %911 = vmatmul.bf16.gmra.mxu0 %v826
      %v912 = vpop.f32.mrf.mxu0
      %v913 = vadd.f32 0.0, %v912
      %v914 = vpop.f32.mrf.mxu0
      %v915 = vadd.f32 0.0, %v914
      %916 = vdwg.mxu0
      %v949 = vunpack.c.l.b16 %v269
      %v950 = vunpack.c.l.b16 %v270
      %v951 = vunpack.c.l.b16 %v272
      %v952 = vunpack.c.l.b16 %v273
      %v953 = vunpack.c.l.b16 %v275
      %v954 = vunpack.c.l.b16 %v276
      %v955 = vunpack.c.l.b16 %v278
      %v956 = vunpack.c.l.b16 %v279
      %v957 = vunpack.c.l.b16 %v281
      %v958 = vunpack.c.l.b16 %v282
      %v959 = vunpack.c.l.b16 %v284
      %v960 = vunpack.c.l.b16 %v285
      %v961 = vunpack.c.l.b16 %v287
      %v962 = vunpack.c.l.b16 %v288
      %v963 = vunpack.c.l.b16 %v290
      %v964 = vunpack.c.l.b16 %v291
      %v965 = vunpack.c.l.b16 %v293
      %v966 = vunpack.c.l.b16 %v294
      %v967 = vunpack.c.l.b16 %v296
      %v968 = vunpack.c.l.b16 %v297
      %v969 = vunpack.c.l.b16 %v299
      %v970 = vunpack.c.l.b16 %v300
      %v971 = vunpack.c.l.b16 %v302
      %v972 = vunpack.c.l.b16 %v303
      %v973 = vunpack.c.l.b16 %v305
      %v974 = vunpack.c.l.b16 %v306
      %v975 = vunpack.c.l.b16 %v308
      %v976 = vunpack.c.l.b16 %v309
      %v977 = vunpack.c.l.b16 %v311
      %v978 = vunpack.c.l.b16 %v312
      %v979 = vunpack.c.l.b16 %v314
      %v980 = vunpack.c.l.b16 %v315
      %v981 = vpack.c.b16 %v950, %v949
      %v982 = vpack.c.b16 %v952, %v951
      %v983 = vpack.c.b16 %v954, %v953
      %v984 = vpack.c.b16 %v956, %v955
      %v985 = vpack.c.b16 %v958, %v957
      %v986 = vpack.c.b16 %v960, %v959
      %v987 = vpack.c.b16 %v962, %v961
      %v988 = vpack.c.b16 %v964, %v963
      %v989 = vpack.c.b16 %v966, %v965
      %v990 = vpack.c.b16 %v968, %v967
      %v991 = vpack.c.b16 %v970, %v969
      %v992 = vpack.c.b16 %v972, %v971
      %v993 = vpack.c.b16 %v974, %v973
      %v994 = vpack.c.b16 %v976, %v975
      %v995 = vpack.c.b16 %v978, %v977
      %v996 = vpack.c.b16 %v980, %v979
      %v1001 = vunpack.c.l.b16 %v323
      %v1002 = vunpack.c.l.b16 %v324
      %v1003 = vunpack.c.l.b16 %v325
      %v1004 = vunpack.c.l.b16 %v326
      %v1005 = vpack.c.b16 %v1002, %v1001
      %v1006 = vpack.c.b16 %v1004, %v1003
      %v1010 = vsel %vm779, %v981, 0
      %v1013 = vsel %vm779, %v982, 0
      %v1016 = vsel %vm779, %v983, 0
      %v1019 = vsel %vm779, %v984, 0
      %v1022 = vsel %vm779, %v985, 0
      %v1025 = vsel %vm779, %v986, 0
      %v1028 = vsel %vm779, %v987, 0
      %v1031 = vsel %vm779, %v988, 0
      %v1034 = vsel %vm779, %v989, 0
      %v1037 = vsel %vm779, %v990, 0
      %v1040 = vsel %vm779, %v991, 0
      %v1043 = vsel %vm779, %v992, 0
      %v1046 = vsel %vm779, %v993, 0
      %v1049 = vsel %vm779, %v994, 0
      %v1052 = vsel %vm779, %v995, 0
      %v1055 = vsel %vm779, %v996, 0
      %1057 = vmatpush.bf16.msra.mxu0 0
      %1058 = vmatpush.bf16.msra.mxu0 0
      %1059 = vmatpush.bf16.msra.mxu0 0
      %1060 = vmatpush.bf16.msra.mxu0 0
      %1061 = vmatpush.bf16.msra.mxu0 0
      %1062 = vmatpush.bf16.msra.mxu0 0
      %1063 = vmatpush.bf16.msra.mxu0 %v1006
      %1064 = vmatpush.bf16.msra.mxu0 %v1005
      %1065 = vmatmul.bf16.gmra.mxu0 %v1010
      %v1066 = vpop.f32.mrf.mxu0
      %v1067 = vadd.f32 %v838, %v1066
      %v1068 = vpop.f32.mrf.mxu0
      %v1069 = vadd.f32 %v840, %v1068
      %1070 = vmatmul.bf16.gmra.mxu0 %v1013
      %v1071 = vpop.f32.mrf.mxu0
      %v1072 = vadd.f32 %v843, %v1071
      %v1073 = vpop.f32.mrf.mxu0
      %v1074 = vadd.f32 %v845, %v1073
      %1075 = vmatmul.bf16.gmra.mxu0 %v1016
      %v1076 = vpop.f32.mrf.mxu0
      %v1077 = vadd.f32 %v848, %v1076
      %v1078 = vpop.f32.mrf.mxu0
      %v1079 = vadd.f32 %v850, %v1078
      %1080 = vmatmul.bf16.gmra.mxu0 %v1019
      %v1081 = vpop.f32.mrf.mxu0
      %v1082 = vadd.f32 %v853, %v1081
      %v1083 = vpop.f32.mrf.mxu0
      %v1084 = vadd.f32 %v855, %v1083
      %1085 = vmatmul.bf16.gmra.mxu0 %v1022
      %v1086 = vpop.f32.mrf.mxu0
      %v1087 = vadd.f32 %v858, %v1086
      %v1088 = vpop.f32.mrf.mxu0
      %v1089 = vadd.f32 %v860, %v1088
      %1090 = vmatmul.bf16.gmra.mxu0 %v1025
      %v1091 = vpop.f32.mrf.mxu0
      %v1092 = vadd.f32 %v863, %v1091
      %v1093 = vpop.f32.mrf.mxu0
      %v1094 = vadd.f32 %v865, %v1093
      %1095 = vmatmul.bf16.gmra.mxu0 %v1028
      %v1096 = vpop.f32.mrf.mxu0
      %v1097 = vadd.f32 %v868, %v1096
      %v1098 = vpop.f32.mrf.mxu0
      %v1099 = vadd.f32 %v870, %v1098
      %1100 = vmatmul.bf16.gmra.mxu0 %v1031
      %v1101 = vpop.f32.mrf.mxu0
      %v1102 = vadd.f32 %v873, %v1101
      %v1103 = vpop.f32.mrf.mxu0
      %v1104 = vadd.f32 %v875, %v1103
      %1105 = vmatmul.bf16.gmra.mxu0 %v1034
      %v1106 = vpop.f32.mrf.mxu0
      %v1107 = vadd.f32 %v878, %v1106
      %v1108 = vpop.f32.mrf.mxu0
      %v1109 = vadd.f32 %v880, %v1108
      %1110 = vmatmul.bf16.gmra.mxu0 %v1037
      %v1111 = vpop.f32.mrf.mxu0
      %v1112 = vadd.f32 %v883, %v1111
      %v1113 = vpop.f32.mrf.mxu0
      %v1114 = vadd.f32 %v885, %v1113
      %1115 = vmatmul.bf16.gmra.mxu0 %v1040
      %v1116 = vpop.f32.mrf.mxu0
      %v1117 = vadd.f32 %v888, %v1116
      %v1118 = vpop.f32.mrf.mxu0
      %v1119 = vadd.f32 %v890, %v1118
      %1120 = vmatmul.bf16.gmra.mxu0 %v1043
      %v1121 = vpop.f32.mrf.mxu0
      %v1122 = vadd.f32 %v893, %v1121
      %v1123 = vpop.f32.mrf.mxu0
      %v1124 = vadd.f32 %v895, %v1123
      %1125 = vmatmul.bf16.gmra.mxu0 %v1046
      %v1126 = vpop.f32.mrf.mxu0
      %v1127 = vadd.f32 %v898, %v1126
      %v1128 = vpop.f32.mrf.mxu0
      %v1129 = vadd.f32 %v900, %v1128
      %1130 = vmatmul.bf16.gmra.mxu0 %v1049
      %v1131 = vpop.f32.mrf.mxu0
      %v1132 = vadd.f32 %v903, %v1131
      %v1133 = vpop.f32.mrf.mxu0
      %v1134 = vadd.f32 %v905, %v1133
      %1135 = vmatmul.bf16.gmra.mxu0 %v1052
      %v1136 = vpop.f32.mrf.mxu0
      %v1137 = vadd.f32 %v908, %v1136
      %v1138 = vpop.f32.mrf.mxu0
      %v1139 = vadd.f32 %v910, %v1138
      %1140 = vmatmul.bf16.gmra.mxu0 %v1055
      %v1141 = vpop.f32.mrf.mxu0
      %v1142 = vadd.f32 %v913, %v1141
      %v1143 = vpop.f32.mrf.mxu0
      %v1144 = vadd.f32 %v915, %v1143
      %1145 = vdwg.mxu0
      %vm1162 = vcmask 1042432
      %vm1163 = vcmask 1046532
      %vm1164 = vmor %vm1162, %vm1163
      %v1165 = vrot.slane %v269, 5
      %v1166 = vrot.slane %v1165, 4
      %v1167 = vrot.slane %v270, 5
      %v1168 = vsel %vm1164, %v1166, %v1167
      %v1169 = vrot.slane %v1167, 4
      %v1170 = vrot.slane %v271, 5
      %v1171 = vsel %vm1164, %v1169, %v1170
      %v1172 = vrot.slane %v272, 5
      %v1173 = vrot.slane %v1172, 4
      %v1174 = vrot.slane %v273, 5
      %v1175 = vsel %vm1164, %v1173, %v1174
      %v1176 = vrot.slane %v1174, 4
      %v1177 = vrot.slane %v274, 5
      %v1178 = vsel %vm1164, %v1176, %v1177
      %v1179 = vrot.slane %v275, 5
      %v1180 = vrot.slane %v1179, 4
      %v1181 = vrot.slane %v276, 5
      %v1182 = vsel %vm1164, %v1180, %v1181
      %v1183 = vrot.slane %v1181, 4
      %v1184 = vrot.slane %v277, 5
      %v1185 = vsel %vm1164, %v1183, %v1184
      %v1186 = vrot.slane %v278, 5
      %v1187 = vrot.slane %v1186, 4
      %v1188 = vrot.slane %v279, 5
      %v1189 = vsel %vm1164, %v1187, %v1188
      %v1190 = vrot.slane %v1188, 4
      %v1191 = vrot.slane %v280, 5
      %v1192 = vsel %vm1164, %v1190, %v1191
      %v1193 = vrot.slane %v281, 5
      %v1194 = vrot.slane %v1193, 4
      %v1195 = vrot.slane %v282, 5
      %v1196 = vsel %vm1164, %v1194, %v1195
      %v1197 = vrot.slane %v1195, 4
      %v1198 = vrot.slane %v283, 5
      %v1199 = vsel %vm1164, %v1197, %v1198
      %v1200 = vrot.slane %v284, 5
      %v1201 = vrot.slane %v1200, 4
      %v1202 = vrot.slane %v285, 5
      %v1203 = vsel %vm1164, %v1201, %v1202
      %v1204 = vrot.slane %v1202, 4
      %v1205 = vrot.slane %v286, 5
      %v1206 = vsel %vm1164, %v1204, %v1205
      %v1207 = vrot.slane %v287, 5
      %v1208 = vrot.slane %v1207, 4
      %v1209 = vrot.slane %v288, 5
      %v1210 = vsel %vm1164, %v1208, %v1209
      %v1211 = vrot.slane %v1209, 4
      %v1212 = vrot.slane %v289, 5
      %v1213 = vsel %vm1164, %v1211, %v1212
      %v1214 = vrot.slane %v290, 5
      %v1215 = vrot.slane %v1214, 4
      %v1216 = vrot.slane %v291, 5
      %v1217 = vsel %vm1164, %v1215, %v1216
      %v1218 = vrot.slane %v1216, 4
      %v1219 = vrot.slane %v292, 5
      %v1220 = vsel %vm1164, %v1218, %v1219
      %v1221 = vrot.slane %v293, 5
      %v1222 = vrot.slane %v1221, 4
      %v1223 = vrot.slane %v294, 5
      %v1224 = vsel %vm1164, %v1222, %v1223
      %v1225 = vrot.slane %v1223, 4
      %v1226 = vrot.slane %v295, 5
      %v1227 = vsel %vm1164, %v1225, %v1226
      %v1228 = vrot.slane %v296, 5
      %v1229 = vrot.slane %v1228, 4
      %v1230 = vrot.slane %v297, 5
      %v1231 = vsel %vm1164, %v1229, %v1230
      %v1232 = vrot.slane %v1230, 4
      %v1233 = vrot.slane %v298, 5
      %v1234 = vsel %vm1164, %v1232, %v1233
      %v1235 = vrot.slane %v299, 5
      %v1236 = vrot.slane %v1235, 4
      %v1237 = vrot.slane %v300, 5
      %v1238 = vsel %vm1164, %v1236, %v1237
      %v1239 = vrot.slane %v1237, 4
      %v1240 = vrot.slane %v301, 5
      %v1241 = vsel %vm1164, %v1239, %v1240
      %v1242 = vrot.slane %v302, 5
      %v1243 = vrot.slane %v1242, 4
      %v1244 = vrot.slane %v303, 5
      %v1245 = vsel %vm1164, %v1243, %v1244
      %v1246 = vrot.slane %v1244, 4
      %v1247 = vrot.slane %v304, 5
      %v1248 = vsel %vm1164, %v1246, %v1247
      %v1249 = vrot.slane %v305, 5
      %v1250 = vrot.slane %v1249, 4
      %v1251 = vrot.slane %v306, 5
      %v1252 = vsel %vm1164, %v1250, %v1251
      %v1253 = vrot.slane %v1251, 4
      %v1254 = vrot.slane %v307, 5
      %v1255 = vsel %vm1164, %v1253, %v1254
      %v1256 = vrot.slane %v308, 5
      %v1257 = vrot.slane %v1256, 4
      %v1258 = vrot.slane %v309, 5
      %v1259 = vsel %vm1164, %v1257, %v1258
      %v1260 = vrot.slane %v1258, 4
      %v1261 = vrot.slane %v310, 5
      %v1262 = vsel %vm1164, %v1260, %v1261
      %v1263 = vrot.slane %v311, 5
      %v1264 = vrot.slane %v1263, 4
      %v1265 = vrot.slane %v312, 5
      %v1266 = vsel %vm1164, %v1264, %v1265
      %v1267 = vrot.slane %v1265, 4
      %v1268 = vrot.slane %v313, 5
      %v1269 = vsel %vm1164, %v1267, %v1268
      %v1270 = vrot.slane %v314, 5
      %v1271 = vrot.slane %v1270, 4
      %v1272 = vrot.slane %v315, 5
      %v1273 = vsel %vm1164, %v1271, %v1272
      %v1274 = vrot.slane %v1272, 4
      %v1275 = vrot.slane %v316, 5
      %v1276 = vsel %vm1164, %v1274, %v1275
      %s1277 = scalar_lea.vmem %s247, 32
      %v1278 = vld [vmem:[%s1277] sm:$0xf]
      %v1279 = vld [vmem:[%s1277 + $0x4] sm:$0xf]
      %v1280 = vld [vmem:[%s1277 + $0x8] sm:$0xf]
      %v1281 = vld [vmem:[%s1277 + $0xc] sm:$0xf]
      %v1282 = vunpack.c.l.b16 %v1168
      %v1283 = vunpack.c.l.b16 %v1171
      %v1284 = vunpack.c.l.b16 %v1175
      %v1285 = vunpack.c.l.b16 %v1178
      %v1286 = vunpack.c.l.b16 %v1182
      %v1287 = vunpack.c.l.b16 %v1185
      %v1288 = vunpack.c.l.b16 %v1189
      %v1289 = vunpack.c.l.b16 %v1192
      %v1290 = vunpack.c.l.b16 %v1196
      %v1291 = vunpack.c.l.b16 %v1199
      %v1292 = vunpack.c.l.b16 %v1203
      %v1293 = vunpack.c.l.b16 %v1206
      %v1294 = vunpack.c.l.b16 %v1210
      %v1295 = vunpack.c.l.b16 %v1213
      %v1296 = vunpack.c.l.b16 %v1217
      %v1297 = vunpack.c.l.b16 %v1220
      %v1298 = vunpack.c.l.b16 %v1224
      %v1299 = vunpack.c.l.b16 %v1227
      %v1300 = vunpack.c.l.b16 %v1231
      %v1301 = vunpack.c.l.b16 %v1234
      %v1302 = vunpack.c.l.b16 %v1238
      %v1303 = vunpack.c.l.b16 %v1241
      %v1304 = vunpack.c.l.b16 %v1245
      %v1305 = vunpack.c.l.b16 %v1248
      %v1306 = vunpack.c.l.b16 %v1252
      %v1307 = vunpack.c.l.b16 %v1255
      %v1308 = vunpack.c.l.b16 %v1259
      %v1309 = vunpack.c.l.b16 %v1262
      %v1310 = vunpack.c.l.b16 %v1266
      %v1311 = vunpack.c.l.b16 %v1269
      %v1312 = vunpack.c.l.b16 %v1273
      %v1313 = vunpack.c.l.b16 %v1276
      %v1314 = vpack.c.b16 %v1283, %v1282
      %v1315 = vpack.c.b16 %v1285, %v1284
      %v1316 = vpack.c.b16 %v1287, %v1286
      %v1317 = vpack.c.b16 %v1289, %v1288
      %v1318 = vpack.c.b16 %v1291, %v1290
      %v1319 = vpack.c.b16 %v1293, %v1292
      %v1320 = vpack.c.b16 %v1295, %v1294
      %v1321 = vpack.c.b16 %v1297, %v1296
      %v1322 = vpack.c.b16 %v1299, %v1298
      %v1323 = vpack.c.b16 %v1301, %v1300
      %v1324 = vpack.c.b16 %v1303, %v1302
      %v1325 = vpack.c.b16 %v1305, %v1304
      %v1326 = vpack.c.b16 %v1307, %v1306
      %v1327 = vpack.c.b16 %v1309, %v1308
      %v1328 = vpack.c.b16 %v1311, %v1310
      %v1329 = vpack.c.b16 %v1313, %v1312
      %v1334 = vunpack.c.l.b16 %v1278
      %v1335 = vunpack.c.l.b16 %v1279
      %v1336 = vunpack.c.l.b16 %v1280
      %v1337 = vunpack.c.l.b16 %v1281
      %v1338 = vpack.c.b16 %v1335, %v1334
      %v1339 = vpack.c.b16 %v1337, %v1336
      %v1343 = vsel %vm779, %v1314, 0
      %v1346 = vsel %vm779, %v1315, 0
      %v1349 = vsel %vm779, %v1316, 0
      %v1352 = vsel %vm779, %v1317, 0
      %v1355 = vsel %vm779, %v1318, 0
      %v1358 = vsel %vm779, %v1319, 0
      %v1361 = vsel %vm779, %v1320, 0
      %v1364 = vsel %vm779, %v1321, 0
      %v1367 = vsel %vm779, %v1322, 0
      %v1370 = vsel %vm779, %v1323, 0
      %v1373 = vsel %vm779, %v1324, 0
      %v1376 = vsel %vm779, %v1325, 0
      %v1379 = vsel %vm779, %v1326, 0
      %v1382 = vsel %vm779, %v1327, 0
      %v1385 = vsel %vm779, %v1328, 0
      %v1388 = vsel %vm779, %v1329, 0
      %1390 = vmatpush.bf16.msra.mxu0 0
      %1391 = vmatpush.bf16.msra.mxu0 0
      %1392 = vmatpush.bf16.msra.mxu0 0
      %1393 = vmatpush.bf16.msra.mxu0 0
      %1394 = vmatpush.bf16.msra.mxu0 0
      %1395 = vmatpush.bf16.msra.mxu0 0
      %1396 = vmatpush.bf16.msra.mxu0 %v1339
      %1397 = vmatpush.bf16.msra.mxu0 %v1338
      %1398 = vmatmul.bf16.gmra.mxu0 %v1343
      %v1399 = vpop.f32.mrf.mxu0
      %v1400 = vadd.f32 0.0, %v1399
      %v1401 = vpop.f32.mrf.mxu0
      %v1402 = vadd.f32 0.0, %v1401
      %1403 = vmatmul.bf16.gmra.mxu0 %v1346
      %v1404 = vpop.f32.mrf.mxu0
      %v1405 = vadd.f32 0.0, %v1404
      %v1406 = vpop.f32.mrf.mxu0
      %v1407 = vadd.f32 0.0, %v1406
      %1408 = vmatmul.bf16.gmra.mxu0 %v1349
      %v1409 = vpop.f32.mrf.mxu0
      %v1410 = vadd.f32 0.0, %v1409
      %v1411 = vpop.f32.mrf.mxu0
      %v1412 = vadd.f32 0.0, %v1411
      %1413 = vmatmul.bf16.gmra.mxu0 %v1352
      %v1414 = vpop.f32.mrf.mxu0
      %v1415 = vadd.f32 0.0, %v1414
      %v1416 = vpop.f32.mrf.mxu0
      %v1417 = vadd.f32 0.0, %v1416
      %1418 = vmatmul.bf16.gmra.mxu0 %v1355
      %v1419 = vpop.f32.mrf.mxu0
      %v1420 = vadd.f32 0.0, %v1419
      %v1421 = vpop.f32.mrf.mxu0
      %v1422 = vadd.f32 0.0, %v1421
      %1423 = vmatmul.bf16.gmra.mxu0 %v1358
      %v1424 = vpop.f32.mrf.mxu0
      %v1425 = vadd.f32 0.0, %v1424
      %v1426 = vpop.f32.mrf.mxu0
      %v1427 = vadd.f32 0.0, %v1426
      %1428 = vmatmul.bf16.gmra.mxu0 %v1361
      %v1429 = vpop.f32.mrf.mxu0
      %v1430 = vadd.f32 0.0, %v1429
      %v1431 = vpop.f32.mrf.mxu0
      %v1432 = vadd.f32 0.0, %v1431
      %1433 = vmatmul.bf16.gmra.mxu0 %v1364
      %v1434 = vpop.f32.mrf.mxu0
      %v1435 = vadd.f32 0.0, %v1434
      %v1436 = vpop.f32.mrf.mxu0
      %v1437 = vadd.f32 0.0, %v1436
      %1438 = vmatmul.bf16.gmra.mxu0 %v1367
      %v1439 = vpop.f32.mrf.mxu0
      %v1440 = vadd.f32 0.0, %v1439
      %v1441 = vpop.f32.mrf.mxu0
      %v1442 = vadd.f32 0.0, %v1441
      %1443 = vmatmul.bf16.gmra.mxu0 %v1370
      %v1444 = vpop.f32.mrf.mxu0
      %v1445 = vadd.f32 0.0, %v1444
      %v1446 = vpop.f32.mrf.mxu0
      %v1447 = vadd.f32 0.0, %v1446
      %1448 = vmatmul.bf16.gmra.mxu0 %v1373
      %v1449 = vpop.f32.mrf.mxu0
      %v1450 = vadd.f32 0.0, %v1449
      %v1451 = vpop.f32.mrf.mxu0
      %v1452 = vadd.f32 0.0, %v1451
      %1453 = vmatmul.bf16.gmra.mxu0 %v1376
      %v1454 = vpop.f32.mrf.mxu0
      %v1455 = vadd.f32 0.0, %v1454
      %v1456 = vpop.f32.mrf.mxu0
      %v1457 = vadd.f32 0.0, %v1456
      %1458 = vmatmul.bf16.gmra.mxu0 %v1379
      %v1459 = vpop.f32.mrf.mxu0
      %v1460 = vadd.f32 0.0, %v1459
      %v1461 = vpop.f32.mrf.mxu0
      %v1462 = vadd.f32 0.0, %v1461
      %1463 = vmatmul.bf16.gmra.mxu0 %v1382
      %v1464 = vpop.f32.mrf.mxu0
      %v1465 = vadd.f32 0.0, %v1464
      %v1466 = vpop.f32.mrf.mxu0
      %v1467 = vadd.f32 0.0, %v1466
      %1468 = vmatmul.bf16.gmra.mxu0 %v1385
      %v1469 = vpop.f32.mrf.mxu0
      %v1470 = vadd.f32 0.0, %v1469
      %v1471 = vpop.f32.mrf.mxu0
      %v1472 = vadd.f32 0.0, %v1471
      %1473 = vmatmul.bf16.gmra.mxu0 %v1388
      %v1474 = vpop.f32.mrf.mxu0
      %v1475 = vadd.f32 0.0, %v1474
      %v1476 = vpop.f32.mrf.mxu0
      %v1477 = vadd.f32 0.0, %v1476
      %1478 = vdwg.mxu0
      %v1479 = vadd.f32 %v1067, %v1400
      %v1480 = vadd.f32 %v1069, %v1402
      %v1481 = vadd.f32 %v1072, %v1405
      %v1482 = vadd.f32 %v1074, %v1407
      %v1483 = vadd.f32 %v1077, %v1410
      %v1484 = vadd.f32 %v1079, %v1412
      %v1485 = vadd.f32 %v1082, %v1415
      %v1486 = vadd.f32 %v1084, %v1417
      %v1487 = vadd.f32 %v1087, %v1420
      %v1488 = vadd.f32 %v1089, %v1422
      %v1489 = vadd.f32 %v1092, %v1425
      %v1490 = vadd.f32 %v1094, %v1427
      %v1491 = vadd.f32 %v1097, %v1430
      %v1492 = vadd.f32 %v1099, %v1432
      %v1493 = vadd.f32 %v1102, %v1435
      %v1494 = vadd.f32 %v1104, %v1437
      %v1495 = vadd.f32 %v1107, %v1440
      %v1496 = vadd.f32 %v1109, %v1442
      %v1497 = vadd.f32 %v1112, %v1445
      %v1498 = vadd.f32 %v1114, %v1447
      %v1499 = vadd.f32 %v1117, %v1450
      %v1500 = vadd.f32 %v1119, %v1452
      %v1501 = vadd.f32 %v1122, %v1455
      %v1502 = vadd.f32 %v1124, %v1457
      %v1503 = vadd.f32 %v1127, %v1460
      %v1504 = vadd.f32 %v1129, %v1462
      %v1505 = vadd.f32 %v1132, %v1465
      %v1506 = vadd.f32 %v1134, %v1467
      %v1507 = vadd.f32 %v1137, %v1470
      %v1508 = vadd.f32 %v1139, %v1472
      %v1509 = vadd.f32 %v1142, %v1475
      %v1510 = vadd.f32 %v1144, %v1477
      %s1511 = scalar_lea.vmem %s247, 48
      %v1512 = vld [vmem:[%s1511] sm:$0xf]
      %v1513 = vld [vmem:[%s1511 + $0x4] sm:$0xf]
      %v1514 = vld [vmem:[%s1511 + $0x8] sm:$0xf]
      %v1515 = vld [vmem:[%s1511 + $0xc] sm:$0xf]
      %v1518 = vunpack.c.l.b16 %v317
      %v1519 = vunpack.c.l.b16 %v318
      %v1520 = vpack.c.b16 %v1519, %v1518
      %v1525 = vunpack.c.l.b16 %v1512
      %v1526 = vunpack.c.l.b16 %v1513
      %v1527 = vunpack.c.l.b16 %v1514
      %v1528 = vunpack.c.l.b16 %v1515
      %v1529 = vpack.c.b16 %v1526, %v1525
      %v1530 = vpack.c.b16 %v1528, %v1527
      %v1534 = vsel %vm779, %v1520, 0
      %1536 = vmatpush.bf16.msra.mxu0 0
      %1537 = vmatpush.bf16.msra.mxu0 0
      %1538 = vmatpush.bf16.msra.mxu0 0
      %1539 = vmatpush.bf16.msra.mxu0 0
      %1540 = vmatpush.bf16.msra.mxu0 0
      %1541 = vmatpush.bf16.msra.mxu0 0
      %1542 = vmatpush.bf16.msra.mxu0 %v1530
      %1543 = vmatpush.bf16.msra.mxu0 %v1529
      %1544 = vmatmul.bf16.gmra.mxu0 %v1013
      %v1545 = vpop.f32.mrf.mxu0
      %v1546 = vadd.f32 0.0, %v1545
      %v1547 = vpop.f32.mrf.mxu0
      %v1548 = vadd.f32 0.0, %v1547
      %1549 = vmatmul.bf16.gmra.mxu0 %v1016
      %v1550 = vpop.f32.mrf.mxu0
      %v1551 = vadd.f32 0.0, %v1550
      %v1552 = vpop.f32.mrf.mxu0
      %v1553 = vadd.f32 0.0, %v1552
      %1554 = vmatmul.bf16.gmra.mxu0 %v1019
      %v1555 = vpop.f32.mrf.mxu0
      %v1556 = vadd.f32 0.0, %v1555
      %v1557 = vpop.f32.mrf.mxu0
      %v1558 = vadd.f32 0.0, %v1557
      %1559 = vmatmul.bf16.gmra.mxu0 %v1022
      %v1560 = vpop.f32.mrf.mxu0
      %v1561 = vadd.f32 0.0, %v1560
      %v1562 = vpop.f32.mrf.mxu0
      %v1563 = vadd.f32 0.0, %v1562
      %1564 = vmatmul.bf16.gmra.mxu0 %v1025
      %v1565 = vpop.f32.mrf.mxu0
      %v1566 = vadd.f32 0.0, %v1565
      %v1567 = vpop.f32.mrf.mxu0
      %v1568 = vadd.f32 0.0, %v1567
      %1569 = vmatmul.bf16.gmra.mxu0 %v1028
      %v1570 = vpop.f32.mrf.mxu0
      %v1571 = vadd.f32 0.0, %v1570
      %v1572 = vpop.f32.mrf.mxu0
      %v1573 = vadd.f32 0.0, %v1572
      %1574 = vmatmul.bf16.gmra.mxu0 %v1031
      %v1575 = vpop.f32.mrf.mxu0
      %v1576 = vadd.f32 0.0, %v1575
      %v1577 = vpop.f32.mrf.mxu0
      %v1578 = vadd.f32 0.0, %v1577
      %1579 = vmatmul.bf16.gmra.mxu0 %v1034
      %v1580 = vpop.f32.mrf.mxu0
      %v1581 = vadd.f32 0.0, %v1580
      %v1582 = vpop.f32.mrf.mxu0
      %v1583 = vadd.f32 0.0, %v1582
      %1584 = vmatmul.bf16.gmra.mxu0 %v1037
      %v1585 = vpop.f32.mrf.mxu0
      %v1586 = vadd.f32 0.0, %v1585
      %v1587 = vpop.f32.mrf.mxu0
      %v1588 = vadd.f32 0.0, %v1587
      %1589 = vmatmul.bf16.gmra.mxu0 %v1040
      %v1590 = vpop.f32.mrf.mxu0
      %v1591 = vadd.f32 0.0, %v1590
      %v1592 = vpop.f32.mrf.mxu0
      %v1593 = vadd.f32 0.0, %v1592
      %1594 = vmatmul.bf16.gmra.mxu0 %v1043
      %v1595 = vpop.f32.mrf.mxu0
      %v1596 = vadd.f32 0.0, %v1595
      %v1597 = vpop.f32.mrf.mxu0
      %v1598 = vadd.f32 0.0, %v1597
      %1599 = vmatmul.bf16.gmra.mxu0 %v1046
      %v1600 = vpop.f32.mrf.mxu0
      %v1601 = vadd.f32 0.0, %v1600
      %v1602 = vpop.f32.mrf.mxu0
      %v1603 = vadd.f32 0.0, %v1602
      %1604 = vmatmul.bf16.gmra.mxu0 %v1049
      %v1605 = vpop.f32.mrf.mxu0
      %v1606 = vadd.f32 0.0, %v1605
      %v1607 = vpop.f32.mrf.mxu0
      %v1608 = vadd.f32 0.0, %v1607
      %1609 = vmatmul.bf16.gmra.mxu0 %v1052
      %v1610 = vpop.f32.mrf.mxu0
      %v1611 = vadd.f32 0.0, %v1610
      %v1612 = vpop.f32.mrf.mxu0
      %v1613 = vadd.f32 0.0, %v1612
      %1614 = vmatmul.bf16.gmra.mxu0 %v1055
      %v1615 = vpop.f32.mrf.mxu0
      %v1616 = vadd.f32 0.0, %v1615
      %v1617 = vpop.f32.mrf.mxu0
      %v1618 = vadd.f32 0.0, %v1617
      %1619 = vmatmul.bf16.gmra.mxu0 %v1534
      %v1620 = vpop.f32.mrf.mxu0
      %v1621 = vadd.f32 0.0, %v1620
      %v1622 = vpop.f32.mrf.mxu0
      %v1623 = vadd.f32 0.0, %v1622
      %1624 = vdwg.mxu0
      %v1625 = vadd.f32 %v1479, %v1546
      %v1626 = vadd.f32 %v1480, %v1548
      %v1627 = vadd.f32 %v1481, %v1551
      %v1628 = vadd.f32 %v1482, %v1553
      %v1629 = vadd.f32 %v1483, %v1556
      %v1630 = vadd.f32 %v1484, %v1558
      %v1631 = vadd.f32 %v1485, %v1561
      %v1632 = vadd.f32 %v1486, %v1563
      %v1633 = vadd.f32 %v1487, %v1566
      %v1634 = vadd.f32 %v1488, %v1568
      %v1635 = vadd.f32 %v1489, %v1571
      %v1636 = vadd.f32 %v1490, %v1573
      %v1637 = vadd.f32 %v1491, %v1576
      %v1638 = vadd.f32 %v1492, %v1578
      %v1639 = vadd.f32 %v1493, %v1581
      %v1640 = vadd.f32 %v1494, %v1583
      %v1641 = vadd.f32 %v1495, %v1586
      %v1642 = vadd.f32 %v1496, %v1588
      %v1643 = vadd.f32 %v1497, %v1591
      %v1644 = vadd.f32 %v1498, %v1593
      %v1645 = vadd.f32 %v1499, %v1596
      %v1646 = vadd.f32 %v1500, %v1598
      %v1647 = vadd.f32 %v1501, %v1601
      %v1648 = vadd.f32 %v1502, %v1603
      %v1649 = vadd.f32 %v1503, %v1606
      %v1650 = vadd.f32 %v1504, %v1608
      %v1651 = vadd.f32 %v1505, %v1611
      %v1652 = vadd.f32 %v1506, %v1613
      %v1653 = vadd.f32 %v1507, %v1616
      %v1654 = vadd.f32 %v1508, %v1618
      %v1655 = vadd.f32 %v1509, %v1621
      %v1656 = vadd.f32 %v1510, %v1623
      %v1658 = vshrl.u32 %v317, 16
      %v1660 = vrot.slane %v1658, 4
      %v1661 = vshll.u32 %v317, 16
      %v1663 = vrot.slane %v1661, 5
      %v1664 = vor.u32 %v1660, %v1663
      %v1665 = vrot.slane %v1664, 4
      %v1667 = vshll.u32 %v318, 16
      %v1669 = vrot.slane %v1667, 5
      %v1670 = vsel %vm329, %v1665, %v1669
      %v1671 = vshrl.u32 %v318, 16
      %v1673 = vrot.slane %v1671, 4
      %v1674 = vor.u32 %v1673, %v1669
      %v1675 = vrot.slane %v1674, 4
      %v1677 = vshll.u32 %v319, 16
      %v1679 = vrot.slane %v1677, 5
      %v1680 = vsel %vm329, %v1675, %v1679
      %s1681 = scalar_lea.vmem %s247, 64
      %v1682 = vld [vmem:[%s1681] sm:$0xf]
      %v1683 = vld [vmem:[%s1681 + $0x4] sm:$0xf]
      %v1684 = vld [vmem:[%s1681 + $0x8] sm:$0xf]
      %v1685 = vld [vmem:[%s1681 + $0xc] sm:$0xf]
      %v1686 = vunpack.c.l.b16 %v1670
      %v1687 = vunpack.c.l.b16 %v1680
      %v1688 = vpack.c.b16 %v1687, %v1686
      %v1693 = vunpack.c.l.b16 %v1682
      %v1694 = vunpack.c.l.b16 %v1683
      %v1695 = vunpack.c.l.b16 %v1684
      %v1696 = vunpack.c.l.b16 %v1685
      %v1697 = vpack.c.b16 %v1694, %v1693
      %v1698 = vpack.c.b16 %v1696, %v1695
      %v1702 = vsel %vm779, %v1688, 0
      %1704 = vmatpush.bf16.msra.mxu0 0
      %1705 = vmatpush.bf16.msra.mxu0 0
      %1706 = vmatpush.bf16.msra.mxu0 0
      %1707 = vmatpush.bf16.msra.mxu0 0
      %1708 = vmatpush.bf16.msra.mxu0 0
      %1709 = vmatpush.bf16.msra.mxu0 0
      %1710 = vmatpush.bf16.msra.mxu0 %v1698
      %1711 = vmatpush.bf16.msra.mxu0 %v1697
      %1712 = vmatmul.bf16.gmra.mxu0 %v784
      %v1713 = vpop.f32.mrf.mxu0
      %v1714 = vadd.f32 0.0, %v1713
      %v1715 = vpop.f32.mrf.mxu0
      %v1716 = vadd.f32 0.0, %v1715
      %1717 = vmatmul.bf16.gmra.mxu0 %v787
      %v1718 = vpop.f32.mrf.mxu0
      %v1719 = vadd.f32 0.0, %v1718
      %v1720 = vpop.f32.mrf.mxu0
      %v1721 = vadd.f32 0.0, %v1720
      %1722 = vmatmul.bf16.gmra.mxu0 %v790
      %v1723 = vpop.f32.mrf.mxu0
      %v1724 = vadd.f32 0.0, %v1723
      %v1725 = vpop.f32.mrf.mxu0
      %v1726 = vadd.f32 0.0, %v1725
      %1727 = vmatmul.bf16.gmra.mxu0 %v793
      %v1728 = vpop.f32.mrf.mxu0
      %v1729 = vadd.f32 0.0, %v1728
      %v1730 = vpop.f32.mrf.mxu0
      %v1731 = vadd.f32 0.0, %v1730
      %1732 = vmatmul.bf16.gmra.mxu0 %v796
      %v1733 = vpop.f32.mrf.mxu0
      %v1734 = vadd.f32 0.0, %v1733
      %v1735 = vpop.f32.mrf.mxu0
      %v1736 = vadd.f32 0.0, %v1735
      %1737 = vmatmul.bf16.gmra.mxu0 %v799
      %v1738 = vpop.f32.mrf.mxu0
      %v1739 = vadd.f32 0.0, %v1738
      %v1740 = vpop.f32.mrf.mxu0
      %v1741 = vadd.f32 0.0, %v1740
      %1742 = vmatmul.bf16.gmra.mxu0 %v802
      %v1743 = vpop.f32.mrf.mxu0
      %v1744 = vadd.f32 0.0, %v1743
      %v1745 = vpop.f32.mrf.mxu0
      %v1746 = vadd.f32 0.0, %v1745
      %1747 = vmatmul.bf16.gmra.mxu0 %v805
      %v1748 = vpop.f32.mrf.mxu0
      %v1749 = vadd.f32 0.0, %v1748
      %v1750 = vpop.f32.mrf.mxu0
      %v1751 = vadd.f32 0.0, %v1750
      %1752 = vmatmul.bf16.gmra.mxu0 %v808
      %v1753 = vpop.f32.mrf.mxu0
      %v1754 = vadd.f32 0.0, %v1753
      %v1755 = vpop.f32.mrf.mxu0
      %v1756 = vadd.f32 0.0, %v1755
      %1757 = vmatmul.bf16.gmra.mxu0 %v811
      %v1758 = vpop.f32.mrf.mxu0
      %v1759 = vadd.f32 0.0, %v1758
      %v1760 = vpop.f32.mrf.mxu0
      %v1761 = vadd.f32 0.0, %v1760
      %1762 = vmatmul.bf16.gmra.mxu0 %v814
      %v1763 = vpop.f32.mrf.mxu0
      %v1764 = vadd.f32 0.0, %v1763
      %v1765 = vpop.f32.mrf.mxu0
      %v1766 = vadd.f32 0.0, %v1765
      %1767 = vmatmul.bf16.gmra.mxu0 %v817
      %v1768 = vpop.f32.mrf.mxu0
      %v1769 = vadd.f32 0.0, %v1768
      %v1770 = vpop.f32.mrf.mxu0
      %v1771 = vadd.f32 0.0, %v1770
      %1772 = vmatmul.bf16.gmra.mxu0 %v820
      %v1773 = vpop.f32.mrf.mxu0
      %v1774 = vadd.f32 0.0, %v1773
      %v1775 = vpop.f32.mrf.mxu0
      %v1776 = vadd.f32 0.0, %v1775
      %1777 = vmatmul.bf16.gmra.mxu0 %v823
      %v1778 = vpop.f32.mrf.mxu0
      %v1779 = vadd.f32 0.0, %v1778
      %v1780 = vpop.f32.mrf.mxu0
      %v1781 = vadd.f32 0.0, %v1780
      %1782 = vmatmul.bf16.gmra.mxu0 %v826
      %v1783 = vpop.f32.mrf.mxu0
      %v1784 = vadd.f32 0.0, %v1783
      %v1785 = vpop.f32.mrf.mxu0
      %v1786 = vadd.f32 0.0, %v1785
      %1787 = vmatmul.bf16.gmra.mxu0 %v1702
      %v1788 = vpop.f32.mrf.mxu0
      %v1789 = vadd.f32 0.0, %v1788
      %v1790 = vpop.f32.mrf.mxu0
      %v1791 = vadd.f32 0.0, %v1790
      %1792 = vdwg.mxu0
      %v1793 = vadd.f32 %v1625, %v1714
      %v1794 = vadd.f32 %v1626, %v1716
      %v1795 = vadd.f32 %v1627, %v1719
      %v1796 = vadd.f32 %v1628, %v1721
      %v1797 = vadd.f32 %v1629, %v1724
      %v1798 = vadd.f32 %v1630, %v1726
      %v1799 = vadd.f32 %v1631, %v1729
      %v1800 = vadd.f32 %v1632, %v1731
      %v1801 = vadd.f32 %v1633, %v1734
      %v1802 = vadd.f32 %v1634, %v1736
      %v1803 = vadd.f32 %v1635, %v1739
      %v1804 = vadd.f32 %v1636, %v1741
      %v1805 = vadd.f32 %v1637, %v1744
      %v1806 = vadd.f32 %v1638, %v1746
      %v1807 = vadd.f32 %v1639, %v1749
      %v1808 = vadd.f32 %v1640, %v1751
      %v1809 = vadd.f32 %v1641, %v1754
      %v1810 = vadd.f32 %v1642, %v1756
      %v1811 = vadd.f32 %v1643, %v1759
      %v1812 = vadd.f32 %v1644, %v1761
      %v1813 = vadd.f32 %v1645, %v1764
      %v1814 = vadd.f32 %v1646, %v1766
      %v1815 = vadd.f32 %v1647, %v1769
      %v1816 = vadd.f32 %v1648, %v1771
      %v1817 = vadd.f32 %v1649, %v1774
      %v1818 = vadd.f32 %v1650, %v1776
      %v1819 = vadd.f32 %v1651, %v1779
      %v1820 = vadd.f32 %v1652, %v1781
      %v1821 = vadd.f32 %v1653, %v1784
      %v1822 = vadd.f32 %v1654, %v1786
      %v1823 = vadd.f32 %v1655, %v1789
      %v1824 = vadd.f32 %v1656, %v1791
      %v1826 = vrot.slane %v317, 5
      %v1827 = vrot.slane %v1826, 4
      %v1828 = vrot.slane %v318, 5
      %v1829 = vsel %vm1164, %v1827, %v1828
      %v1830 = vrot.slane %v1828, 4
      %v1831 = vrot.slane %v319, 5
      %v1832 = vsel %vm1164, %v1830, %v1831
      %s1833 = scalar_lea.vmem %s247, 80
      %v1834 = vld [vmem:[%s1833] sm:$0xf]
      %v1835 = vld [vmem:[%s1833 + $0x4] sm:$0xf]
      %v1836 = vld [vmem:[%s1833 + $0x8] sm:$0xf]
      %v1837 = vld [vmem:[%s1833 + $0xc] sm:$0xf]
      %v1838 = vunpack.c.l.b16 %v1829
      %v1839 = vunpack.c.l.b16 %v1832
      %v1840 = vpack.c.b16 %v1839, %v1838
      %v1845 = vunpack.c.l.b16 %v1834
      %v1846 = vunpack.c.l.b16 %v1835
      %v1847 = vunpack.c.l.b16 %v1836
      %v1848 = vunpack.c.l.b16 %v1837
      %v1849 = vpack.c.b16 %v1846, %v1845
      %v1850 = vpack.c.b16 %v1848, %v1847
      %v1854 = vsel %vm779, %v1840, 0
      %1856 = vmatpush.bf16.msra.mxu0 0
      %1857 = vmatpush.bf16.msra.mxu0 0
      %1858 = vmatpush.bf16.msra.mxu0 0
      %1859 = vmatpush.bf16.msra.mxu0 0
      %1860 = vmatpush.bf16.msra.mxu0 0
      %1861 = vmatpush.bf16.msra.mxu0 0
      %1862 = vmatpush.bf16.msra.mxu0 %v1850
      %1863 = vmatpush.bf16.msra.mxu0 %v1849
      %1864 = vmatmul.bf16.gmra.mxu0 %v1346
      %v1865 = vpop.f32.mrf.mxu0
      %v1866 = vadd.f32 0.0, %v1865
      %v1867 = vpop.f32.mrf.mxu0
      %v1868 = vadd.f32 0.0, %v1867
      %1869 = vmatmul.bf16.gmra.mxu0 %v1349
      %v1870 = vpop.f32.mrf.mxu0
      %v1871 = vadd.f32 0.0, %v1870
      %v1872 = vpop.f32.mrf.mxu0
      %v1873 = vadd.f32 0.0, %v1872
      %1874 = vmatmul.bf16.gmra.mxu0 %v1352
      %v1875 = vpop.f32.mrf.mxu0
      %v1876 = vadd.f32 0.0, %v1875
      %v1877 = vpop.f32.mrf.mxu0
      %v1878 = vadd.f32 0.0, %v1877
      %1879 = vmatmul.bf16.gmra.mxu0 %v1355
      %v1880 = vpop.f32.mrf.mxu0
      %v1881 = vadd.f32 0.0, %v1880
      %v1882 = vpop.f32.mrf.mxu0
      %v1883 = vadd.f32 0.0, %v1882
      %1884 = vmatmul.bf16.gmra.mxu0 %v1358
      %v1885 = vpop.f32.mrf.mxu0
      %v1886 = vadd.f32 0.0, %v1885
      %v1887 = vpop.f32.mrf.mxu0
      %v1888 = vadd.f32 0.0, %v1887
      %1889 = vmatmul.bf16.gmra.mxu0 %v1361
      %v1890 = vpop.f32.mrf.mxu0
      %v1891 = vadd.f32 0.0, %v1890
      %v1892 = vpop.f32.mrf.mxu0
      %v1893 = vadd.f32 0.0, %v1892
      %1894 = vmatmul.bf16.gmra.mxu0 %v1364
      %v1895 = vpop.f32.mrf.mxu0
      %v1896 = vadd.f32 0.0, %v1895
      %v1897 = vpop.f32.mrf.mxu0
      %v1898 = vadd.f32 0.0, %v1897
      %1899 = vmatmul.bf16.gmra.mxu0 %v1367
      %v1900 = vpop.f32.mrf.mxu0
      %v1901 = vadd.f32 0.0, %v1900
      %v1902 = vpop.f32.mrf.mxu0
      %v1903 = vadd.f32 0.0, %v1902
      %1904 = vmatmul.bf16.gmra.mxu0 %v1370
      %v1905 = vpop.f32.mrf.mxu0
      %v1906 = vadd.f32 0.0, %v1905
      %v1907 = vpop.f32.mrf.mxu0
      %v1908 = vadd.f32 0.0, %v1907
      %1909 = vmatmul.bf16.gmra.mxu0 %v1373
      %v1910 = vpop.f32.mrf.mxu0
      %v1911 = vadd.f32 0.0, %v1910
      %v1912 = vpop.f32.mrf.mxu0
      %v1913 = vadd.f32 0.0, %v1912
      %1914 = vmatmul.bf16.gmra.mxu0 %v1376
      %v1915 = vpop.f32.mrf.mxu0
      %v1916 = vadd.f32 0.0, %v1915
      %v1917 = vpop.f32.mrf.mxu0
      %v1918 = vadd.f32 0.0, %v1917
      %1919 = vmatmul.bf16.gmra.mxu0 %v1379
      %v1920 = vpop.f32.mrf.mxu0
      %v1921 = vadd.f32 0.0, %v1920
      %v1922 = vpop.f32.mrf.mxu0
      %v1923 = vadd.f32 0.0, %v1922
      %1924 = vmatmul.bf16.gmra.mxu0 %v1382
      %v1925 = vpop.f32.mrf.mxu0
      %v1926 = vadd.f32 0.0, %v1925
      %v1927 = vpop.f32.mrf.mxu0
      %v1928 = vadd.f32 0.0, %v1927
      %1929 = vmatmul.bf16.gmra.mxu0 %v1385
      %v1930 = vpop.f32.mrf.mxu0
      %v1931 = vadd.f32 0.0, %v1930
      %v1932 = vpop.f32.mrf.mxu0
      %v1933 = vadd.f32 0.0, %v1932
      %1934 = vmatmul.bf16.gmra.mxu0 %v1388
      %v1935 = vpop.f32.mrf.mxu0
      %v1936 = vadd.f32 0.0, %v1935
      %v1937 = vpop.f32.mrf.mxu0
      %v1938 = vadd.f32 0.0, %v1937
      %1939 = vmatmul.bf16.gmra.mxu0 %v1854
      %v1940 = vpop.f32.mrf.mxu0
      %v1941 = vadd.f32 0.0, %v1940
      %v1942 = vpop.f32.mrf.mxu0
      %v1943 = vadd.f32 0.0, %v1942
      %1944 = vdwg.mxu0
      %v1945 = vadd.f32 %v1793, %v1866
      %v1946 = vadd.f32 %v1794, %v1868
      %v1947 = vadd.f32 %v1795, %v1871
      %v1948 = vadd.f32 %v1796, %v1873
      %v1949 = vadd.f32 %v1797, %v1876
      %v1950 = vadd.f32 %v1798, %v1878
      %v1951 = vadd.f32 %v1799, %v1881
      %v1952 = vadd.f32 %v1800, %v1883
      %v1953 = vadd.f32 %v1801, %v1886
      %v1954 = vadd.f32 %v1802, %v1888
      %v1955 = vadd.f32 %v1803, %v1891
      %v1956 = vadd.f32 %v1804, %v1893
      %v1957 = vadd.f32 %v1805, %v1896
      %v1958 = vadd.f32 %v1806, %v1898
      %v1959 = vadd.f32 %v1807, %v1901
      %v1960 = vadd.f32 %v1808, %v1903
      %v1961 = vadd.f32 %v1809, %v1906
      %v1962 = vadd.f32 %v1810, %v1908
      %v1963 = vadd.f32 %v1811, %v1911
      %v1964 = vadd.f32 %v1812, %v1913
      %v1965 = vadd.f32 %v1813, %v1916
      %v1966 = vadd.f32 %v1814, %v1918
      %v1967 = vadd.f32 %v1815, %v1921
      %v1968 = vadd.f32 %v1816, %v1923
      %v1969 = vadd.f32 %v1817, %v1926
      %v1970 = vadd.f32 %v1818, %v1928
      %v1971 = vadd.f32 %v1819, %v1931
      %v1972 = vadd.f32 %v1820, %v1933
      %v1973 = vadd.f32 %v1821, %v1936
      %v1974 = vadd.f32 %v1822, %v1938
      %v1975 = vadd.f32 %v1823, %v1941
      %v1976 = vadd.f32 %v1824, %v1943
      %s1977 = scalar_lea.vmem %s247, 96
      %v1978 = vld [vmem:[%s1977] sm:$0xf]
      %v1979 = vld [vmem:[%s1977 + $0x4] sm:$0xf]
      %v1980 = vld [vmem:[%s1977 + $0x8] sm:$0xf]
      %v1981 = vld [vmem:[%s1977 + $0xc] sm:$0xf]
      %v1984 = vunpack.c.l.b16 %v320
      %v1985 = vunpack.c.l.b16 %v321
      %v1986 = vpack.c.b16 %v1985, %v1984
      %v1991 = vunpack.c.l.b16 %v1978
      %v1992 = vunpack.c.l.b16 %v1979
      %v1993 = vunpack.c.l.b16 %v1980
      %v1994 = vunpack.c.l.b16 %v1981
      %v1995 = vpack.c.b16 %v1992, %v1991
      %v1996 = vpack.c.b16 %v1994, %v1993
      %v2000 = vsel %vm779, %v1986, 0
      %2002 = vmatpush.bf16.msra.mxu0 0
      %2003 = vmatpush.bf16.msra.mxu0 0
      %2004 = vmatpush.bf16.msra.mxu0 0
      %2005 = vmatpush.bf16.msra.mxu0 0
      %2006 = vmatpush.bf16.msra.mxu0 0
      %2007 = vmatpush.bf16.msra.mxu0 0
      %2008 = vmatpush.bf16.msra.mxu0 %v1996
      %2009 = vmatpush.bf16.msra.mxu0 %v1995
      %2010 = vmatmul.bf16.gmra.mxu0 %v1016
      %v2011 = vpop.f32.mrf.mxu0
      %v2012 = vadd.f32 0.0, %v2011
      %v2013 = vpop.f32.mrf.mxu0
      %v2014 = vadd.f32 0.0, %v2013
      %2015 = vmatmul.bf16.gmra.mxu0 %v1019
      %v2016 = vpop.f32.mrf.mxu0
      %v2017 = vadd.f32 0.0, %v2016
      %v2018 = vpop.f32.mrf.mxu0
      %v2019 = vadd.f32 0.0, %v2018
      %2020 = vmatmul.bf16.gmra.mxu0 %v1022
      %v2021 = vpop.f32.mrf.mxu0
      %v2022 = vadd.f32 0.0, %v2021
      %v2023 = vpop.f32.mrf.mxu0
      %v2024 = vadd.f32 0.0, %v2023
      %2025 = vmatmul.bf16.gmra.mxu0 %v1025
      %v2026 = vpop.f32.mrf.mxu0
      %v2027 = vadd.f32 0.0, %v2026
      %v2028 = vpop.f32.mrf.mxu0
      %v2029 = vadd.f32 0.0, %v2028
      %2030 = vmatmul.bf16.gmra.mxu0 %v1028
      %v2031 = vpop.f32.mrf.mxu0
      %v2032 = vadd.f32 0.0, %v2031
      %v2033 = vpop.f32.mrf.mxu0
      %v2034 = vadd.f32 0.0, %v2033
      %2035 = vmatmul.bf16.gmra.mxu0 %v1031
      %v2036 = vpop.f32.mrf.mxu0
      %v2037 = vadd.f32 0.0, %v2036
      %v2038 = vpop.f32.mrf.mxu0
      %v2039 = vadd.f32 0.0, %v2038
      %2040 = vmatmul.bf16.gmra.mxu0 %v1034
      %v2041 = vpop.f32.mrf.mxu0
      %v2042 = vadd.f32 0.0, %v2041
      %v2043 = vpop.f32.mrf.mxu0
      %v2044 = vadd.f32 0.0, %v2043
      %2045 = vmatmul.bf16.gmra.mxu0 %v1037
      %v2046 = vpop.f32.mrf.mxu0
      %v2047 = vadd.f32 0.0, %v2046
      %v2048 = vpop.f32.mrf.mxu0
      %v2049 = vadd.f32 0.0, %v2048
      %2050 = vmatmul.bf16.gmra.mxu0 %v1040
      %v2051 = vpop.f32.mrf.mxu0
      %v2052 = vadd.f32 0.0, %v2051
      %v2053 = vpop.f32.mrf.mxu0
      %v2054 = vadd.f32 0.0, %v2053
      %2055 = vmatmul.bf16.gmra.mxu0 %v1043
      %v2056 = vpop.f32.mrf.mxu0
      %v2057 = vadd.f32 0.0, %v2056
      %v2058 = vpop.f32.mrf.mxu0
      %v2059 = vadd.f32 0.0, %v2058
      %2060 = vmatmul.bf16.gmra.mxu0 %v1046
      %v2061 = vpop.f32.mrf.mxu0
      %v2062 = vadd.f32 0.0, %v2061
      %v2063 = vpop.f32.mrf.mxu0
      %v2064 = vadd.f32 0.0, %v2063
      %2065 = vmatmul.bf16.gmra.mxu0 %v1049
      %v2066 = vpop.f32.mrf.mxu0
      %v2067 = vadd.f32 0.0, %v2066
      %v2068 = vpop.f32.mrf.mxu0
      %v2069 = vadd.f32 0.0, %v2068
      %2070 = vmatmul.bf16.gmra.mxu0 %v1052
      %v2071 = vpop.f32.mrf.mxu0
      %v2072 = vadd.f32 0.0, %v2071
      %v2073 = vpop.f32.mrf.mxu0
      %v2074 = vadd.f32 0.0, %v2073
      %2075 = vmatmul.bf16.gmra.mxu0 %v1055
      %v2076 = vpop.f32.mrf.mxu0
      %v2077 = vadd.f32 0.0, %v2076
      %v2078 = vpop.f32.mrf.mxu0
      %v2079 = vadd.f32 0.0, %v2078
      %2080 = vmatmul.bf16.gmra.mxu0 %v1534
      %v2081 = vpop.f32.mrf.mxu0
      %v2082 = vadd.f32 0.0, %v2081
      %v2083 = vpop.f32.mrf.mxu0
      %v2084 = vadd.f32 0.0, %v2083
      %2085 = vmatmul.bf16.gmra.mxu0 %v2000
      %v2086 = vpop.f32.mrf.mxu0
      %v2087 = vadd.f32 0.0, %v2086
      %v2088 = vpop.f32.mrf.mxu0
      %v2089 = vadd.f32 0.0, %v2088
      %2090 = vdwg.mxu0
      %v2091 = vadd.f32 %v1945, %v2012
      %v2092 = vadd.f32 %v1946, %v2014
      %v2093 = vadd.f32 %v1947, %v2017
      %v2094 = vadd.f32 %v1948, %v2019
      %v2095 = vadd.f32 %v1949, %v2022
      %v2096 = vadd.f32 %v1950, %v2024
      %v2097 = vadd.f32 %v1951, %v2027
      %v2098 = vadd.f32 %v1952, %v2029
      %v2099 = vadd.f32 %v1953, %v2032
      %v2100 = vadd.f32 %v1954, %v2034
      %v2101 = vadd.f32 %v1955, %v2037
      %v2102 = vadd.f32 %v1956, %v2039
      %v2103 = vadd.f32 %v1957, %v2042
      %v2104 = vadd.f32 %v1958, %v2044
      %v2105 = vadd.f32 %v1959, %v2047
      %v2106 = vadd.f32 %v1960, %v2049
      %v2107 = vadd.f32 %v1961, %v2052
      %v2108 = vadd.f32 %v1962, %v2054
      %v2109 = vadd.f32 %v1963, %v2057
      %v2110 = vadd.f32 %v1964, %v2059
      %v2111 = vadd.f32 %v1965, %v2062
      %v2112 = vadd.f32 %v1966, %v2064
      %v2113 = vadd.f32 %v1967, %v2067
      %v2114 = vadd.f32 %v1968, %v2069
      %v2115 = vadd.f32 %v1969, %v2072
      %v2116 = vadd.f32 %v1970, %v2074
      %v2117 = vadd.f32 %v1971, %v2077
      %v2118 = vadd.f32 %v1972, %v2079
      %v2119 = vadd.f32 %v1973, %v2082
      %v2120 = vadd.f32 %v1974, %v2084
      %v2121 = vadd.f32 %v1975, %v2087
      %v2122 = vadd.f32 %v1976, %v2089
      %v2124 = vshrl.u32 %v320, 16
      %v2126 = vrot.slane %v2124, 4
      %v2127 = vshll.u32 %v320, 16
      %v2129 = vrot.slane %v2127, 5
      %v2130 = vor.u32 %v2126, %v2129
      %v2131 = vrot.slane %v2130, 4
      %v2133 = vshll.u32 %v321, 16
      %v2135 = vrot.slane %v2133, 5
      %v2136 = vsel %vm329, %v2131, %v2135
      %v2137 = vshrl.u32 %v321, 16
      %v2139 = vrot.slane %v2137, 4
      %v2140 = vor.u32 %v2139, %v2135
      %v2141 = vrot.slane %v2140, 4
      %v2143 = vshll.u32 %v322, 16
      %v2145 = vrot.slane %v2143, 5
      %v2146 = vsel %vm329, %v2141, %v2145
      %s2147 = scalar_lea.vmem %s247, 112
      %v2148 = vld [vmem:[%s2147] sm:$0xf]
      %v2149 = vld [vmem:[%s2147 + $0x4] sm:$0xf]
      %v2150 = vld [vmem:[%s2147 + $0x8] sm:$0xf]
      %v2151 = vld [vmem:[%s2147 + $0xc] sm:$0xf]
      %v2152 = vunpack.c.l.b16 %v2136
      %v2153 = vunpack.c.l.b16 %v2146
      %v2154 = vpack.c.b16 %v2153, %v2152
      %v2159 = vunpack.c.l.b16 %v2148
      %v2160 = vunpack.c.l.b16 %v2149
      %v2161 = vunpack.c.l.b16 %v2150
      %v2162 = vunpack.c.l.b16 %v2151
      %v2163 = vpack.c.b16 %v2160, %v2159
      %v2164 = vpack.c.b16 %v2162, %v2161
      %v2168 = vsel %vm779, %v2154, 0
      %2170 = vmatpush.bf16.msra.mxu0 0
      %2171 = vmatpush.bf16.msra.mxu0 0
      %2172 = vmatpush.bf16.msra.mxu0 0
      %2173 = vmatpush.bf16.msra.mxu0 0
      %2174 = vmatpush.bf16.msra.mxu0 0
      %2175 = vmatpush.bf16.msra.mxu0 0
      %2176 = vmatpush.bf16.msra.mxu0 %v2164
      %2177 = vmatpush.bf16.msra.mxu0 %v2163
      %2178 = vmatmul.bf16.gmra.mxu0 %v787
      %v2179 = vpop.f32.mrf.mxu0
      %v2180 = vadd.f32 0.0, %v2179
      %v2181 = vpop.f32.mrf.mxu0
      %v2182 = vadd.f32 0.0, %v2181
      %2183 = vmatmul.bf16.gmra.mxu0 %v790
      %v2184 = vpop.f32.mrf.mxu0
      %v2185 = vadd.f32 0.0, %v2184
      %v2186 = vpop.f32.mrf.mxu0
      %v2187 = vadd.f32 0.0, %v2186
      %2188 = vmatmul.bf16.gmra.mxu0 %v793
      %v2189 = vpop.f32.mrf.mxu0
      %v2190 = vadd.f32 0.0, %v2189
      %v2191 = vpop.f32.mrf.mxu0
      %v2192 = vadd.f32 0.0, %v2191
      %2193 = vmatmul.bf16.gmra.mxu0 %v796
      %v2194 = vpop.f32.mrf.mxu0
      %v2195 = vadd.f32 0.0, %v2194
      %v2196 = vpop.f32.mrf.mxu0
      %v2197 = vadd.f32 0.0, %v2196
      %2198 = vmatmul.bf16.gmra.mxu0 %v799
      %v2199 = vpop.f32.mrf.mxu0
      %v2200 = vadd.f32 0.0, %v2199
      %v2201 = vpop.f32.mrf.mxu0
      %v2202 = vadd.f32 0.0, %v2201
      %2203 = vmatmul.bf16.gmra.mxu0 %v802
      %v2204 = vpop.f32.mrf.mxu0
      %v2205 = vadd.f32 0.0, %v2204
      %v2206 = vpop.f32.mrf.mxu0
      %v2207 = vadd.f32 0.0, %v2206
      %2208 = vmatmul.bf16.gmra.mxu0 %v805
      %v2209 = vpop.f32.mrf.mxu0
      %v2210 = vadd.f32 0.0, %v2209
      %v2211 = vpop.f32.mrf.mxu0
      %v2212 = vadd.f32 0.0, %v2211
      %2213 = vmatmul.bf16.gmra.mxu0 %v808
      %v2214 = vpop.f32.mrf.mxu0
      %v2215 = vadd.f32 0.0, %v2214
      %v2216 = vpop.f32.mrf.mxu0
      %v2217 = vadd.f32 0.0, %v2216
      %2218 = vmatmul.bf16.gmra.mxu0 %v811
      %v2219 = vpop.f32.mrf.mxu0
      %v2220 = vadd.f32 0.0, %v2219
      %v2221 = vpop.f32.mrf.mxu0
      %v2222 = vadd.f32 0.0, %v2221
      %2223 = vmatmul.bf16.gmra.mxu0 %v814
      %v2224 = vpop.f32.mrf.mxu0
      %v2225 = vadd.f32 0.0, %v2224
      %v2226 = vpop.f32.mrf.mxu0
      %v2227 = vadd.f32 0.0, %v2226
      %2228 = vmatmul.bf16.gmra.mxu0 %v817
      %v2229 = vpop.f32.mrf.mxu0
      %v2230 = vadd.f32 0.0, %v2229
      %v2231 = vpop.f32.mrf.mxu0
      %v2232 = vadd.f32 0.0, %v2231
      %2233 = vmatmul.bf16.gmra.mxu0 %v820
      %v2234 = vpop.f32.mrf.mxu0
      %v2235 = vadd.f32 0.0, %v2234
      %v2236 = vpop.f32.mrf.mxu0
      %v2237 = vadd.f32 0.0, %v2236
      %2238 = vmatmul.bf16.gmra.mxu0 %v823
      %v2239 = vpop.f32.mrf.mxu0
      %v2240 = vadd.f32 0.0, %v2239
      %v2241 = vpop.f32.mrf.mxu0
      %v2242 = vadd.f32 0.0, %v2241
      %2243 = vmatmul.bf16.gmra.mxu0 %v826
      %v2244 = vpop.f32.mrf.mxu0
      %v2245 = vadd.f32 0.0, %v2244
      %v2246 = vpop.f32.mrf.mxu0
      %v2247 = vadd.f32 0.0, %v2246
      %2248 = vmatmul.bf16.gmra.mxu0 %v1702
      %v2249 = vpop.f32.mrf.mxu0
      %v2250 = vadd.f32 0.0, %v2249
      %v2251 = vpop.f32.mrf.mxu0
      %v2252 = vadd.f32 0.0, %v2251
      %2253 = vmatmul.bf16.gmra.mxu0 %v2168
      %v2254 = vpop.f32.mrf.mxu0
      %v2255 = vadd.f32 0.0, %v2254
      %v2256 = vpop.f32.mrf.mxu0
      %v2257 = vadd.f32 0.0, %v2256
      %2258 = vdwg.mxu0
      %v2259 = vadd.f32 %v2091, %v2180
      %v2260 = vadd.f32 %v2092, %v2182
      %v2261 = vadd.f32 %v2093, %v2185
      %v2262 = vadd.f32 %v2094, %v2187
      %v2263 = vadd.f32 %v2095, %v2190
      %v2264 = vadd.f32 %v2096, %v2192
      %v2265 = vadd.f32 %v2097, %v2195
      %v2266 = vadd.f32 %v2098, %v2197
      %v2267 = vadd.f32 %v2099, %v2200
      %v2268 = vadd.f32 %v2100, %v2202
      %v2269 = vadd.f32 %v2101, %v2205
      %v2270 = vadd.f32 %v2102, %v2207
      %v2271 = vadd.f32 %v2103, %v2210
      %v2272 = vadd.f32 %v2104, %v2212
      %v2273 = vadd.f32 %v2105, %v2215
      %v2274 = vadd.f32 %v2106, %v2217
      %v2275 = vadd.f32 %v2107, %v2220
      %v2276 = vadd.f32 %v2108, %v2222
      %v2277 = vadd.f32 %v2109, %v2225
      %v2278 = vadd.f32 %v2110, %v2227
      %v2279 = vadd.f32 %v2111, %v2230
      %v2280 = vadd.f32 %v2112, %v2232
      %v2281 = vadd.f32 %v2113, %v2235
      %v2282 = vadd.f32 %v2114, %v2237
      %v2283 = vadd.f32 %v2115, %v2240
      %v2284 = vadd.f32 %v2116, %v2242
      %v2285 = vadd.f32 %v2117, %v2245
      %v2286 = vadd.f32 %v2118, %v2247
      %v2287 = vadd.f32 %v2119, %v2250
      %v2288 = vadd.f32 %v2120, %v2252
      %v2289 = vadd.f32 %v2121, %v2255
      %v2290 = vadd.f32 %v2122, %v2257
      %v2292 = vrot.slane %v320, 5
      %v2293 = vrot.slane %v2292, 4
      %v2294 = vrot.slane %v321, 5
      %v2295 = vsel %vm1164, %v2293, %v2294
      %v2296 = vrot.slane %v2294, 4
      %v2297 = vrot.slane %v322, 5
      %v2298 = vsel %vm1164, %v2296, %v2297
      %s2299 = scalar_lea.vmem %s247, 128
      %v2300 = vld [vmem:[%s2299] sm:$0xf]
      %v2301 = vld [vmem:[%s2299 + $0x4] sm:$0xf]
      %v2302 = vld [vmem:[%s2299 + $0x8] sm:$0xf]
      %v2303 = vld [vmem:[%s2299 + $0xc] sm:$0xf]
      %v2304 = vunpack.c.l.b16 %v2295
      %v2305 = vunpack.c.l.b16 %v2298
      %v2306 = vpack.c.b16 %v2305, %v2304
      %v2311 = vunpack.c.l.b16 %v2300
      %v2312 = vunpack.c.l.b16 %v2301
      %v2313 = vunpack.c.l.b16 %v2302
      %v2314 = vunpack.c.l.b16 %v2303
      %v2315 = vpack.c.b16 %v2312, %v2311
      %v2316 = vpack.c.b16 %v2314, %v2313
      %v2320 = vsel %vm779, %v2306, 0
      %2322 = vmatpush.bf16.msra.mxu0 0
      %2323 = vmatpush.bf16.msra.mxu0 0
      %2324 = vmatpush.bf16.msra.mxu0 0
      %2325 = vmatpush.bf16.msra.mxu0 0
      %2326 = vmatpush.bf16.msra.mxu0 0
      %2327 = vmatpush.bf16.msra.mxu0 0
      %2328 = vmatpush.bf16.msra.mxu0 %v2316
      %2329 = vmatpush.bf16.msra.mxu0 %v2315
      %2330 = vmatmul.bf16.gmra.mxu0 %v1349
      %v2331 = vpop.f32.mrf.mxu0
      %v2332 = vadd.f32 0.0, %v2331
      %v2333 = vpop.f32.mrf.mxu0
      %v2334 = vadd.f32 0.0, %v2333
      %2335 = vmatmul.bf16.gmra.mxu0 %v1352
      %v2336 = vpop.f32.mrf.mxu0
      %v2337 = vadd.f32 0.0, %v2336
      %v2338 = vpop.f32.mrf.mxu0
      %v2339 = vadd.f32 0.0, %v2338
      %2340 = vmatmul.bf16.gmra.mxu0 %v1355
      %v2341 = vpop.f32.mrf.mxu0
      %v2342 = vadd.f32 0.0, %v2341
      %v2343 = vpop.f32.mrf.mxu0
      %v2344 = vadd.f32 0.0, %v2343
      %2345 = vmatmul.bf16.gmra.mxu0 %v1358
      %v2346 = vpop.f32.mrf.mxu0
      %v2347 = vadd.f32 0.0, %v2346
      %v2348 = vpop.f32.mrf.mxu0
      %v2349 = vadd.f32 0.0, %v2348
      %2350 = vmatmul.bf16.gmra.mxu0 %v1361
      %v2351 = vpop.f32.mrf.mxu0
      %v2352 = vadd.f32 0.0, %v2351
      %v2353 = vpop.f32.mrf.mxu0
      %v2354 = vadd.f32 0.0, %v2353
      %2355 = vmatmul.bf16.gmra.mxu0 %v1364
      %v2356 = vpop.f32.mrf.mxu0
      %v2357 = vadd.f32 0.0, %v2356
      %v2358 = vpop.f32.mrf.mxu0
      %v2359 = vadd.f32 0.0, %v2358
      %2360 = vmatmul.bf16.gmra.mxu0 %v1367
      %v2361 = vpop.f32.mrf.mxu0
      %v2362 = vadd.f32 0.0, %v2361
      %v2363 = vpop.f32.mrf.mxu0
      %v2364 = vadd.f32 0.0, %v2363
      %2365 = vmatmul.bf16.gmra.mxu0 %v1370
      %v2366 = vpop.f32.mrf.mxu0
      %v2367 = vadd.f32 0.0, %v2366
      %v2368 = vpop.f32.mrf.mxu0
      %v2369 = vadd.f32 0.0, %v2368
      %2370 = vmatmul.bf16.gmra.mxu0 %v1373
      %v2371 = vpop.f32.mrf.mxu0
      %v2372 = vadd.f32 0.0, %v2371
      %v2373 = vpop.f32.mrf.mxu0
      %v2374 = vadd.f32 0.0, %v2373
      %2375 = vmatmul.bf16.gmra.mxu0 %v1376
      %v2376 = vpop.f32.mrf.mxu0
      %v2377 = vadd.f32 0.0, %v2376
      %v2378 = vpop.f32.mrf.mxu0
      %v2379 = vadd.f32 0.0, %v2378
      %2380 = vmatmul.bf16.gmra.mxu0 %v1379
      %v2381 = vpop.f32.mrf.mxu0
      %v2382 = vadd.f32 0.0, %v2381
      %v2383 = vpop.f32.mrf.mxu0
      %v2384 = vadd.f32 0.0, %v2383
      %2385 = vmatmul.bf16.gmra.mxu0 %v1382
      %v2386 = vpop.f32.mrf.mxu0
      %v2387 = vadd.f32 0.0, %v2386
      %v2388 = vpop.f32.mrf.mxu0
      %v2389 = vadd.f32 0.0, %v2388
      %2390 = vmatmul.bf16.gmra.mxu0 %v1385
      %v2391 = vpop.f32.mrf.mxu0
      %v2392 = vadd.f32 0.0, %v2391
      %v2393 = vpop.f32.mrf.mxu0
      %v2394 = vadd.f32 0.0, %v2393
      %2395 = vmatmul.bf16.gmra.mxu0 %v1388
      %v2396 = vpop.f32.mrf.mxu0
      %v2397 = vadd.f32 0.0, %v2396
      %v2398 = vpop.f32.mrf.mxu0
      %v2399 = vadd.f32 0.0, %v2398
      %2400 = vmatmul.bf16.gmra.mxu0 %v1854
      %v2401 = vpop.f32.mrf.mxu0
      %v2402 = vadd.f32 0.0, %v2401
      %v2403 = vpop.f32.mrf.mxu0
      %v2404 = vadd.f32 0.0, %v2403
      %2405 = vmatmul.bf16.gmra.mxu0 %v2320
      %v2406 = vpop.f32.mrf.mxu0
      %v2407 = vadd.f32 0.0, %v2406
      %v2408 = vpop.f32.mrf.mxu0
      %v2409 = vadd.f32 0.0, %v2408
      %2410 = vdwg.mxu0
      %v2411 = vadd.f32 %v2259, %v2332
      %v2412 = vadd.f32 %v2260, %v2334
      %v2413 = vadd.f32 %v2261, %v2337
      %v2414 = vadd.f32 %v2262, %v2339
      %v2415 = vadd.f32 %v2263, %v2342
      %v2416 = vadd.f32 %v2264, %v2344
      %v2417 = vadd.f32 %v2265, %v2347
      %v2418 = vadd.f32 %v2266, %v2349
      %v2419 = vadd.f32 %v2267, %v2352
      %v2420 = vadd.f32 %v2268, %v2354
      %v2421 = vadd.f32 %v2269, %v2357
      %v2422 = vadd.f32 %v2270, %v2359
      %v2423 = vadd.f32 %v2271, %v2362
      %v2424 = vadd.f32 %v2272, %v2364
      %v2425 = vadd.f32 %v2273, %v2367
      %v2426 = vadd.f32 %v2274, %v2369
      %v2427 = vadd.f32 %v2275, %v2372
      %v2428 = vadd.f32 %v2276, %v2374
      %v2429 = vadd.f32 %v2277, %v2377
      %v2430 = vadd.f32 %v2278, %v2379
      %v2431 = vadd.f32 %v2279, %v2382
      %v2432 = vadd.f32 %v2280, %v2384
      %v2433 = vadd.f32 %v2281, %v2387
      %v2434 = vadd.f32 %v2282, %v2389
      %v2435 = vadd.f32 %v2283, %v2392
      %v2436 = vadd.f32 %v2284, %v2394
      %v2437 = vadd.f32 %v2285, %v2397
      %v2438 = vadd.f32 %v2286, %v2399
      %v2439 = vadd.f32 %v2287, %v2402
      %v2440 = vadd.f32 %v2288, %v2404
      %v2441 = vadd.f32 %v2289, %v2407
      %v2442 = vadd.f32 %v2290, %v2409
      %v2443 = vpack.c.bf16 %v2411, %v2411
      %v2444 = vpack.c.bf16 %v2412, %v2412
      %v2445 = vpack.c.bf16 %v2413, %v2413
      %v2446 = vpack.c.bf16 %v2414, %v2414
      %v2447 = vpack.c.bf16 %v2415, %v2415
      %v2448 = vpack.c.bf16 %v2416, %v2416
      %v2449 = vpack.c.bf16 %v2417, %v2417
      %v2450 = vpack.c.bf16 %v2418, %v2418
      %v2451 = vpack.c.bf16 %v2419, %v2419
      %v2452 = vpack.c.bf16 %v2420, %v2420
      %v2453 = vpack.c.bf16 %v2421, %v2421
      %v2454 = vpack.c.bf16 %v2422, %v2422
      %v2455 = vpack.c.bf16 %v2423, %v2423
      %v2456 = vpack.c.bf16 %v2424, %v2424
      %v2457 = vpack.c.bf16 %v2425, %v2425
      %v2458 = vpack.c.bf16 %v2426, %v2426
      %v2459 = vpack.c.bf16 %v2427, %v2427
      %v2460 = vpack.c.bf16 %v2428, %v2428
      %v2461 = vpack.c.bf16 %v2429, %v2429
      %v2462 = vpack.c.bf16 %v2430, %v2430
      %v2463 = vpack.c.bf16 %v2431, %v2431
      %v2464 = vpack.c.bf16 %v2432, %v2432
      %v2465 = vpack.c.bf16 %v2433, %v2433
      %v2466 = vpack.c.bf16 %v2434, %v2434
      %v2467 = vpack.c.bf16 %v2435, %v2435
      %v2468 = vpack.c.bf16 %v2436, %v2436
      %v2469 = vpack.c.bf16 %v2437, %v2437
      %v2470 = vpack.c.bf16 %v2438, %v2438
      %v2471 = vpack.c.bf16 %v2439, %v2439
      %v2472 = vpack.c.bf16 %v2440, %v2440
      %v2473 = vpack.c.bf16 %v2441, %v2441
      %v2474 = vpack.c.bf16 %v2442, %v2442
      %vm2475 = vcmask 257024
      %2476 = vst.msk [vmem:[%s255] sm:$0xf] %vm2475, %v2443
      %2477 = vst.msk [vmem:[%s255 + $0x4] sm:$0xf] %vm2475, %v2444
      %2478 = vst.msk [vmem:[%s255 + $0x8] sm:$0xf] %vm2475, %v2445
      %2479 = vst.msk [vmem:[%s255 + $0xc] sm:$0xf] %vm2475, %v2446
      %2480 = vst.msk [vmem:[%s255 + $0x10] sm:$0xf] %vm2475, %v2447
      %2481 = vst.msk [vmem:[%s255 + $0x14] sm:$0xf] %vm2475, %v2448
      %2482 = vst.msk [vmem:[%s255 + $0x18] sm:$0xf] %vm2475, %v2449
      %2483 = vst.msk [vmem:[%s255 + $0x1c] sm:$0xf] %vm2475, %v2450
      %2484 = vst.msk [vmem:[%s255 + $0x20] sm:$0xf] %vm2475, %v2451
      %2485 = vst.msk [vmem:[%s255 + $0x24] sm:$0xf] %vm2475, %v2452
      %2486 = vst.msk [vmem:[%s255 + $0x28] sm:$0xf] %vm2475, %v2453
      %2487 = vst.msk [vmem:[%s255 + $0x2c] sm:$0xf] %vm2475, %v2454
      %2488 = vst.msk [vmem:[%s255 + $0x30] sm:$0xf] %vm2475, %v2455
      %2489 = vst.msk [vmem:[%s255 + $0x34] sm:$0xf] %vm2475, %v2456
      %2490 = vst.msk [vmem:[%s255 + $0x38] sm:$0xf] %vm2475, %v2457
      %2491 = vst.msk [vmem:[%s255 + $0x3c] sm:$0xf] %vm2475, %v2458
      %2492 = vst.msk [vmem:[%s255 + $0x40] sm:$0xf] %vm2475, %v2459
      %2493 = vst.msk [vmem:[%s255 + $0x44] sm:$0xf] %vm2475, %v2460
      %2494 = vst.msk [vmem:[%s255 + $0x48] sm:$0xf] %vm2475, %v2461
      %2495 = vst.msk [vmem:[%s255 + $0x4c] sm:$0xf] %vm2475, %v2462
      %2496 = vst.msk [vmem:[%s255 + $0x50] sm:$0xf] %vm2475, %v2463
      %2497 = vst.msk [vmem:[%s255 + $0x54] sm:$0xf] %vm2475, %v2464
      %2498 = vst.msk [vmem:[%s255 + $0x58] sm:$0xf] %vm2475, %v2465
      %2499 = vst.msk [vmem:[%s255 + $0x5c] sm:$0xf] %vm2475, %v2466
      %2500 = vst.msk [vmem:[%s255 + $0x60] sm:$0xf] %vm2475, %v2467
      %2501 = vst.msk [vmem:[%s255 + $0x64] sm:$0xf] %vm2475, %v2468
      %2502 = vst.msk [vmem:[%s255 + $0x68] sm:$0xf] %vm2475, %v2469
      %2503 = vst.msk [vmem:[%s255 + $0x6c] sm:$0xf] %vm2475, %v2470
      %2504 = vst.msk [vmem:[%s255 + $0x70] sm:$0xf] %vm2475, %v2471
      %2505 = vst.msk [vmem:[%s255 + $0x74] sm:$0xf] %vm2475, %v2472
      %2506 = vst.msk [vmem:[%s255 + $0x78] sm:$0xf] %vm2475, %v2473
      %2507 = vst.msk [vmem:[%s255 + $0x7c] sm:$0xf] %vm2475, %v2474
      %v2508 = vsel %vm779, %v2411, 0.0
      %v2509 = vsel %vm779, %v2412, 0.0
      %v2510 = vadd.f32 %v2508, %v2509
      %v2511 = vsel %vm779, %v2413, 0.0
      %v2512 = vadd.f32 %v2510, %v2511
      %v2513 = vsel %vm779, %v2414, 0.0
      %v2514 = vadd.f32 %v2512, %v2513
      %v2515 = vsel %vm779, %v2415, 0.0
      %v2516 = vadd.f32 %v2514, %v2515
      %v2517 = vsel %vm779, %v2416, 0.0
      %v2518 = vadd.f32 %v2516, %v2517
      %v2519 = vsel %vm779, %v2417, 0.0
      %v2520 = vadd.f32 %v2518, %v2519
      %v2521 = vsel %vm779, %v2418, 0.0
      %v2522 = vadd.f32 %v2520, %v2521
      %v2523 = vsel %vm779, %v2419, 0.0
      %v2524 = vadd.f32 %v2522, %v2523
      %v2525 = vsel %vm779, %v2420, 0.0
      %v2526 = vadd.f32 %v2524, %v2525
      %v2527 = vsel %vm779, %v2421, 0.0
      %v2528 = vadd.f32 %v2526, %v2527
      %v2529 = vsel %vm779, %v2422, 0.0
      %v2530 = vadd.f32 %v2528, %v2529
      %v2531 = vsel %vm779, %v2423, 0.0
      %v2532 = vadd.f32 %v2530, %v2531
      %v2533 = vsel %vm779, %v2424, 0.0
      %v2534 = vadd.f32 %v2532, %v2533
      %v2535 = vsel %vm779, %v2425, 0.0
      %v2536 = vadd.f32 %v2534, %v2535
      %v2537 = vsel %vm779, %v2426, 0.0
      %v2538 = vadd.f32 %v2536, %v2537
      %v2539 = vsel %vm779, %v2427, 0.0
      %v2540 = vadd.f32 %v2538, %v2539
      %v2541 = vsel %vm779, %v2428, 0.0
      %v2542 = vadd.f32 %v2540, %v2541
      %v2543 = vsel %vm779, %v2429, 0.0
      %v2544 = vadd.f32 %v2542, %v2543
      %v2545 = vsel %vm779, %v2430, 0.0
      %v2546 = vadd.f32 %v2544, %v2545
      %v2547 = vsel %vm779, %v2431, 0.0
      %v2548 = vadd.f32 %v2546, %v2547
      %v2549 = vsel %vm779, %v2432, 0.0
      %v2550 = vadd.f32 %v2548, %v2549
      %v2551 = vsel %vm779, %v2433, 0.0
      %v2552 = vadd.f32 %v2550, %v2551
      %v2553 = vsel %vm779, %v2434, 0.0
      %v2554 = vadd.f32 %v2552, %v2553
      %v2555 = vsel %vm779, %v2435, 0.0
      %v2556 = vadd.f32 %v2554, %v2555
      %v2557 = vsel %vm779, %v2436, 0.0
      %v2558 = vadd.f32 %v2556, %v2557
      %v2559 = vsel %vm779, %v2437, 0.0
      %v2560 = vadd.f32 %v2558, %v2559
      %v2561 = vsel %vm779, %v2438, 0.0
      %v2562 = vadd.f32 %v2560, %v2561
      %v2563 = vsel %vm779, %v2439, 0.0
      %v2564 = vadd.f32 %v2562, %v2563
      %v2565 = vsel %vm779, %v2440, 0.0
      %v2566 = vadd.f32 %v2564, %v2565
      %v2567 = vsel %vm779, %v2441, 0.0
      %v2568 = vadd.f32 %v2566, %v2567
      %v2569 = vsel %vm779, %v2442, 0.0
      %v2570 = vadd.f32 %v2568, %v2569
      %v2571 = vrot.slane %v2570, 4
      %v2572 = vadd.f32 %v2570, %v2571
      %v2573 = vrot.slane %v2572, 2
      %v2574 = vadd.f32 %v2572, %v2573
      %v2575 = vrot.slane %v2574, 1
      %v2576 = vadd.f32 %v2574, %v2575
      %vm2577 = vcmask 253952
      %2578 = vst.msk [vmem:[%s261] sm:$0x1] %vm2577, %v2576
      %v2579 = vmul.f32 %v2411, %v2411
      %v2580 = vmul.f32 %v2412, %v2412
      %v2581 = vmul.f32 %v2413, %v2413
      %v2582 = vmul.f32 %v2414, %v2414
      %v2583 = vmul.f32 %v2415, %v2415
      %v2584 = vmul.f32 %v2416, %v2416
      %v2585 = vmul.f32 %v2417, %v2417
      %v2586 = vmul.f32 %v2418, %v2418
      %v2587 = vmul.f32 %v2419, %v2419
      %v2588 = vmul.f32 %v2420, %v2420
      %v2589 = vmul.f32 %v2421, %v2421
      %v2590 = vmul.f32 %v2422, %v2422
      %v2591 = vmul.f32 %v2423, %v2423
      %v2592 = vmul.f32 %v2424, %v2424
      %v2593 = vmul.f32 %v2425, %v2425
      %v2594 = vmul.f32 %v2426, %v2426
      %v2595 = vmul.f32 %v2427, %v2427
      %v2596 = vmul.f32 %v2428, %v2428
      %v2597 = vmul.f32 %v2429, %v2429
      %v2598 = vmul.f32 %v2430, %v2430
      %v2599 = vmul.f32 %v2431, %v2431
      %v2600 = vmul.f32 %v2432, %v2432
      %v2601 = vmul.f32 %v2433, %v2433
      %v2602 = vmul.f32 %v2434, %v2434
      %v2603 = vmul.f32 %v2435, %v2435
      %v2604 = vmul.f32 %v2436, %v2436
      %v2605 = vmul.f32 %v2437, %v2437
      %v2606 = vmul.f32 %v2438, %v2438
      %v2607 = vmul.f32 %v2439, %v2439
      %v2608 = vmul.f32 %v2440, %v2440
      %v2609 = vmul.f32 %v2441, %v2441
      %v2610 = vmul.f32 %v2442, %v2442
      %v2611 = vsel %vm779, %v2579, 0.0
      %v2612 = vsel %vm779, %v2580, 0.0
      %v2613 = vadd.f32 %v2611, %v2612
      %v2614 = vsel %vm779, %v2581, 0.0
      %v2615 = vadd.f32 %v2613, %v2614
      %v2616 = vsel %vm779, %v2582, 0.0
      %v2617 = vadd.f32 %v2615, %v2616
      %v2618 = vsel %vm779, %v2583, 0.0
      %v2619 = vadd.f32 %v2617, %v2618
      %v2620 = vsel %vm779, %v2584, 0.0
      %v2621 = vadd.f32 %v2619, %v2620
      %v2622 = vsel %vm779, %v2585, 0.0
      %v2623 = vadd.f32 %v2621, %v2622
      %v2624 = vsel %vm779, %v2586, 0.0
      %v2625 = vadd.f32 %v2623, %v2624
      %v2626 = vsel %vm779, %v2587, 0.0
      %v2627 = vadd.f32 %v2625, %v2626
      %v2628 = vsel %vm779, %v2588, 0.0
      %v2629 = vadd.f32 %v2627, %v2628
      %v2630 = vsel %vm779, %v2589, 0.0
      %v2631 = vadd.f32 %v2629, %v2630
      %v2632 = vsel %vm779, %v2590, 0.0
      %v2633 = vadd.f32 %v2631, %v2632
      %v2634 = vsel %vm779, %v2591, 0.0
      %v2635 = vadd.f32 %v2633, %v2634
      %v2636 = vsel %vm779, %v2592, 0.0
      %v2637 = vadd.f32 %v2635, %v2636
      %v2638 = vsel %vm779, %v2593, 0.0
      %v2639 = vadd.f32 %v2637, %v2638
      %v2640 = vsel %vm779, %v2594, 0.0
      %v2641 = vadd.f32 %v2639, %v2640
      %v2642 = vsel %vm779, %v2595, 0.0
      %v2643 = vadd.f32 %v2641, %v2642
      %v2644 = vsel %vm779, %v2596, 0.0
      %v2645 = vadd.f32 %v2643, %v2644
      %v2646 = vsel %vm779, %v2597, 0.0
      %v2647 = vadd.f32 %v2645, %v2646
      %v2648 = vsel %vm779, %v2598, 0.0
      %v2649 = vadd.f32 %v2647, %v2648
      %v2650 = vsel %vm779, %v2599, 0.0
      %v2651 = vadd.f32 %v2649, %v2650
      %v2652 = vsel %vm779, %v2600, 0.0
      %v2653 = vadd.f32 %v2651, %v2652
      %v2654 = vsel %vm779, %v2601, 0.0
      %v2655 = vadd.f32 %v2653, %v2654
      %v2656 = vsel %vm779, %v2602, 0.0
      %v2657 = vadd.f32 %v2655, %v2656
      %v2658 = vsel %vm779, %v2603, 0.0
      %v2659 = vadd.f32 %v2657, %v2658
      %v2660 = vsel %vm779, %v2604, 0.0
      %v2661 = vadd.f32 %v2659, %v2660
      %v2662 = vsel %vm779, %v2605, 0.0
      %v2663 = vadd.f32 %v2661, %v2662
      %v2664 = vsel %vm779, %v2606, 0.0
      %v2665 = vadd.f32 %v2663, %v2664
      %v2666 = vsel %vm779, %v2607, 0.0
      %v2667 = vadd.f32 %v2665, %v2666
      %v2668 = vsel %vm779, %v2608, 0.0
      %v2669 = vadd.f32 %v2667, %v2668
      %v2670 = vsel %vm779, %v2609, 0.0
      %v2671 = vadd.f32 %v2669, %v2670
      %v2672 = vsel %vm779, %v2610, 0.0
      %v2673 = vadd.f32 %v2671, %v2672
      %v2674 = vrot.slane %v2673, 4
      %v2675 = vadd.f32 %v2673, %v2674
      %v2676 = vrot.slane %v2675, 2
      %v2677 = vadd.f32 %v2675, %v2676
      %v2678 = vrot.slane %v2677, 1
      %v2679 = vadd.f32 %v2677, %v2678
      %2680 = vst.msk [vmem:[%s267] sm:$0x1] %vm2577, %v2679
      %p2681 = scmp.lt.s32.totalorder %s20, 1
      %s2682 = scalar_select %p2681, %s20, 1
      %p2683 = scmp.lt.s32.totalorder %s21, 0
      %s2684 = scalar_select %p2683, %s21, 0
      %s2685 = smul.addr %s2682, 32
      %s2686 = sadd.s32 %s2684, %s2685
      %s2687 = smul.addr %s2686, 4
      %s2688 = scalar_lea.vmem %s2, %s2687
      %p2689 = scmp.lt.s32.totalorder %s20, 1
      %s2690 = scalar_select %p2689, %s20, 1
      %p2691 = scmp.lt.s32.totalorder %s21, 0
      %s2692 = scalar_select %p2691, %s21, 0
      %s2693 = sadd.s32 %s2692, %s2690
      %s2694 = scalar_lea.vmem %s3, %s2693
      %p2695 = scmp.lt.s32.totalorder %s20, 1
      %s2696 = scalar_select %p2695, %s20, 1
      %p2697 = scmp.lt.s32.totalorder %s21, 0
      %s2698 = scalar_select %p2697, %s21, 0
      %s2699 = sadd.s32 %s2698, %s2696
      %s2700 = scalar_lea.vmem %s4, %s2699
      // Predicated region
      $region29: #{conv_block_apply.6} parent=27 // pred_check
        %p2701 = pneg %p100
      $region30: #{conv_block_apply.6} parent=27 // pred_check_branch
        %2703 = sbr.rel (%p2701) target = $region32
      $region31: #{conv_block_apply.6} parent=27 // pred_region
        _
      $region32: #{conv_block_apply.6} parent=27 // pred_fallthru
        _
      // Predicated region
      $region33: #{conv_block_apply.6} parent=27 // pred_check
        %p2704 = pneg %p128
      $region34: #{conv_block_apply.6} parent=27 // pred_check_branch
        %2706 = sbr.rel (%p2704) target = $region36
      $region35: #{conv_block_apply.6} parent=27 // pred_region
        _
      $region36: #{conv_block_apply.6} parent=27 // pred_fallthru
        _
      // Predicated region
      $region37: #{conv_block_apply.6} parent=27 // pred_check
        %p2707 = pneg %p156
      $region38: #{conv_block_apply.6} parent=27 // pred_check_branch
        %2709 = sbr.rel (%p2707) target = $region40
      $region39: #{conv_block_apply.6} parent=27 // pred_region
        _
      $region40: #{conv_block_apply.6} parent=27 // pred_fallthru
        _
    $region28: #{conv_block_apply.6} parent=5 // pred_fallthru
      _
    %p2710 = scmp.le.s32.totalorder 2, %s11
    // Predicated region
    $region41: #{conv_block_apply.6} parent=5 // pred_check
      %p2711 = pneg %p2710
    $region42: #{conv_block_apply.6} parent=5 // pred_check_branch
      %2713 = sbr.rel (%p2711) target = $region44
    $region43: #{conv_block_apply.6} parent=5 // pred_region
      %s2714 = ssub.s32 %s11, 2
      // Predicated region
      $region45: #{conv_block_apply.6} parent=43 // pred_check
        %p2715 = pneg %p106
      $region46: #{conv_block_apply.6} parent=43 // pred_check_branch
        %2717 = sbr.rel (%p2715) target = $region48
      $region47: #{conv_block_apply.6} parent=43 // pred_region
        %p2718 = scmp.lt.s32.totalorder %s22, 1
        %s2719 = scalar_select %p2718, %s22, 1
        %p2720 = scmp.lt.s32.totalorder %s23, 0
        %s2721 = scalar_select %p2720, %s23, 0
        %s2722 = smul.addr %s2719, 32
        %s2723 = sadd.s32 %s2721, %s2722
        %s2724 = smul.addr %s2723, 4
        %s2725 = scalar_lea.vmem %s2, %s2724
      $region48: #{conv_block_apply.6} parent=43 // pred_fallthru
        _
      // Predicated region
      $region49: #{conv_block_apply.6} parent=43 // pred_check
        %p2726 = pneg %p134
      $region50: #{conv_block_apply.6} parent=43 // pred_check_branch
        %2728 = sbr.rel (%p2726) target = $region52
      $region51: #{conv_block_apply.6} parent=43 // pred_region
        %p2729 = scmp.lt.s32.totalorder %s22, 1
        %s2730 = scalar_select %p2729, %s22, 1
        %p2731 = scmp.lt.s32.totalorder %s23, 0
        %s2732 = scalar_select %p2731, %s23, 0
        %s2733 = sadd.s32 %s2732, %s2730
        %s2734 = scalar_lea.vmem %s3, %s2733
      $region52: #{conv_block_apply.6} parent=43 // pred_fallthru
        _
      // Predicated region
      $region53: #{conv_block_apply.6} parent=43 // pred_check
        %p2735 = pneg %p162
      $region54: #{conv_block_apply.6} parent=43 // pred_check_branch
        %2737 = sbr.rel (%p2735) target = $region56
      $region55: #{conv_block_apply.6} parent=43 // pred_region
        %p2738 = scmp.lt.s32.totalorder %s22, 1
        %s2739 = scalar_select %p2738, %s22, 1
        %p2740 = scmp.lt.s32.totalorder %s23, 0
        %s2741 = scalar_select %p2740, %s23, 0
        %s2742 = sadd.s32 %s2741, %s2739
        %s2743 = scalar_lea.vmem %s4, %s2742
      $region56: #{conv_block_apply.6} parent=43 // pred_fallthru
        _
    $region44: #{conv_block_apply.6} parent=5 // pred_fallthru
      _
  $region6: #{conv_block_apply.6} parent=0 // loop_footer
    %s15 = sadd.s32 1, %s11
  $region7: #{conv_block_apply.6} parent=0 // loop_footer_branch
    %10 = sbr.rel target = $region3
  $region8: #{conv_block_apply.6} parent=0 // loop_exit
    _

</llo_original>
